<compile_context>
chip_gen: v7x
topology: tpu7x:2x2x1
jax: 0.10.0
libtpu: 0.0.40
codegen_flags: <defaults>
</compile_context>

<pallas_src>
import jax
import jax.numpy as jnp
from jax import lax
from jax.experimental import pallas as pl
from jax.experimental.pallas import tpu as pltpu

BN_EPS = 1e-5


# ---------------------------------------------------------------------------
# Fused kernel: AttentionFusion + GAP + classifier MLP (one batch block / step)
# ---------------------------------------------------------------------------
def _fused_head_kernel(pre_ref, post_ref,
                       w1_ref, b1_ref, w2_ref, b2_ref,
                       cw1_ref, cb1_ref, cw2_ref, cb2_ref, cw3_ref, cb3_ref,
                       out_ref, pad_scr):
    NB, H, W, C = pre_ref.shape
    C2 = 2 * C
    M = NB * H * W

    # ---- zero-padded (NB, H+2, W+2, 2C) bf16 input for the 3x3 "same" conv.
    # Only the 1-pixel halo needs zeroing; the interior is overwritten below,
    # and pre/post are written in bf16 directly (no separate cast pass).
    zrow = jnp.zeros((NB, 1, W + 2, C2), jnp.bfloat16)
    pad_scr[:, 0:1, :, :] = zrow
    pad_scr[:, H + 1:H + 2, :, :] = zrow
    zcol = jnp.zeros((NB, H, 1, C2), jnp.bfloat16)
    pad_scr[:, 1:H + 1, 0:1, :] = zcol
    pad_scr[:, 1:H + 1, W + 1:W + 2, :] = zcol
    pad_scr[:, 1:H + 1, 1:W + 1, 0:C] = pre_ref[...]
    pad_scr[:, 1:H + 1, 1:W + 1, C:C2] = post_ref[...]

    # ---- 3x3 conv (+ folded conv-bias / BN) as 9 accumulated bf16 matmuls
    # of shape (M, 2C) x (2C, C) with f32 accumulation (no 9x data dup). ----
    acc = None
    for kh in range(3):
        for kw in range(3):
            win = pad_scr[:, kh:kh + H, kw:kw + W, :].reshape(M, C2)
            part = jnp.dot(win, w1_ref[kh * 3 + kw],
                           preferred_element_type=jnp.float32)
            acc = part if acc is None else acc + part
    h = jnp.maximum(acc + b1_ref[...], 0.0)                         # (M, C) f32

    # ---- 1x1 conv -> single attention channel (MXU matmul) -> sigmoid ------
    logit = jnp.dot(h.astype(jnp.bfloat16), w2_ref[...],
                    preferred_element_type=jnp.float32) + b2_ref[0, 0]
    attn = jax.nn.sigmoid(logit)                                     # (M, 1)

    # ---- fuse (pre + attn * post) in f32 + global average pool -------------
    pre = pre_ref[...].astype(jnp.float32).reshape(M, C)
    post = post_ref[...].astype(jnp.float32).reshape(M, C)
    fused = pre + post * attn
    pooled = jnp.mean(fused.reshape(NB, H * W, C), axis=1)           # (NB, C)

    # ---- classifier MLP (BN folded into weights, Dropout = eval identity) --
    h1 = jnp.maximum(
        jnp.dot(pooled.astype(jnp.bfloat16), cw1_ref[...],
                preferred_element_type=jnp.float32) + cb1_ref[...], 0.0)
    h2 = jnp.maximum(
        jnp.dot(h1.astype(jnp.bfloat16), cw2_ref[...],
                preferred_element_type=jnp.float32) + cb2_ref[...], 0.0)
    logits = (jnp.dot(h2.astype(jnp.bfloat16), cw3_ref[...],
                      preferred_element_type=jnp.float32) + cb3_ref[...])
    out_ref[...] = logits.reshape(out_ref.shape)


def baseline_head_forward(pre_feat, post_feat, kp, num_classes, num_blocks=None):
    N, H, W, C = pre_feat.shape
    H1 = kp["cls_w1"].shape[1]
    H2 = kp["cls_w2"].shape[1]

    # Split the batch into >1 grid steps so the pre/post HBM->VMEM DMA
    # pipelines against compute and "parallel" shards across both v7x
    # TensorCores.  TODO(synk): at production sizes pick NB so NB*H*W >= 256
    # (MXU M fill) and NB = N // num_cores on v7x.
    if num_blocks is None:
        num_blocks = 2 if (N >= 2 and N % 2 == 0) else 1
    assert N % num_blocks == 0
    NB = N // num_blocks

    # bf16 inputs: the conv path consumes bf16 anyway; halves HBM traffic of
    # the two dominant tensors.  Fuse/GAP upcasts to f32 inside the kernel.
    pre_bf = pre_feat.astype(jnp.bfloat16)
    post_bf = post_feat.astype(jnp.bfloat16)

    grid_spec = pltpu.PrefetchScalarGridSpec(
        num_scalar_prefetch=0,
        grid=(num_blocks,),
        in_specs=[
            pl.BlockSpec((NB, H, W, C), lambda b: (b, 0, 0, 0)),
            pl.BlockSpec((NB, H, W, C), lambda b: (b, 0, 0, 0)),
            pl.BlockSpec((9, 2 * C, C), lambda b: (0, 0, 0)),        # conv w (per tap)
            pl.BlockSpec((1, C), lambda b: (0, 0)),                  # conv bias+BN
            pl.BlockSpec((C, 1), lambda b: (0, 0)),                  # 1x1 attn w
            pl.BlockSpec(memory_space=pltpu.MemorySpace.SMEM),       # 1x1 attn bias
            pl.BlockSpec((C, H1), lambda b: (0, 0)),
            pl.BlockSpec((1, H1), lambda b: (0, 0)),
            pl.BlockSpec((H1, H2), lambda b: (0, 0)),
            pl.BlockSpec((1, H2), lambda b: (0, 0)),
            pl.BlockSpec((H2, num_classes), lambda b: (0, 0)),
            pl.BlockSpec((1, num_classes), lambda b: (0, 0)),
        ],
        # 3-D output so the block's last two dims equal the full array dims.
        out_specs=pl.BlockSpec((1, NB, num_classes), lambda b: (b, 0, 0)),
        scratch_shapes=[pltpu.VMEM((NB, H + 2, W + 2, 2 * C), jnp.bfloat16)],
    )
    out = pl.pallas_call(
        _fused_head_kernel,
        out_shape=jax.ShapeDtypeStruct((num_blocks, NB, num_classes), jnp.float32),
        grid_spec=grid_spec,
        compiler_params=pltpu.CompilerParams(
            dimension_semantics=("parallel",)),
    )(pre_bf, post_bf,
      kp["attn_w1"], kp["attn_b1"], kp["attn_w2"], kp["attn_b2"],
      kp["cls_w1"], kp["cls_b1"], kp["cls_w2"], kp["cls_b2"],
      kp["cls_w3"], kp["cls_b3"])
    return out.reshape(N, num_classes)


# ---------------------------------------------------------------------------
# Parameters: raw (PyTorch-like) + folded/bf16 kernel parameters
# ---------------------------------------------------------------------------
def _make_bn(key, n):
    k1, k2, k3, k4 = jax.random.split(key, 4)
    return {"gamma": jax.random.uniform(k1, (n,), jnp.float32, 0.7, 1.3),
            "beta": 0.1 * jax.random.normal(k2, (n,), jnp.float32),
            "mean": 0.1 * jax.random.normal(k3, (n,), jnp.float32),
            "var": jax.random.uniform(k4, (n,), jnp.float32, 0.7, 1.3)}


def _bn_fold(bn):
    s = bn["gamma"] / jnp.sqrt(bn["var"] + BN_EPS)
    return s, bn["beta"] - bn["mean"] * s


def make_params(key, C, num_classes):
    ks = jax.random.split(key, 10)

    def kaiming(k, fan_out, shape):
        return jax.random.normal(k, shape, jnp.float32) * jnp.sqrt(2.0 / fan_out)

    return {
        # AttentionFusion: Conv2d(2C -> C, 3x3, pad=1) in HWIO + BN(C) eval.
        "attn_w1": jax.random.normal(ks[0], (3, 3, 2 * C, C), jnp.float32) * 0.05,
        "attn_b1": jax.random.normal(ks[1], (C,), jnp.float32) * 0.02,
        "attn_bn": _make_bn(ks[2], C),
        # Conv2d(C -> 1, 1x1).
        "attn_w2": jax.random.normal(ks[3], (C,), jnp.float32) * 0.05,
        "attn_b2": jnp.float32(0.1),
        # Classifier (kaiming normal fan_out / relu, zero bias, BN1d eval).
        "cls_w1": kaiming(ks[4], 512, (C, 512)),
        "cls_b1": jnp.zeros((512,), jnp.float32),
        "cls_bn1": _make_bn(ks[5], 512),
        "cls_w2": kaiming(ks[6], 256, (512, 256)),
        "cls_b2": jnp.zeros((256,), jnp.float32),
        "cls_bn2": _make_bn(ks[7], 256),
        "cls_w3": kaiming(ks[8], num_classes, (256, num_classes)),
        "cls_b3": jnp.zeros((num_classes,), jnp.float32),
    }


def fold_params(rp, C):
    """One-time host-side fold: BN affine + biases into weights, bf16 weights."""
    bf = jnp.bfloat16
    s1, t1 = _bn_fold(rp["attn_bn"])
    sa, ta = _bn_fold(rp["cls_bn1"])
    sb, tb = _bn_fold(rp["cls_bn2"])
    return {
        # (3,3,2C,C) HWIO, BN scale folded on out-channel, reshaped per tap.
        "attn_w1": (rp["attn_w1"] * s1[None, None, None, :]
                    ).reshape(9, 2 * C, C).astype(bf),
        "attn_b1": (rp["attn_b1"] * s1 + t1).reshape(1, C),
        "attn_w2": rp["attn_w2"].reshape(C, 1).astype(bf),
        "attn_b2": jnp.full((1, 1), rp["attn_b2"], jnp.float32),
        "cls_w1": (rp["cls_w1"] * sa[None, :]).astype(bf),
        "cls_b1": (rp["cls_b1"] * sa + ta).reshape(1, -1),
        "cls_w2": (rp["cls_w2"] * sb[None, :]).astype(bf),
        "cls_b2": (rp["cls_b2"] * sb + tb).reshape(1, -1),
        "cls_w3": rp["cls_w3"].astype(bf),
        "cls_b3": rp["cls_b3"].reshape(1, -1),
    }


# ---------------------------------------------------------------------------
# Pure-JAX references for correctness checks
# ---------------------------------------------------------------------------
def reference_forward_bf16(pre, post, kp, C):
    """Mirrors the kernel numerics (folded params, bf16 inputs/MXU operands)."""
    bf = jnp.bfloat16
    pre_b = pre.astype(bf)
    post_b = post.astype(bf)
    cat = jnp.concatenate([pre_b, post_b], axis=-1)
    w1 = kp["attn_w1"].reshape(3, 3, 2 * C, C)
    h = lax.conv_general_dilated(cat, w1, (1, 1), "SAME",
                                 dimension_numbers=("NHWC", "HWIO", "NHWC"),
                                 preferred_element_type=jnp.float32)
    h = jnp.maximum(h + kp["attn_b1"].reshape(1, 1, 1, C), 0.0)
    logit = jnp.einsum("nhwc,co->nhwo", h.astype(bf), kp["attn_w2"],
                       preferred_element_type=jnp.float32) + kp["attn_b2"][0, 0]
    attn = jax.nn.sigmoid(logit)
    fused = pre_b.astype(jnp.float32) + post_b.astype(jnp.float32) * attn
    pooled = fused.mean(axis=(1, 2))

    def lin(x, w, b):
        return jnp.dot(x.astype(bf), w, preferred_element_type=jnp.float32) + b

    h1 = jnp.maximum(lin(pooled, kp["cls_w1"], kp["cls_b1"]), 0.0)
    h2 = jnp.maximum(lin(h1, kp["cls_w2"], kp["cls_b2"]), 0.0)
    return lin(h2, kp["cls_w3"], kp["cls_b3"])


def reference_forward_f32(pre, post, rp):
    """Exact f32 eval-mode math of the original module (validates the folding)."""
    s1, t1 = _bn_fold(rp["attn_bn"])
    cat = jnp.concatenate([pre, post], axis=-1)
    h = lax.conv_general_dilated(cat, rp["attn_w1"], (1, 1), "SAME",
                                 dimension_numbers=("NHWC", "HWIO", "NHWC"))
    h = jnp.maximum((h + rp["attn_b1"]) * s1 + t1, 0.0)
    logit = jnp.einsum("nhwc,c->nhw", h, rp["attn_w2"]) + rp["attn_b2"]
    attn = jax.nn.sigmoid(logit)[..., None]
    pooled = (pre + post * attn).mean(axis=(1, 2))
    sa, ta = _bn_fold(rp["cls_bn1"])
    sb, tb = _bn_fold(rp["cls_bn2"])
    h1 = jnp.maximum((pooled @ rp["cls_w1"] + rp["cls_b1"]) * sa + ta, 0.0)
    h2 = jnp.maximum((h1 @ rp["cls_w2"] + rp["cls_b2"]) * sb + tb, 0.0)
    return h2 @ rp["cls_w3"] + rp["cls_b3"]


if __name__ == "__main__":
    N, H, W = 2, 8, 8
    C = 128              # feature_dim (shrunk from ResNet50's 2048 for the test)
    NUM_CLASSES = 4

    key = jax.random.PRNGKey(0)
    kparam, kpre, kpost = jax.random.split(key, 3)
    raw_params = make_params(kparam, C, NUM_CLASSES)
    kernel_params = fold_params(raw_params, C)

    # Synthetic backbone feature maps (stand-ins for ResNet50 outputs), NHWC.
    pre_feat = jax.nn.relu(jax.random.normal(kpre, (N, H, W, C), jnp.float32))
    post_feat = jax.nn.relu(jax.random.normal(kpost, (N, H, W, C), jnp.float32))

    logits = baseline_head_forward(pre_feat, post_feat, kernel_params, NUM_CLASSES)
    logits = jax.block_until_ready(logits)
    assert logits.shape == (N, NUM_CLASSES)

    # Tight check vs. a reference that mirrors the kernel's bf16/f32 numerics.
    ref_bf16 = reference_forward_bf16(pre_feat, post_feat, kernel_params, C)
    assert jnp.allclose(logits, ref_bf16, rtol=2e-2, atol=2e-2), (logits, ref_bf16)

    # Loose check vs. the exact f32 module math (validates the BN/bias folding).
    ref_f32 = reference_forward_f32(pre_feat, post_feat, raw_params)
    err = jnp.max(jnp.abs(logits - ref_f32))
    assert err <= 0.1 * jnp.max(jnp.abs(ref_f32)) + 0.1, (err, logits, ref_f32)

    print("KERNEL_OK")
</pallas_src>

<mosaic_0001>
module attributes {stable_mosaic.version = 11 : i64} {
  func.func @_fused_head_kernel(%arg0: i32, %arg1: memref<1x8x8x128xbf16, #tpu.memory_space<vmem>>, %arg2: memref<1x8x8x128xbf16, #tpu.memory_space<vmem>>, %arg3: memref<9x256x128xbf16, #tpu.memory_space<vmem>>, %arg4: memref<1x128xf32, #tpu.memory_space<vmem>>, %arg5: memref<128x1xbf16, #tpu.memory_space<vmem>>, %arg6: memref<1x1xf32, #tpu.memory_space<smem>>, %arg7: memref<128x512xbf16, #tpu.memory_space<vmem>>, %arg8: memref<1x512xf32, #tpu.memory_space<vmem>>, %arg9: memref<512x256xbf16, #tpu.memory_space<vmem>>, %arg10: memref<1x256xf32, #tpu.memory_space<vmem>>, %arg11: memref<256x4xbf16, #tpu.memory_space<vmem>>, %arg12: memref<1x4xf32, #tpu.memory_space<vmem>>, %arg13: memref<1x1x4xf32, #tpu.memory_space<vmem>>, %arg14: memref<1x10x10x256xbf16, #tpu.memory_space<vmem>>) attributes {dimension_semantics = [#tpu.dimension_semantics<parallel>], iteration_bounds = array<i64: 2>, scalar_prefetch = 0 : i64, scratch_operands = 1 : i64, tpu.core_type = #tpu.core_type<tc>, window_params = [{transform_indices = @transform_0, window_bounds = array<i64: 1, 8, 8, 128>}, {transform_indices = @transform_1, window_bounds = array<i64: 1, 8, 8, 128>}, {pipeline_mode = #tpu.pipeline_mode<synchronous>, transform_indices = @transform_2, window_bounds = array<i64: 9, 256, 128>}, {pipeline_mode = #tpu.pipeline_mode<synchronous>, transform_indices = @transform_3, window_bounds = array<i64: 1, 128>}, {pipeline_mode = #tpu.pipeline_mode<synchronous>, transform_indices = @transform_4, window_bounds = array<i64: 128, 1>}, {transform_indices = @transform_5, window_bounds = array<i64: 1, 1>}, {pipeline_mode = #tpu.pipeline_mode<synchronous>, transform_indices = @transform_6, window_bounds = array<i64: 128, 512>}, {pipeline_mode = #tpu.pipeline_mode<synchronous>, transform_indices = @transform_7, window_bounds = array<i64: 1, 512>}, {pipeline_mode = #tpu.pipeline_mode<synchronous>, transform_indices = @transform_8, window_bounds = array<i64: 512, 256>}, {pipeline_mode = #tpu.pipeline_mode<synchronous>, transform_indices = @transform_9, window_bounds = array<i64: 1, 256>}, {pipeline_mode = #tpu.pipeline_mode<synchronous>, transform_indices = @transform_10, window_bounds = array<i64: 256, 4>}, {pipeline_mode = #tpu.pipeline_mode<synchronous>, transform_indices = @transform_11, window_bounds = array<i64: 1, 4>}, {transform_indices = @transform_12, window_bounds = array<i64: 1, 1, 4>}]} {
    %cst = arith.constant 0.000000e+00 : bf16
    %0 = vector.broadcast %cst : bf16 to vector<1x1x10x256xbf16>
    %c0 = arith.constant 0 : index
    %c0_0 = arith.constant 0 : index
    %c0_1 = arith.constant 0 : index
    %c0_2 = arith.constant 0 : index
    %1 = vector.load %arg14[%c0, %c0_0, %c0_1, %c0_2] : memref<1x10x10x256xbf16, #tpu.memory_space<vmem>>, vector<1x1x10x256xbf16>
    tpu.vector_store %arg14[%c0, %c0_0, %c0_1, %c0_2], %0 {strides = array<i32>} : memref<1x10x10x256xbf16, #tpu.memory_space<vmem>>, vector<1x1x10x256xbf16>,
    %c0_3 = arith.constant 0 : index
    %c9 = arith.constant 9 : index
    %c0_4 = arith.constant 0 : index
    %c0_5 = arith.constant 0 : index
    %2 = vector.load %arg14[%c0_3, %c9, %c0_4, %c0_5] : memref<1x10x10x256xbf16, #tpu.memory_space<vmem>>, vector<1x1x10x256xbf16>
    tpu.vector_store %arg14[%c0_3, %c9, %c0_4, %c0_5], %0 {strides = array<i32>} : memref<1x10x10x256xbf16, #tpu.memory_space<vmem>>, vector<1x1x10x256xbf16>,
    %cst_6 = arith.constant 0.000000e+00 : bf16
    %3 = vector.broadcast %cst_6 : bf16 to vector<1x8x1x256xbf16>
    %c0_7 = arith.constant 0 : index
    %c1 = arith.constant 1 : index
    %c0_8 = arith.constant 0 : index
    %c0_9 = arith.constant 0 : index
    %4 = vector.load %arg14[%c0_7, %c1, %c0_8, %c0_9] : memref<1x10x10x256xbf16, #tpu.memory_space<vmem>>, vector<1x8x1x256xbf16>
    tpu.vector_store %arg14[%c0_7, %c1, %c0_8, %c0_9], %3 {strides = array<i32>} : memref<1x10x10x256xbf16, #tpu.memory_space<vmem>>, vector<1x8x1x256xbf16>,
    %c0_10 = arith.constant 0 : index
    %c1_11 = arith.constant 1 : index
    %c9_12 = arith.constant 9 : index
    %c0_13 = arith.constant 0 : index
    %5 = vector.load %arg14[%c0_10, %c1_11, %c9_12, %c0_13] : memref<1x10x10x256xbf16, #tpu.memory_space<vmem>>, vector<1x8x1x256xbf16>
    tpu.vector_store %arg14[%c0_10, %c1_11, %c9_12, %c0_13], %3 {strides = array<i32>} : memref<1x10x10x256xbf16, #tpu.memory_space<vmem>>, vector<1x8x1x256xbf16>,
    %c0_14 = arith.constant 0 : index
    %c0_15 = arith.constant 0 : index
    %c0_16 = arith.constant 0 : index
    %c0_17 = arith.constant 0 : index
    %6 = vector.load %arg1[%c0_14, %c0_15, %c0_16, %c0_17] : memref<1x8x8x128xbf16, #tpu.memory_space<vmem>>, vector<1x8x8x128xbf16>
    %c0_18 = arith.constant 0 : index
    %c1_19 = arith.constant 1 : index
    %c1_20 = arith.constant 1 : index
    %c0_21 = arith.constant 0 : index
    %7 = vector.load %arg14[%c0_18, %c1_19, %c1_20, %c0_21] : memref<1x10x10x256xbf16, #tpu.memory_space<vmem>>, vector<1x8x8x128xbf16>
    tpu.vector_store %arg14[%c0_18, %c1_19, %c1_20, %c0_21], %6 {strides = array<i32>} : memref<1x10x10x256xbf16, #tpu.memory_space<vmem>>, vector<1x8x8x128xbf16>,
    %c0_22 = arith.constant 0 : index
    %c0_23 = arith.constant 0 : index
    %c0_24 = arith.constant 0 : index
    %c0_25 = arith.constant 0 : index
    %8 = vector.load %arg2[%c0_22, %c0_23, %c0_24, %c0_25] : memref<1x8x8x128xbf16, #tpu.memory_space<vmem>>, vector<1x8x8x128xbf16>
    %c0_26 = arith.constant 0 : index
    %c1_27 = arith.constant 1 : index
    %c1_28 = arith.constant 1 : index
    %c128 = arith.constant 128 : index
    %9 = vector.load %arg14[%c0_26, %c1_27, %c1_28, %c128] : memref<1x10x10x256xbf16, #tpu.memory_space<vmem>>, vector<1x8x8x128xbf16>
    tpu.vector_store %arg14[%c0_26, %c1_27, %c1_28, %c128], %8 {strides = array<i32>} : memref<1x10x10x256xbf16, #tpu.memory_space<vmem>>, vector<1x8x8x128xbf16>,
    %c0_29 = arith.constant 0 : index
    %c0_30 = arith.constant 0 : index
    %c0_31 = arith.constant 0 : index
    %c0_32 = arith.constant 0 : index
    %10 = vector.load %arg14[%c0_29, %c0_30, %c0_31, %c0_32] : memref<1x10x10x256xbf16, #tpu.memory_space<vmem>>, vector<1x8x8x256xbf16>
    %11 = vector.shape_cast %10 : vector<1x8x8x256xbf16> to vector<64x256xbf16>
    %c0_33 = arith.constant 0 : index
    %c0_34 = arith.constant 0 : index
    %c0_35 = arith.constant 0 : index
    %12 = vector.load %arg3[%c0_33, %c0_34, %c0_35] : memref<9x256x128xbf16, #tpu.memory_space<vmem>>, vector<1x256x128xbf16>
    %13 = vector.shape_cast %12 : vector<1x256x128xbf16> to vector<256x128xbf16>
    %cst_36 = arith.constant dense<0.000000e+00> : vector<64x128xf32>
    %14 = tpu.matmul %11, %13, %cst_36 {dimension_numbers = #tpu.dot_dimension_numbers<[1], [0], [0], [1], [0, 0, 1, 1], [], []>} : vector<64x256xbf16>, vector<256x128xbf16>, vector<64x128xf32> -> vector<64x128xf32>
    %c0_37 = arith.constant 0 : index
    %c0_38 = arith.constant 0 : index
    %c1_39 = arith.constant 1 : index
    %c0_40 = arith.constant 0 : index
    %15 = vector.load %arg14[%c0_37, %c0_38, %c1_39, %c0_40] : memref<1x10x10x256xbf16, #tpu.memory_space<vmem>>, vector<1x8x8x256xbf16>
    %16 = vector.shape_cast %15 : vector<1x8x8x256xbf16> to vector<64x256xbf16>
    %c1_41 = arith.constant 1 : index
    %c0_42 = arith.constant 0 : index
    %c0_43 = arith.constant 0 : index
    %17 = vector.load %arg3[%c1_41, %c0_42, %c0_43] : memref<9x256x128xbf16, #tpu.memory_space<vmem>>, vector<1x256x128xbf16>
    %18 = vector.shape_cast %17 : vector<1x256x128xbf16> to vector<256x128xbf16>
    %cst_44 = arith.constant dense<0.000000e+00> : vector<64x128xf32>
    %19 = tpu.matmul %16, %18, %cst_44 {dimension_numbers = #tpu.dot_dimension_numbers<[1], [0], [0], [1], [0, 0, 1, 1], [], []>} : vector<64x256xbf16>, vector<256x128xbf16>, vector<64x128xf32> -> vector<64x128xf32>
    %20 = arith.addf %14, %19 : vector<64x128xf32>
    %c0_45 = arith.constant 0 : index
    %c0_46 = arith.constant 0 : index
    %c2 = arith.constant 2 : index
    %c0_47 = arith.constant 0 : index
    %21 = vector.load %arg14[%c0_45, %c0_46, %c2, %c0_47] : memref<1x10x10x256xbf16, #tpu.memory_space<vmem>>, vector<1x8x8x256xbf16>
    %22 = vector.shape_cast %21 : vector<1x8x8x256xbf16> to vector<64x256xbf16>
    %c2_48 = arith.constant 2 : index
    %c0_49 = arith.constant 0 : index
    %c0_50 = arith.constant 0 : index
    %23 = vector.load %arg3[%c2_48, %c0_49, %c0_50] : memref<9x256x128xbf16, #tpu.memory_space<vmem>>, vector<1x256x128xbf16>
    %24 = vector.shape_cast %23 : vector<1x256x128xbf16> to vector<256x128xbf16>
    %cst_51 = arith.constant dense<0.000000e+00> : vector<64x128xf32>
    %25 = tpu.matmul %22, %24, %cst_51 {dimension_numbers = #tpu.dot_dimension_numbers<[1], [0], [0], [1], [0, 0, 1, 1], [], []>} : vector<64x256xbf16>, vector<256x128xbf16>, vector<64x128xf32> -> vector<64x128xf32>
    %26 = arith.addf %20, %25 : vector<64x128xf32>
    %c0_52 = arith.constant 0 : index
    %c1_53 = arith.constant 1 : index
    %c0_54 = arith.constant 0 : index
    %c0_55 = arith.constant 0 : index
    %27 = vector.load %arg14[%c0_52, %c1_53, %c0_54, %c0_55] : memref<1x10x10x256xbf16, #tpu.memory_space<vmem>>, vector<1x8x8x256xbf16>
    %28 = vector.shape_cast %27 : vector<1x8x8x256xbf16> to vector<64x256xbf16>
    %c3 = arith.constant 3 : index
    %c0_56 = arith.constant 0 : index
    %c0_57 = arith.constant 0 : index
    %29 = vector.load %arg3[%c3, %c0_56, %c0_57] : memref<9x256x128xbf16, #tpu.memory_space<vmem>>, vector<1x256x128xbf16>
    %30 = vector.shape_cast %29 : vector<1x256x128xbf16> to vector<256x128xbf16>
    %cst_58 = arith.constant dense<0.000000e+00> : vector<64x128xf32>
    %31 = tpu.matmul %28, %30, %cst_58 {dimension_numbers = #tpu.dot_dimension_numbers<[1], [0], [0], [1], [0, 0, 1, 1], [], []>} : vector<64x256xbf16>, vector<256x128xbf16>, vector<64x128xf32> -> vector<64x128xf32>
    %32 = arith.addf %26, %31 : vector<64x128xf32>
    %c0_59 = arith.constant 0 : index
    %c1_60 = arith.constant 1 : index
    %c1_61 = arith.constant 1 : index
    %c0_62 = arith.constant 0 : index
    %33 = vector.load %arg14[%c0_59, %c1_60, %c1_61, %c0_62] : memref<1x10x10x256xbf16, #tpu.memory_space<vmem>>, vector<1x8x8x256xbf16>
    %34 = vector.shape_cast %33 : vector<1x8x8x256xbf16> to vector<64x256xbf16>
    %c4 = arith.constant 4 : index
    %c0_63 = arith.constant 0 : index
    %c0_64 = arith.constant 0 : index
    %35 = vector.load %arg3[%c4, %c0_63, %c0_64] : memref<9x256x128xbf16, #tpu.memory_space<vmem>>, vector<1x256x128xbf16>
    %36 = vector.shape_cast %35 : vector<1x256x128xbf16> to vector<256x128xbf16>
    %cst_65 = arith.constant dense<0.000000e+00> : vector<64x128xf32>
    %37 = tpu.matmul %34, %36, %cst_65 {dimension_numbers = #tpu.dot_dimension_numbers<[1], [0], [0], [1], [0, 0, 1, 1], [], []>} : vector<64x256xbf16>, vector<256x128xbf16>, vector<64x128xf32> -> vector<64x128xf32>
    %38 = arith.addf %32, %37 : vector<64x128xf32>
    %c0_66 = arith.constant 0 : index
    %c1_67 = arith.constant 1 : index
    %c2_68 = arith.constant 2 : index
    %c0_69 = arith.constant 0 : index
    %39 = vector.load %arg14[%c0_66, %c1_67, %c2_68, %c0_69] : memref<1x10x10x256xbf16, #tpu.memory_space<vmem>>, vector<1x8x8x256xbf16>
    %40 = vector.shape_cast %39 : vector<1x8x8x256xbf16> to vector<64x256xbf16>
    %c5 = arith.constant 5 : index
    %c0_70 = arith.constant 0 : index
    %c0_71 = arith.constant 0 : index
    %41 = vector.load %arg3[%c5, %c0_70, %c0_71] : memref<9x256x128xbf16, #tpu.memory_space<vmem>>, vector<1x256x128xbf16>
    %42 = vector.shape_cast %41 : vector<1x256x128xbf16> to vector<256x128xbf16>
    %cst_72 = arith.constant dense<0.000000e+00> : vector<64x128xf32>
    %43 = tpu.matmul %40, %42, %cst_72 {dimension_numbers = #tpu.dot_dimension_numbers<[1], [0], [0], [1], [0, 0, 1, 1], [], []>} : vector<64x256xbf16>, vector<256x128xbf16>, vector<64x128xf32> -> vector<64x128xf32>
    %44 = arith.addf %38, %43 : vector<64x128xf32>
    %c0_73 = arith.constant 0 : index
    %c2_74 = arith.constant 2 : index
    %c0_75 = arith.constant 0 : index
    %c0_76 = arith.constant 0 : index
    %45 = vector.load %arg14[%c0_73, %c2_74, %c0_75, %c0_76] : memref<1x10x10x256xbf16, #tpu.memory_space<vmem>>, vector<1x8x8x256xbf16>
    %46 = vector.shape_cast %45 : vector<1x8x8x256xbf16> to vector<64x256xbf16>
    %c6 = arith.constant 6 : index
    %c0_77 = arith.constant 0 : index
    %c0_78 = arith.constant 0 : index
    %47 = vector.load %arg3[%c6, %c0_77, %c0_78] : memref<9x256x128xbf16, #tpu.memory_space<vmem>>, vector<1x256x128xbf16>
    %48 = vector.shape_cast %47 : vector<1x256x128xbf16> to vector<256x128xbf16>
    %cst_79 = arith.constant dense<0.000000e+00> : vector<64x128xf32>
    %49 = tpu.matmul %46, %48, %cst_79 {dimension_numbers = #tpu.dot_dimension_numbers<[1], [0], [0], [1], [0, 0, 1, 1], [], []>} : vector<64x256xbf16>, vector<256x128xbf16>, vector<64x128xf32> -> vector<64x128xf32>
    %50 = arith.addf %44, %49 : vector<64x128xf32>
    %c0_80 = arith.constant 0 : index
    %c2_81 = arith.constant 2 : index
    %c1_82 = arith.constant 1 : index
    %c0_83 = arith.constant 0 : index
    %51 = vector.load %arg14[%c0_80, %c2_81, %c1_82, %c0_83] : memref<1x10x10x256xbf16, #tpu.memory_space<vmem>>, vector<1x8x8x256xbf16>
    %52 = vector.shape_cast %51 : vector<1x8x8x256xbf16> to vector<64x256xbf16>
    %c7 = arith.constant 7 : index
    %c0_84 = arith.constant 0 : index
    %c0_85 = arith.constant 0 : index
    %53 = vector.load %arg3[%c7, %c0_84, %c0_85] : memref<9x256x128xbf16, #tpu.memory_space<vmem>>, vector<1x256x128xbf16>
    %54 = vector.shape_cast %53 : vector<1x256x128xbf16> to vector<256x128xbf16>
    %cst_86 = arith.constant dense<0.000000e+00> : vector<64x128xf32>
    %55 = tpu.matmul %52, %54, %cst_86 {dimension_numbers = #tpu.dot_dimension_numbers<[1], [0], [0], [1], [0, 0, 1, 1], [], []>} : vector<64x256xbf16>, vector<256x128xbf16>, vector<64x128xf32> -> vector<64x128xf32>
    %56 = arith.addf %50, %55 : vector<64x128xf32>
    %c0_87 = arith.constant 0 : index
    %c2_88 = arith.constant 2 : index
    %c2_89 = arith.constant 2 : index
    %c0_90 = arith.constant 0 : index
    %57 = vector.load %arg14[%c0_87, %c2_88, %c2_89, %c0_90] : memref<1x10x10x256xbf16, #tpu.memory_space<vmem>>, vector<1x8x8x256xbf16>
    %58 = vector.shape_cast %57 : vector<1x8x8x256xbf16> to vector<64x256xbf16>
    %c8 = arith.constant 8 : index
    %c0_91 = arith.constant 0 : index
    %c0_92 = arith.constant 0 : index
    %59 = vector.load %arg3[%c8, %c0_91, %c0_92] : memref<9x256x128xbf16, #tpu.memory_space<vmem>>, vector<1x256x128xbf16>
    %60 = vector.shape_cast %59 : vector<1x256x128xbf16> to vector<256x128xbf16>
    %cst_93 = arith.constant dense<0.000000e+00> : vector<64x128xf32>
    %61 = tpu.matmul %58, %60, %cst_93 {dimension_numbers = #tpu.dot_dimension_numbers<[1], [0], [0], [1], [0, 0, 1, 1], [], []>} : vector<64x256xbf16>, vector<256x128xbf16>, vector<64x128xf32> -> vector<64x128xf32>
    %62 = arith.addf %56, %61 : vector<64x128xf32>
    %c0_94 = arith.constant 0 : index
    %c0_95 = arith.constant 0 : index
    %63 = vector.load %arg4[%c0_94, %c0_95] : memref<1x128xf32, #tpu.memory_space<vmem>>, vector<1x128xf32>
    %64 = vector.broadcast %63 : vector<1x128xf32> to vector<64x128xf32>
    %65 = arith.addf %62, %64 : vector<64x128xf32>
    %cst_96 = arith.constant 0.000000e+00 : f32
    %66 = vector.broadcast %cst_96 : f32 to vector<64x128xf32>
    %67 = arith.maximumf %65, %66 : vector<64x128xf32>
    %68 = arith.truncf %67 : vector<64x128xf32> to vector<64x128xbf16>
    %c0_97 = arith.constant 0 : index
    %c0_98 = arith.constant 0 : index
    %69 = vector.load %arg5[%c0_97, %c0_98] : memref<128x1xbf16, #tpu.memory_space<vmem>>, vector<128x1xbf16>
    %cst_99 = arith.constant dense<0.000000e+00> : vector<64x1xf32>
    %70 = tpu.matmul %68, %69, %cst_99 {dimension_numbers = #tpu.dot_dimension_numbers<[1], [0], [0], [1], [0, 0, 1, 1], [], []>} : vector<64x128xbf16>, vector<128x1xbf16>, vector<64x1xf32> -> vector<64x1xf32>
    %c0_100 = arith.constant 0 : index
    %c0_101 = arith.constant 0 : index
    %71 = memref.load %arg6[%c0_100, %c0_101] : memref<1x1xf32, #tpu.memory_space<smem>>
    %72 = vector.broadcast %71 : f32 to vector<64x1xf32>
    %73 = arith.addf %70, %72 : vector<64x1xf32>
    %74 = arith.negf %73 : vector<64x1xf32>
    %75 = math.exp %74 : vector<64x1xf32>
    %cst_102 = arith.constant 1.000000e+00 : f32
    %76 = vector.broadcast %cst_102 : f32 to vector<64x1xf32>
    %77 = arith.addf %76, %75 : vector<64x1xf32>
    %78 = arith.divf %76, %77 : vector<64x1xf32>
    %c0_103 = arith.constant 0 : index
    %c0_104 = arith.constant 0 : index
    %c0_105 = arith.constant 0 : index
    %c0_106 = arith.constant 0 : index
    %79 = vector.load %arg1[%c0_103, %c0_104, %c0_105, %c0_106] : memref<1x8x8x128xbf16, #tpu.memory_space<vmem>>, vector<1x8x8x128xbf16>
    %80 = arith.extf %79 : vector<1x8x8x128xbf16> to vector<1x8x8x128xf32>
    %81 = vector.shape_cast %80 : vector<1x8x8x128xf32> to vector<64x128xf32>
    %c0_107 = arith.constant 0 : index
    %c0_108 = arith.constant 0 : index
    %c0_109 = arith.constant 0 : index
    %c0_110 = arith.constant 0 : index
    %82 = vector.load %arg2[%c0_107, %c0_108, %c0_109, %c0_110] : memref<1x8x8x128xbf16, #tpu.memory_space<vmem>>, vector<1x8x8x128xbf16>
    %83 = arith.extf %82 : vector<1x8x8x128xbf16> to vector<1x8x8x128xf32>
    %84 = vector.shape_cast %83 : vector<1x8x8x128xf32> to vector<64x128xf32>
    %85 = vector.broadcast %78 : vector<64x1xf32> to vector<64x128xf32>
    %86 = arith.mulf %84, %85 : vector<64x128xf32>
    %87 = arith.addf %81, %86 : vector<64x128xf32>
    %88 = vector.shape_cast %87 : vector<64x128xf32> to vector<1x64x128xf32>
    %cst_111 = arith.constant dense<0.000000e+00> : vector<1x128xf32>
    %89 = vector.multi_reduction <add>, %88, %cst_111 [1] : vector<1x64x128xf32> to vector<1x128xf32>
    %cst_112 = arith.constant 6.400000e+01 : f32
    %90 = vector.broadcast %cst_112 : f32 to vector<1x128xf32>
    %91 = arith.divf %89, %90 : vector<1x128xf32>
    %92 = arith.truncf %91 : vector<1x128xf32> to vector<1x128xbf16>
    %c0_113 = arith.constant 0 : index
    %c0_114 = arith.constant 0 : index
    %93 = vector.load %arg7[%c0_113, %c0_114] : memref<128x512xbf16, #tpu.memory_space<vmem>>, vector<128x512xbf16>
    %cst_115 = arith.constant dense<0.000000e+00> : vector<1x512xf32>
    %94 = tpu.matmul %92, %93, %cst_115 {dimension_numbers = #tpu.dot_dimension_numbers<[1], [0], [0], [1], [0, 0, 1, 1], [], []>} : vector<1x128xbf16>, vector<128x512xbf16>, vector<1x512xf32> -> vector<1x512xf32>
    %c0_116 = arith.constant 0 : index
    %c0_117 = arith.constant 0 : index
    %95 = vector.load %arg8[%c0_116, %c0_117] : memref<1x512xf32, #tpu.memory_space<vmem>>, vector<1x512xf32>
    %96 = arith.addf %94, %95 : vector<1x512xf32>
    %cst_118 = arith.constant 0.000000e+00 : f32
    %97 = vector.broadcast %cst_118 : f32 to vector<1x512xf32>
    %98 = arith.maximumf %96, %97 : vector<1x512xf32>
    %99 = arith.truncf %98 : vector<1x512xf32> to vector<1x512xbf16>
    %c0_119 = arith.constant 0 : index
    %c0_120 = arith.constant 0 : index
    %100 = vector.load %arg9[%c0_119, %c0_120] : memref<512x256xbf16, #tpu.memory_space<vmem>>, vector<512x256xbf16>
    %cst_121 = arith.constant dense<0.000000e+00> : vector<1x256xf32>
    %101 = tpu.matmul %99, %100, %cst_121 {dimension_numbers = #tpu.dot_dimension_numbers<[1], [0], [0], [1], [0, 0, 1, 1], [], []>} : vector<1x512xbf16>, vector<512x256xbf16>, vector<1x256xf32> -> vector<1x256xf32>
    %c0_122 = arith.constant 0 : index
    %c0_123 = arith.constant 0 : index
    %102 = vector.load %arg10[%c0_122, %c0_123] : memref<1x256xf32, #tpu.memory_space<vmem>>, vector<1x256xf32>
    %103 = arith.addf %101, %102 : vector<1x256xf32>
    %cst_124 = arith.constant 0.000000e+00 : f32
    %104 = vector.broadcast %cst_124 : f32 to vector<1x256xf32>
    %105 = arith.maximumf %103, %104 : vector<1x256xf32>
    %106 = arith.truncf %105 : vector<1x256xf32> to vector<1x256xbf16>
    %c0_125 = arith.constant 0 : index
    %c0_126 = arith.constant 0 : index
    %107 = vector.load %arg11[%c0_125, %c0_126] : memref<256x4xbf16, #tpu.memory_space<vmem>>, vector<256x4xbf16>
    %cst_127 = arith.constant dense<0.000000e+00> : vector<1x4xf32>
    %108 = tpu.matmul %106, %107, %cst_127 {dimension_numbers = #tpu.dot_dimension_numbers<[1], [0], [0], [1], [0, 0, 1, 1], [], []>} : vector<1x256xbf16>, vector<256x4xbf16>, vector<1x4xf32> -> vector<1x4xf32>
    %c0_128 = arith.constant 0 : index
    %c0_129 = arith.constant 0 : index
    %109 = vector.load %arg12[%c0_128, %c0_129] : memref<1x4xf32, #tpu.memory_space<vmem>>, vector<1x4xf32>
    %110 = arith.addf %108, %109 : vector<1x4xf32>
    %111 = vector.shape_cast %110 : vector<1x4xf32> to vector<1x1x4xf32>
    %c0_130 = arith.constant 0 : index
    %c0_131 = arith.constant 0 : index
    %c0_132 = arith.constant 0 : index
    %112 = vector.load %arg13[%c0_130, %c0_131, %c0_132] : memref<1x1x4xf32, #tpu.memory_space<vmem>>, vector<1x1x4xf32>
    tpu.vector_store %arg13[%c0_130, %c0_131, %c0_132], %111 {strides = array<i32>} : memref<1x1x4xf32, #tpu.memory_space<vmem>>, vector<1x1x4xf32>,
    return
  }
  func.func @transform_0(%arg0: i32) -> (i32, i32, i32, i32) {
    %c0_i32 = arith.constant 0 : i32
    %c0_i32_0 = arith.constant 0 : i32
    %c0_i32_1 = arith.constant 0 : i32
    %c0_i32_2 = arith.constant 0 : i32
    return %arg0, %c0_i32, %c0_i32_0, %c0_i32_1 : i32, i32, i32, i32
  }
  func.func @transform_1(%arg0: i32) -> (i32, i32, i32, i32) {
    %c0_i32 = arith.constant 0 : i32
    %c0_i32_0 = arith.constant 0 : i32
    %c0_i32_1 = arith.constant 0 : i32
    %c0_i32_2 = arith.constant 0 : i32
    return %arg0, %c0_i32, %c0_i32_0, %c0_i32_1 : i32, i32, i32, i32
  }
  func.func @transform_2(%arg0: i32) -> (i32, i32, i32) {
    %c0_i32 = arith.constant 0 : i32
    %c0_i32_0 = arith.constant 0 : i32
    %c0_i32_1 = arith.constant 0 : i32
    %c0_i32_2 = arith.constant 0 : i32
    return %c0_i32, %c0_i32_0, %c0_i32_1 : i32, i32, i32
  }
  func.func @transform_3(%arg0: i32) -> (i32, i32) {
    %c0_i32 = arith.constant 0 : i32
    %c0_i32_0 = arith.constant 0 : i32
    %c0_i32_1 = arith.constant 0 : i32
    return %c0_i32, %c0_i32_0 : i32, i32
  }
  func.func @transform_4(%arg0: i32) -> (i32, i32) {
    %c0_i32 = arith.constant 0 : i32
    %c0_i32_0 = arith.constant 0 : i32
    %c0_i32_1 = arith.constant 0 : i32
    return %c0_i32, %c0_i32_0 : i32, i32
  }
  func.func @transform_5(%arg0: i32) -> (i32, i32) {
    %c0_i32 = arith.constant 0 : i32
    %c0_i32_0 = arith.constant 0 : i32
    %c0_i32_1 = arith.constant 0 : i32
    return %c0_i32, %c0_i32_0 : i32, i32
  }
  func.func @transform_6(%arg0: i32) -> (i32, i32) {
    %c0_i32 = arith.constant 0 : i32
    %c0_i32_0 = arith.constant 0 : i32
    %c0_i32_1 = arith.constant 0 : i32
    return %c0_i32, %c0_i32_0 : i32, i32
  }
  func.func @transform_7(%arg0: i32) -> (i32, i32) {
    %c0_i32 = arith.constant 0 : i32
    %c0_i32_0 = arith.constant 0 : i32
    %c0_i32_1 = arith.constant 0 : i32
    return %c0_i32, %c0_i32_0 : i32, i32
  }
  func.func @transform_8(%arg0: i32) -> (i32, i32) {
    %c0_i32 = arith.constant 0 : i32
    %c0_i32_0 = arith.constant 0 : i32
    %c0_i32_1 = arith.constant 0 : i32
    return %c0_i32, %c0_i32_0 : i32, i32
  }
  func.func @transform_9(%arg0: i32) -> (i32, i32) {
    %c0_i32 = arith.constant 0 : i32
    %c0_i32_0 = arith.constant 0 : i32
    %c0_i32_1 = arith.constant 0 : i32
    return %c0_i32, %c0_i32_0 : i32, i32
  }
  func.func @transform_10(%arg0: i32) -> (i32, i32) {
    %c0_i32 = arith.constant 0 : i32
    %c0_i32_0 = arith.constant 0 : i32
    %c0_i32_1 = arith.constant 0 : i32
    return %c0_i32, %c0_i32_0 : i32, i32
  }
  func.func @transform_11(%arg0: i32) -> (i32, i32) {
    %c0_i32 = arith.constant 0 : i32
    %c0_i32_0 = arith.constant 0 : i32
    %c0_i32_1 = arith.constant 0 : i32
    return %c0_i32, %c0_i32_0 : i32, i32
  }
  func.func @transform_12(%arg0: i32) -> (i32, i32, i32) {
    %c0_i32 = arith.constant 0 : i32
    %c0_i32_0 = arith.constant 0 : i32
    %c0_i32_1 = arith.constant 0 : i32
    return %arg0, %c0_i32, %c0_i32_0 : i32, i32, i32
  }
}

</mosaic_0001>

<llo_original>
// kernel: tpu_custom_call.1
$region0: #{tpu_custom_call.1}
  #allocation0 [shape = 'u32[]', space=smem, size = 0x4, offset = 0x4, fixed_abs, tag = 'smem constant byte address 0x4 - core index']
  #allocation1 [shape = 'u32[144,128]{1,0:T(1,128)}', space=vmem, size = 0x12000, scoped, tag = 'internal scratch']
  #allocation2 [shape = 'bf16[1,10,10,256]{3,2,1,0:T(8,128)(2,1)}', space=vmem, size = 0x14000, scoped, tag = 'scratch operand']
  #allocation3 [shape = 'f32[1,1]{1,0:T(1,128)S(6)}', space=smem, size = 0x200, scoped, tag = 'scoped memory for tpu_custom_call.1']
  %s0 = inlined_call_operand.vmem [shape: bf16[2,8,8,128], index: 0, kind: input, shape index: {}]
  %s1 = inlined_call_operand.vmem [shape: bf16[2,8,8,128], index: 1, kind: input, shape index: {}]
  %s2 = inlined_call_operand.hbm [shape: bf16[9,256,128], index: 2, kind: input, shape index: {}]
  %s3 = inlined_call_operand.vmem [shape: f32[1,128], index: 3, kind: input, shape index: {}]
  %s4 = inlined_call_operand.vmem [shape: bf16[128,1], index: 4, kind: input, shape index: {}]
  %s5 = inlined_call_operand.<no memory space> [shape: f32[1,1], index: 5, kind: input, shape index: {}]
  %s6 = inlined_call_operand.hbm [shape: bf16[128,512], index: 6, kind: input, shape index: {}]
  %s7 = inlined_call_operand.vmem [shape: f32[1,512], index: 7, kind: input, shape index: {}]
  %s8 = inlined_call_operand.hbm [shape: bf16[512,256], index: 8, kind: input, shape index: {}]
  %s9 = inlined_call_operand.vmem [shape: f32[1,256], index: 9, kind: input, shape index: {}]
  %s10 = inlined_call_operand.vmem [shape: bf16[256,4], index: 10, kind: input, shape index: {}]
  %s11 = inlined_call_operand.vmem [shape: f32[1,4], index: 11, kind: input, shape index: {}]
  %s12 = inlined_call_operand.hbm [shape: f32[2,1,4], index: 12, kind: output, shape index: {}]
  %s13 = sld [smem:[#allocation0]]
  $region93: #{tpu_custom_call.1} parent=0
    _
  %s15 = ssub.s32 1, %s13
  %s16 = scalar_select 0, %s15, %s13
  %17 = sst [smem:[#allocation3]] %s5
  $region1: #{tpu_custom_call.1} parent=0
    #allocation4 [shape = 'u8[589824]{0}', space=vmem, size = 0x90000, scoped, tag = 'input window, operand 2, single buffered']
    #allocation5 [shape = 's32[2]{0}', space=sflag, size = 0x8, scoped, tag = 'scoped memory for tpu_custom_call.1']
    #allocation6 [shape = 's32[2]{0}', space=sflag, size = 0x8, scoped, tag = 'scoped memory for tpu_custom_call.1']
    #allocation7 [shape = 'u8[131072]{0}', space=vmem, size = 0x20000, scoped, tag = 'input window, operand 6, single buffered']
    #allocation8 [shape = 's32[1]{0}', space=sflag, size = 0x4, scoped, tag = 'scoped memory for tpu_custom_call.1']
    #allocation9 [shape = 'u8[262144]{0}', space=vmem, size = 0x40000, scoped, tag = 'input window, operand 8, single buffered']
    #allocation10 [shape = 'u8[1024]{0}', space=vmem, size = 0x400, scoped, tag = 'output window, operand 0']
    %18 = vsyncpa [#allocation5], 0
    %19 = vsyncpa [#allocation8], 0
    %20 = vsyncpa [#allocation6], 0
    %s21 = scalar_lea.sflag [#allocation6], 1
    %22 = vsyncpa %s21, 0
    loop: start=0, step=1, limit=4
    $region2: #{tpu_custom_call.1} parent=1 // loop_pre_header
      _
    $region3: #{tpu_custom_call.1} parent=1 // loop_header
      %s24 = sphi 0, %s28
      %p25 = scmp.ge.s32.totalorder %s24, 4
      %s34 = sphi 0, %s36
      %s37 = sphi 0, %s34
      %s38 = sphi 0, %s37
      %s54 = sphi 0, %s38
      %s60 = sphi 0, %s62
      %s63 = sphi 0, %s60
      %s64 = sphi 0, %s63
      %s80 = sphi 0, %s64
      %s84 = sphi 0, %s84
      %s86 = sphi 0, %s84
      %s87 = sphi 0, %s86
      %s101 = sphi 0, %s87
      %s105 = sphi 0, %s105
      %s107 = sphi 0, %s105
      %s108 = sphi 0, %s107
      %s122 = sphi 0, %s108
      %s126 = sphi 0, %s126
      %s128 = sphi 0, %s126
      %s129 = sphi 0, %s128
      %s143 = sphi 0, %s129
      %s147 = sphi 0, %s147
      %s149 = sphi 0, %s147
      %s150 = sphi 0, %s149
      %s164 = sphi 0, %s150
      %s168 = sphi 0, %s168
      %s170 = sphi 0, %s168
      %s171 = sphi 0, %s170
      %s185 = sphi 0, %s171
      %s189 = sphi 0, %s189
      %s191 = sphi 0, %s189
      %s192 = sphi 0, %s191
      %s206 = sphi 0, %s192
      %s210 = sphi 0, %s210
      %s212 = sphi 0, %s210
      %s213 = sphi 0, %s212
      %s227 = sphi 0, %s213
      %s231 = sphi 0, %s231
      %s233 = sphi 0, %s231
      %s234 = sphi 0, %s233
      %s248 = sphi 0, %s234
      %s252 = sphi 0, %s252
      %s254 = sphi 0, %s252
      %s255 = sphi 0, %s254
      %s269 = sphi 0, %s255
      %s273 = sphi 0, %s273
      %s275 = sphi 0, %s273
      %s276 = sphi 0, %s275
      %s290 = sphi 0, %s276
      %s296 = sphi 0, %s298
      %s299 = sphi 0, %s296
      %s300 = sphi 0, %s299
      %s316 = sphi 0, %s300
    $region4: #{tpu_custom_call.1} parent=1 // loop_header_branch
      %27 = sbr.rel (%p25) target = $region8
    $region5: #{tpu_custom_call.1} parent=1 // loop_body
      %s29 = ssub.s32 %s24, 1
      %s30 = ssub.s32 %s24, 2
      %s31 = sadd.s32 %s24, 1
      %s32 = ssub.s32 %s24, %s31
      %p33 = scmp.eq.s32.totalorder %s32, 0
      %s35 = sadd.s32 %s34, 1
      %s36 = scalar_select %p33, %s34, %s35
      %p39 = pneg %p33
      %p40 = scmp.eq.s32.totalorder %s24, 1
      %p41 = por %p39, %p40
      %p42 = scmp.ne.s32.totalorder %s34, %s37
      %p43 = scmp.eq.s32.totalorder %s24, 0
      %p44 = por %p42, %p43
      %p45 = scmp.ne.s32.totalorder %s34, %s37
      %p46 = scmp.eq.s32.totalorder %s29, 1
      %p47 = por %p45, %p46
      %p48 = scmp.ne.s32.totalorder %s37, %s38
      %p49 = scmp.eq.s32.totalorder %s29, 0
      %p50 = por %p48, %p49
      %p51 = scmp.ne.s32.totalorder %s37, %s38
      %p52 = scmp.eq.s32.totalorder %s30, 1
      %p53 = por %p51, %p52
      %p55 = scmp.ne.s32.totalorder %s38, %s54
      %p56 = scmp.eq.s32.totalorder %s30, 0
      %p57 = por %p55, %p56
      %s58 = ssub.s32 %s24, %s31
      %p59 = scmp.eq.s32.totalorder %s58, 0
      %s61 = sadd.s32 %s60, 1
      %s62 = scalar_select %p59, %s60, %s61
      %p65 = pneg %p59
      %p66 = scmp.eq.s32.totalorder %s24, 1
      %p67 = por %p65, %p66
      %p68 = scmp.ne.s32.totalorder %s60, %s63
      %p69 = scmp.eq.s32.totalorder %s24, 0
      %p70 = por %p68, %p69
      %p71 = scmp.ne.s32.totalorder %s60, %s63
      %p72 = scmp.eq.s32.totalorder %s29, 1
      %p73 = por %p71, %p72
      %p74 = scmp.ne.s32.totalorder %s63, %s64
      %p75 = scmp.eq.s32.totalorder %s29, 0
      %p76 = por %p74, %p75
      %p77 = scmp.ne.s32.totalorder %s63, %s64
      %p78 = scmp.eq.s32.totalorder %s30, 1
      %p79 = por %p77, %p78
      %p81 = scmp.ne.s32.totalorder %s64, %s80
      %p82 = scmp.eq.s32.totalorder %s30, 0
      %p83 = por %p81, %p82
      %s85 = sadd.s32 %s84, 1
      %p88 = scmp.eq.s32.totalorder %s24, 1
      %p89 = scmp.ne.s32.totalorder %s84, %s86
      %p90 = scmp.eq.s32.totalorder %s24, 0
      %p91 = por %p89, %p90
      %p92 = scmp.ne.s32.totalorder %s84, %s86
      %p93 = scmp.eq.s32.totalorder %s29, 1
      %p94 = por %p92, %p93
      %p95 = scmp.ne.s32.totalorder %s86, %s87
      %p96 = scmp.eq.s32.totalorder %s29, 0
      %p97 = por %p95, %p96
      %p98 = scmp.ne.s32.totalorder %s86, %s87
      %p99 = scmp.eq.s32.totalorder %s30, 1
      %p100 = por %p98, %p99
      %p102 = scmp.ne.s32.totalorder %s87, %s101
      %p103 = scmp.eq.s32.totalorder %s30, 0
      %p104 = por %p102, %p103
      %s106 = sadd.s32 %s105, 1
      %p109 = scmp.eq.s32.totalorder %s24, 1
      %p110 = scmp.ne.s32.totalorder %s105, %s107
      %p111 = scmp.eq.s32.totalorder %s24, 0
      %p112 = por %p110, %p111
      %p113 = scmp.ne.s32.totalorder %s105, %s107
      %p114 = scmp.eq.s32.totalorder %s29, 1
      %p115 = por %p113, %p114
      %p116 = scmp.ne.s32.totalorder %s107, %s108
      %p117 = scmp.eq.s32.totalorder %s29, 0
      %p118 = por %p116, %p117
      %p119 = scmp.ne.s32.totalorder %s107, %s108
      %p120 = scmp.eq.s32.totalorder %s30, 1
      %p121 = por %p119, %p120
      %p123 = scmp.ne.s32.totalorder %s108, %s122
      %p124 = scmp.eq.s32.totalorder %s30, 0
      %p125 = por %p123, %p124
      %s127 = sadd.s32 %s126, 1
      %p130 = scmp.eq.s32.totalorder %s24, 1
      %p131 = scmp.ne.s32.totalorder %s126, %s128
      %p132 = scmp.eq.s32.totalorder %s24, 0
      %p133 = por %p131, %p132
      %p134 = scmp.ne.s32.totalorder %s126, %s128
      %p135 = scmp.eq.s32.totalorder %s29, 1
      %p136 = por %p134, %p135
      %p137 = scmp.ne.s32.totalorder %s128, %s129
      %p138 = scmp.eq.s32.totalorder %s29, 0
      %p139 = por %p137, %p138
      %p140 = scmp.ne.s32.totalorder %s128, %s129
      %p141 = scmp.eq.s32.totalorder %s30, 1
      %p142 = por %p140, %p141
      %p144 = scmp.ne.s32.totalorder %s129, %s143
      %p145 = scmp.eq.s32.totalorder %s30, 0
      %p146 = por %p144, %p145
      %s148 = sadd.s32 %s147, 1
      %p151 = scmp.eq.s32.totalorder %s24, 1
      %p152 = scmp.ne.s32.totalorder %s147, %s149
      %p153 = scmp.eq.s32.totalorder %s24, 0
      %p154 = por %p152, %p153
      %p155 = scmp.ne.s32.totalorder %s147, %s149
      %p156 = scmp.eq.s32.totalorder %s29, 1
      %p157 = por %p155, %p156
      %p158 = scmp.ne.s32.totalorder %s149, %s150
      %p159 = scmp.eq.s32.totalorder %s29, 0
      %p160 = por %p158, %p159
      %p161 = scmp.ne.s32.totalorder %s149, %s150
      %p162 = scmp.eq.s32.totalorder %s30, 1
      %p163 = por %p161, %p162
      %p165 = scmp.ne.s32.totalorder %s150, %s164
      %p166 = scmp.eq.s32.totalorder %s30, 0
      %p167 = por %p165, %p166
      %s169 = sadd.s32 %s168, 1
      %p172 = scmp.eq.s32.totalorder %s24, 1
      %p173 = scmp.ne.s32.totalorder %s168, %s170
      %p174 = scmp.eq.s32.totalorder %s24, 0
      %p175 = por %p173, %p174
      %p176 = scmp.ne.s32.totalorder %s168, %s170
      %p177 = scmp.eq.s32.totalorder %s29, 1
      %p178 = por %p176, %p177
      %p179 = scmp.ne.s32.totalorder %s170, %s171
      %p180 = scmp.eq.s32.totalorder %s29, 0
      %p181 = por %p179, %p180
      %p182 = scmp.ne.s32.totalorder %s170, %s171
      %p183 = scmp.eq.s32.totalorder %s30, 1
      %p184 = por %p182, %p183
      %p186 = scmp.ne.s32.totalorder %s171, %s185
      %p187 = scmp.eq.s32.totalorder %s30, 0
      %p188 = por %p186, %p187
      %s190 = sadd.s32 %s189, 1
      %p193 = scmp.eq.s32.totalorder %s24, 1
      %p194 = scmp.ne.s32.totalorder %s189, %s191
      %p195 = scmp.eq.s32.totalorder %s24, 0
      %p196 = por %p194, %p195
      %p197 = scmp.ne.s32.totalorder %s189, %s191
      %p198 = scmp.eq.s32.totalorder %s29, 1
      %p199 = por %p197, %p198
      %p200 = scmp.ne.s32.totalorder %s191, %s192
      %p201 = scmp.eq.s32.totalorder %s29, 0
      %p202 = por %p200, %p201
      %p203 = scmp.ne.s32.totalorder %s191, %s192
      %p204 = scmp.eq.s32.totalorder %s30, 1
      %p205 = por %p203, %p204
      %p207 = scmp.ne.s32.totalorder %s192, %s206
      %p208 = scmp.eq.s32.totalorder %s30, 0
      %p209 = por %p207, %p208
      %s211 = sadd.s32 %s210, 1
      %p214 = scmp.eq.s32.totalorder %s24, 1
      %p215 = scmp.ne.s32.totalorder %s210, %s212
      %p216 = scmp.eq.s32.totalorder %s24, 0
      %p217 = por %p215, %p216
      %p218 = scmp.ne.s32.totalorder %s210, %s212
      %p219 = scmp.eq.s32.totalorder %s29, 1
      %p220 = por %p218, %p219
      %p221 = scmp.ne.s32.totalorder %s212, %s213
      %p222 = scmp.eq.s32.totalorder %s29, 0
      %p223 = por %p221, %p222
      %p224 = scmp.ne.s32.totalorder %s212, %s213
      %p225 = scmp.eq.s32.totalorder %s30, 1
      %p226 = por %p224, %p225
      %p228 = scmp.ne.s32.totalorder %s213, %s227
      %p229 = scmp.eq.s32.totalorder %s30, 0
      %p230 = por %p228, %p229
      %s232 = sadd.s32 %s231, 1
      %p235 = scmp.eq.s32.totalorder %s24, 1
      %p236 = scmp.ne.s32.totalorder %s231, %s233
      %p237 = scmp.eq.s32.totalorder %s24, 0
      %p238 = por %p236, %p237
      %p239 = scmp.ne.s32.totalorder %s231, %s233
      %p240 = scmp.eq.s32.totalorder %s29, 1
      %p241 = por %p239, %p240
      %p242 = scmp.ne.s32.totalorder %s233, %s234
      %p243 = scmp.eq.s32.totalorder %s29, 0
      %p244 = por %p242, %p243
      %p245 = scmp.ne.s32.totalorder %s233, %s234
      %p246 = scmp.eq.s32.totalorder %s30, 1
      %p247 = por %p245, %p246
      %p249 = scmp.ne.s32.totalorder %s234, %s248
      %p250 = scmp.eq.s32.totalorder %s30, 0
      %p251 = por %p249, %p250
      %s253 = sadd.s32 %s252, 1
      %p256 = scmp.eq.s32.totalorder %s24, 1
      %p257 = scmp.ne.s32.totalorder %s252, %s254
      %p258 = scmp.eq.s32.totalorder %s24, 0
      %p259 = por %p257, %p258
      %p260 = scmp.ne.s32.totalorder %s252, %s254
      %p261 = scmp.eq.s32.totalorder %s29, 1
      %p262 = por %p260, %p261
      %p263 = scmp.ne.s32.totalorder %s254, %s255
      %p264 = scmp.eq.s32.totalorder %s29, 0
      %p265 = por %p263, %p264
      %p266 = scmp.ne.s32.totalorder %s254, %s255
      %p267 = scmp.eq.s32.totalorder %s30, 1
      %p268 = por %p266, %p267
      %p270 = scmp.ne.s32.totalorder %s255, %s269
      %p271 = scmp.eq.s32.totalorder %s30, 0
      %p272 = por %p270, %p271
      %s274 = sadd.s32 %s273, 1
      %p277 = scmp.eq.s32.totalorder %s24, 1
      %p278 = scmp.ne.s32.totalorder %s273, %s275
      %p279 = scmp.eq.s32.totalorder %s24, 0
      %p280 = por %p278, %p279
      %p281 = scmp.ne.s32.totalorder %s273, %s275
      %p282 = scmp.eq.s32.totalorder %s29, 1
      %p283 = por %p281, %p282
      %p284 = scmp.ne.s32.totalorder %s275, %s276
      %p285 = scmp.eq.s32.totalorder %s29, 0
      %p286 = por %p284, %p285
      %p287 = scmp.ne.s32.totalorder %s275, %s276
      %p288 = scmp.eq.s32.totalorder %s30, 1
      %p289 = por %p287, %p288
      %p291 = scmp.ne.s32.totalorder %s276, %s290
      %p292 = scmp.eq.s32.totalorder %s30, 0
      %p293 = por %p291, %p292
      %s294 = ssub.s32 %s24, %s31
      %p295 = scmp.eq.s32.totalorder %s294, 0
      %s297 = sadd.s32 %s296, 1
      %s298 = scalar_select %p295, %s296, %s297
      %p301 = pneg %p295
      %p302 = scmp.eq.s32.totalorder %s24, 1
      %p303 = por %p301, %p302
      %p304 = scmp.ne.s32.totalorder %s296, %s299
      %p305 = scmp.eq.s32.totalorder %s24, 0
      %p306 = por %p304, %p305
      %p307 = scmp.ne.s32.totalorder %s296, %s299
      %p308 = scmp.eq.s32.totalorder %s29, 1
      %p309 = por %p307, %p308
      %p310 = scmp.ne.s32.totalorder %s299, %s300
      %p311 = scmp.eq.s32.totalorder %s29, 0
      %p312 = por %p310, %p311
      %p313 = scmp.ne.s32.totalorder %s299, %s300
      %p314 = scmp.eq.s32.totalorder %s30, 1
      %p315 = por %p313, %p314
      %p317 = scmp.ne.s32.totalorder %s300, %s316
      %p318 = scmp.eq.s32.totalorder %s30, 0
      %p319 = por %p317, %p318
      %p320 = scmp.le.s32.totalorder 1, %s24
      %p321 = scmp.lt.s32.totalorder %s24, 3
      %p322 = pnand %p320, %p321
      %p323 = pneg %p322
      // Predicated region
      $region9: #{tpu_custom_call.1} parent=5 // pred_check
        _
      $region10: #{tpu_custom_call.1} parent=5 // pred_check_branch
        %325 = sbr.rel (%p322) target = $region12
      $region11: #{tpu_custom_call.1} parent=5 // pred_region
        %s326 = ssub.s32 %s24, 1
        // Predicated region
        $region13: #{tpu_custom_call.1} parent=11 // pred_check
          %p327 = pneg %p97
        $region14: #{tpu_custom_call.1} parent=11 // pred_check_branch
          %329 = sbr.rel (%p327) target = $region16
        $region15: #{tpu_custom_call.1} parent=11 // pred_region
          %s331 = ssub.s32 18432, 18432
          %332 = vsyncadd [#allocation5], %s331
          %s333 = sshll.u32 [#allocation4], 4
          %s334 = int_to_ptr.vmem [resolvable:$true] %s333
          %339 = dma.hbm_to_vmem [thread:$0]  %s2, 18432, %s334, [#allocation5], 64, 64, 4
        $region16: #{tpu_custom_call.1} parent=11 // pred_fallthru
          _
        // Predicated region
        $region17: #{tpu_custom_call.1} parent=11 // pred_check
          %p340 = pneg %p118
        $region18: #{tpu_custom_call.1} parent=11 // pred_check_branch
          %342 = sbr.rel (%p340) target = $region20
        $region19: #{tpu_custom_call.1} parent=11 // pred_region
          _
        $region20: #{tpu_custom_call.1} parent=11 // pred_fallthru
          _
        // Predicated region
        $region21: #{tpu_custom_call.1} parent=11 // pred_check
          %p343 = pneg %p139
        $region22: #{tpu_custom_call.1} parent=11 // pred_check_branch
          %345 = sbr.rel (%p343) target = $region24
        $region23: #{tpu_custom_call.1} parent=11 // pred_region
          _
        $region24: #{tpu_custom_call.1} parent=11 // pred_fallthru
          _
        // Predicated region
        $region25: #{tpu_custom_call.1} parent=11 // pred_check
          %p346 = pneg %p160
        $region26: #{tpu_custom_call.1} parent=11 // pred_check_branch
          %348 = sbr.rel (%p346) target = $region28
        $region27: #{tpu_custom_call.1} parent=11 // pred_region
          _
        $region28: #{tpu_custom_call.1} parent=11 // pred_fallthru
          _
        // Predicated region
        $region29: #{tpu_custom_call.1} parent=11 // pred_check
          %p349 = pneg %p181
        $region30: #{tpu_custom_call.1} parent=11 // pred_check_branch
          %351 = sbr.rel (%p349) target = $region32
        $region31: #{tpu_custom_call.1} parent=11 // pred_region
          %s353 = ssub.s32 4096, 4096
          %354 = vsyncadd [#allocation8], %s353
          %s355 = sshll.u32 [#allocation7], 4
          %s356 = int_to_ptr.vmem [resolvable:$true] %s355
          %361 = dma.hbm_to_vmem [thread:$0]  %s6, 4096, %s356, [#allocation8], 256, 256, 16
        $region32: #{tpu_custom_call.1} parent=11 // pred_fallthru
          _
        // Predicated region
        $region33: #{tpu_custom_call.1} parent=11 // pred_check
          %p362 = pneg %p202
        $region34: #{tpu_custom_call.1} parent=11 // pred_check_branch
          %364 = sbr.rel (%p362) target = $region36
        $region35: #{tpu_custom_call.1} parent=11 // pred_region
          _
        $region36: #{tpu_custom_call.1} parent=11 // pred_fallthru
          _
        // Predicated region
        $region37: #{tpu_custom_call.1} parent=11 // pred_check
          %p365 = pneg %p223
        $region38: #{tpu_custom_call.1} parent=11 // pred_check_branch
          %367 = sbr.rel (%p365) target = $region40
        $region39: #{tpu_custom_call.1} parent=11 // pred_region
          %s369 = ssub.s32 8192, 8192
          %370 = vsyncadd [#allocation8], %s369
          %s371 = sshll.u32 [#allocation9], 4
          %s372 = int_to_ptr.vmem [resolvable:$true] %s371
          %377 = dma.hbm_to_vmem [thread:$0]  %s8, 8192, %s372, [#allocation8], 128, 128, 8
        $region40: #{tpu_custom_call.1} parent=11 // pred_fallthru
          _
        // Predicated region
        $region41: #{tpu_custom_call.1} parent=11 // pred_check
          %p378 = pneg %p244
        $region42: #{tpu_custom_call.1} parent=11 // pred_check_branch
          %380 = sbr.rel (%p378) target = $region44
        $region43: #{tpu_custom_call.1} parent=11 // pred_region
          _
        $region44: #{tpu_custom_call.1} parent=11 // pred_fallthru
          _
        // Predicated region
        $region45: #{tpu_custom_call.1} parent=11 // pred_check
          %p381 = pneg %p265
        $region46: #{tpu_custom_call.1} parent=11 // pred_check_branch
          %383 = sbr.rel (%p381) target = $region48
        $region47: #{tpu_custom_call.1} parent=11 // pred_region
          _
        $region48: #{tpu_custom_call.1} parent=11 // pred_fallthru
          _
        // Predicated region
        $region49: #{tpu_custom_call.1} parent=11 // pred_check
          %p384 = pneg %p286
        $region50: #{tpu_custom_call.1} parent=11 // pred_check_branch
          %386 = sbr.rel (%p384) target = $region52
        $region51: #{tpu_custom_call.1} parent=11 // pred_region
          _
        $region52: #{tpu_custom_call.1} parent=11 // pred_fallthru
          _
      $region12: #{tpu_custom_call.1} parent=5 // pred_fallthru
        _
      %p387 = scmp.lt.s32.totalorder %s24, 2
      // Predicated region
      $region53: #{tpu_custom_call.1} parent=5 // pred_check
        %p388 = pneg %p387
      $region54: #{tpu_custom_call.1} parent=5 // pred_check_branch
        %390 = sbr.rel (%p388) target = $region56
      $region55: #{tpu_custom_call.1} parent=5 // pred_region
        // Predicated region
        $region57: #{tpu_custom_call.1} parent=55 // pred_check
          %p391 = pneg %p44
        $region58: #{tpu_custom_call.1} parent=55 // pred_check_branch
          %393 = sbr.rel (%p391) target = $region60
        $region59: #{tpu_custom_call.1} parent=55 // pred_region
          %p394 = scmp.lt.s32.totalorder %s24, 1
          %s395 = scalar_select %p394, %s24, 1
          %s396 = smul.addr %s395, 8
          %s397 = smul.addr %s396, 4
          %s398 = scalar_lea.vmem %s0, %s397
        $region60: #{tpu_custom_call.1} parent=55 // pred_fallthru
          _
        // Predicated region
        $region61: #{tpu_custom_call.1} parent=55 // pred_check
          %p399 = pneg %p70
        $region62: #{tpu_custom_call.1} parent=55 // pred_check_branch
          %401 = sbr.rel (%p399) target = $region64
        $region63: #{tpu_custom_call.1} parent=55 // pred_region
          %p402 = scmp.lt.s32.totalorder %s24, 1
          %s403 = scalar_select %p402, %s24, 1
          %s404 = smul.addr %s403, 8
          %s405 = smul.addr %s404, 4
          %s406 = scalar_lea.vmem %s1, %s405
        $region64: #{tpu_custom_call.1} parent=55 // pred_fallthru
          _
      $region56: #{tpu_custom_call.1} parent=5 // pred_fallthru
        _
      %p407 = scmp.le.s32.totalorder 1, %s24
      %p408 = scmp.lt.s32.totalorder %s24, 3
      %p409 = pnand %p407, %p408
      %p410 = pneg %p409
      // Predicated region
      $region65: #{tpu_custom_call.1} parent=5 // pred_check
        _
      $region66: #{tpu_custom_call.1} parent=5 // pred_check_branch
        %412 = sbr.rel (%p409) target = $region68
      $region67: #{tpu_custom_call.1} parent=5 // pred_region
        %s413 = ssub.s32 %s24, 1
        // Predicated region
        $region69: #{tpu_custom_call.1} parent=67 // pred_check
          %p414 = pneg %p97
        $region70: #{tpu_custom_call.1} parent=67 // pred_check_branch
          %416 = sbr.rel (%p414) target = $region72
        $region71: #{tpu_custom_call.1} parent=67 // pred_region
          %417 = dma.done [#allocation5], 18432
        $region72: #{tpu_custom_call.1} parent=67 // pred_fallthru
          _
        // Predicated region
        $region73: #{tpu_custom_call.1} parent=67 // pred_check
          %p418 = pneg %p181
        $region74: #{tpu_custom_call.1} parent=67 // pred_check_branch
          %420 = sbr.rel (%p418) target = $region76
        $region75: #{tpu_custom_call.1} parent=67 // pred_region
          %421 = dma.done [#allocation8], 4096
        $region76: #{tpu_custom_call.1} parent=67 // pred_fallthru
          _
        // Predicated region
        $region77: #{tpu_custom_call.1} parent=67 // pred_check
          %p422 = pneg %p223
        $region78: #{tpu_custom_call.1} parent=67 // pred_check_branch
          %424 = sbr.rel (%p422) target = $region80
        $region79: #{tpu_custom_call.1} parent=67 // pred_region
          %425 = dma.done [#allocation8], 8192
        $region80: #{tpu_custom_call.1} parent=67 // pred_fallthru
          _
        %p426 = scmp.lt.s32.totalorder %s29, 1
        %s427 = scalar_select %p426, %s29, 1
        %s428 = smul.addr %s427, 8
        %s429 = smul.addr %s428, 4
        %s430 = scalar_lea.vmem %s0, %s429
        %p431 = pneg %p50
        %p432 = pneg %p47
        %p433 = scmp.lt.s32.totalorder %s29, 1
        %s434 = scalar_select %p433, %s29, 1
        %s435 = smul.addr %s434, 8
        %s436 = smul.addr %s435, 4
        %s437 = scalar_lea.vmem %s1, %s436
        %p438 = pneg %p76
        %p439 = pneg %p73
        %p440 = pneg %p97
        %p441 = pneg %p94
        %p442 = pneg %p118
        %p443 = pneg %p115
        %p444 = pneg %p139
        %p445 = pneg %p136
        %p446 = pneg %p160
        %p447 = pneg %p157
        %p448 = pneg %p181
        %p449 = pneg %p178
        %p450 = pneg %p202
        %p451 = pneg %p199
        %p452 = pneg %p223
        %p453 = pneg %p220
        %p454 = pneg %p244
        %p455 = pneg %p241
        %p456 = pneg %p265
        %p457 = pneg %p262
        %p458 = pneg %p286
        %p459 = pneg %p283
        %p460 = pneg %p312
        %p461 = pneg %p309
        %s462 = sand.u32 %s299, 1
        %s463 = scalar_lea.sflag [#allocation6], %s462
        %s464 = sand.u32 %s299, 1
        %s465 = scalar_lea.vmem [#allocation10], %s464
        %p466 = scmp.lt.s32.totalorder %s29, 1
        %s467 = scalar_select %p466, %s29, 1
        %s468 = smul.addr %s467, 8
        %s469 = smul.addr %s468, 4
        %s470 = scalar_lea.vmem %s0, %s469
        %p471 = scmp.lt.s32.totalorder %s29, 1
        %s472 = scalar_select %p471, %s29, 1
        %s473 = smul.addr %s472, 8
        %s474 = smul.addr %s473, 4
        %s475 = scalar_lea.vmem %s1, %s474
        %477 = vst [vmem:[#allocation2] sm:$0xff] 0
        %478 = vst [vmem:[#allocation2 + $0x8] sm:$0x11] 0
        %s479 = scalar_lea.vmem [#allocation2], 144
        %480 = vst [vmem:[%s479] sm:$0xff] 0
        %481 = vst [vmem:[%s479 + $0x8] sm:$0x11] 0
        %s482 = scalar_lea.vmem [#allocation2], 16
        %vm483 = vcmask 1040384
        %vm484 = vsmask.f32 256
        %vm485 = vmand %vm483, %vm484
        %vm486 = vcmask 1044484
        %vm487 = vsmask.f32 4352
        %vm488 = vmand %vm486, %vm487
        %vm489 = vmor %vm488, %vm485
        %v490 = vld [vmem:[%s482] sm:$0x11]
        %v491 = vsel %vm489, 0, %v490
        %492 = vst [vmem:[%s482] sm:$0x11] %v491
        %v493 = vld [vmem:[%s482 + $0x10] sm:$0x11]
        %v494 = vsel %vm489, 0, %v493
        %495 = vst [vmem:[%s482 + $0x10] sm:$0x11] %v494
        %v496 = vld [vmem:[%s482 + $0x20] sm:$0x11]
        %v497 = vsel %vm489, 0, %v496
        %498 = vst [vmem:[%s482 + $0x20] sm:$0x11] %v497
        %v499 = vld [vmem:[%s482 + $0x30] sm:$0x11]
        %v500 = vsel %vm489, 0, %v499
        %501 = vst [vmem:[%s482 + $0x30] sm:$0x11] %v500
        %v502 = vld [vmem:[%s482 + $0x40] sm:$0x11]
        %v503 = vsel %vm489, 0, %v502
        %504 = vst [vmem:[%s482 + $0x40] sm:$0x11] %v503
        %v505 = vld [vmem:[%s482 + $0x50] sm:$0x11]
        %v506 = vsel %vm489, 0, %v505
        %507 = vst [vmem:[%s482 + $0x50] sm:$0x11] %v506
        %v508 = vld [vmem:[%s482 + $0x60] sm:$0x11]
        %v509 = vsel %vm489, 0, %v508
        %510 = vst [vmem:[%s482 + $0x60] sm:$0x11] %v509
        %v511 = vld [vmem:[%s482 + $0x70] sm:$0x11]
        %v512 = vsel %vm489, 0, %v511
        %513 = vst [vmem:[%s482 + $0x70] sm:$0x11] %v512
        %vm514 = vsmask.f32 7938
        %vm515 = vmand %vm483, %vm514
        %vm516 = vsmask.f32 7954
        %vm517 = vmand %vm486, %vm516
        %vm518 = vmor %vm517, %vm515
        %v519 = vld [vmem:[%s482 + $0x8] sm:$0x11]
        %v520 = vsel %vm518, 0, %v519
        %521 = vst [vmem:[%s482 + $0x8] sm:$0x11] %v520
        %v522 = vld [vmem:[%s482 + $0x18] sm:$0x11]
        %v523 = vsel %vm518, 0, %v522
        %524 = vst [vmem:[%s482 + $0x18] sm:$0x11] %v523
        %v525 = vld [vmem:[%s482 + $0x28] sm:$0x11]
        %v526 = vsel %vm518, 0, %v525
        %527 = vst [vmem:[%s482 + $0x28] sm:$0x11] %v526
        %v528 = vld [vmem:[%s482 + $0x38] sm:$0x11]
        %v529 = vsel %vm518, 0, %v528
        %530 = vst [vmem:[%s482 + $0x38] sm:$0x11] %v529
        %v531 = vld [vmem:[%s482 + $0x48] sm:$0x11]
        %v532 = vsel %vm518, 0, %v531
        %533 = vst [vmem:[%s482 + $0x48] sm:$0x11] %v532
        %v534 = vld [vmem:[%s482 + $0x58] sm:$0x11]
        %v535 = vsel %vm518, 0, %v534
        %536 = vst [vmem:[%s482 + $0x58] sm:$0x11] %v535
        %v537 = vld [vmem:[%s482 + $0x68] sm:$0x11]
        %v538 = vsel %vm518, 0, %v537
        %539 = vst [vmem:[%s482 + $0x68] sm:$0x11] %v538
        %v540 = vld [vmem:[%s482 + $0x78] sm:$0x11]
        %v541 = vsel %vm518, 0, %v540
        %542 = vst [vmem:[%s482 + $0x78] sm:$0x11] %v541
        %v543 = vld [vmem:[%s470] sm:$0xf]
        %v544 = vld [vmem:[%s470 + $0x4] sm:$0xf]
        %v545 = vld [vmem:[%s470 + $0x8] sm:$0xf]
        %v546 = vld [vmem:[%s470 + $0xc] sm:$0xf]
        %v547 = vld [vmem:[%s470 + $0x10] sm:$0xf]
        %v548 = vld [vmem:[%s470 + $0x14] sm:$0xf]
        %v549 = vld [vmem:[%s470 + $0x18] sm:$0xf]
        %v550 = vld [vmem:[%s470 + $0x1c] sm:$0xf]
        %v552 = vshrl.u32 %v543, 16
        %v554 = vrot.slane %v552, 7
        %v555 = vshll.u32 %v543, 16
        %v557 = vor.u32 %v554, %v555
        %v558 = vrot.slane %v554, 4
        %v560 = vshrl.u32 %v544, 16
        %v562 = vrot.slane %v560, 7
        %v563 = vshll.u32 %v544, 16
        %v565 = vor.u32 %v562, %v563
        %v566 = vrot.slane %v562, 4
        %v568 = vshrl.u32 %v545, 16
        %v570 = vrot.slane %v568, 7
        %v571 = vshll.u32 %v545, 16
        %v573 = vor.u32 %v570, %v571
        %v574 = vrot.slane %v570, 4
        %v576 = vshrl.u32 %v546, 16
        %v578 = vrot.slane %v576, 7
        %v579 = vshll.u32 %v546, 16
        %v581 = vor.u32 %v578, %v579
        %v582 = vrot.slane %v578, 4
        %v584 = vshrl.u32 %v547, 16
        %v586 = vrot.slane %v584, 7
        %v587 = vshll.u32 %v547, 16
        %v589 = vor.u32 %v586, %v587
        %v590 = vrot.slane %v586, 4
        %v592 = vshrl.u32 %v548, 16
        %v594 = vrot.slane %v592, 7
        %v595 = vshll.u32 %v548, 16
        %v597 = vor.u32 %v594, %v595
        %v598 = vrot.slane %v594, 4
        %v600 = vshrl.u32 %v549, 16
        %v602 = vrot.slane %v600, 7
        %v603 = vshll.u32 %v549, 16
        %v605 = vor.u32 %v602, %v603
        %v606 = vrot.slane %v602, 4
        %v608 = vshrl.u32 %v550, 16
        %v610 = vrot.slane %v608, 7
        %v611 = vshll.u32 %v550, 16
        %v613 = vor.u32 %v610, %v611
        %v614 = vrot.slane %v610, 4
        %vm631 = vcmask 1043456
        %vm632 = vmand %vm631, %vm514
        %v633 = vld [vmem:[%s482] sm:$0xf]
        %v634 = vsel %vm632, %v557, %v633
        %635 = vst [vmem:[%s482] sm:$0xf] %v634
        %v636 = vld [vmem:[%s482 + $0x8] sm:$0x1]
        %v637 = vsel %vm485, %v558, %v636
        %638 = vst [vmem:[%s482 + $0x8] sm:$0x1] %v637
        %v639 = vld [vmem:[%s482 + $0x10] sm:$0xf]
        %v640 = vsel %vm632, %v565, %v639
        %641 = vst [vmem:[%s482 + $0x10] sm:$0xf] %v640
        %v642 = vld [vmem:[%s482 + $0x18] sm:$0x1]
        %v643 = vsel %vm485, %v566, %v642
        %644 = vst [vmem:[%s482 + $0x18] sm:$0x1] %v643
        %v645 = vld [vmem:[%s482 + $0x20] sm:$0xf]
        %v646 = vsel %vm632, %v573, %v645
        %647 = vst [vmem:[%s482 + $0x20] sm:$0xf] %v646
        %v648 = vld [vmem:[%s482 + $0x28] sm:$0x1]
        %v649 = vsel %vm485, %v574, %v648
        %650 = vst [vmem:[%s482 + $0x28] sm:$0x1] %v649
        %v651 = vld [vmem:[%s482 + $0x30] sm:$0xf]
        %v652 = vsel %vm632, %v581, %v651
        %653 = vst [vmem:[%s482 + $0x30] sm:$0xf] %v652
        %v654 = vld [vmem:[%s482 + $0x38] sm:$0x1]
        %v655 = vsel %vm485, %v582, %v654
        %656 = vst [vmem:[%s482 + $0x38] sm:$0x1] %v655
        %v657 = vld [vmem:[%s482 + $0x40] sm:$0xf]
        %v658 = vsel %vm632, %v589, %v657
        %659 = vst [vmem:[%s482 + $0x40] sm:$0xf] %v658
        %v660 = vld [vmem:[%s482 + $0x48] sm:$0x1]
        %v661 = vsel %vm485, %v590, %v660
        %662 = vst [vmem:[%s482 + $0x48] sm:$0x1] %v661
        %v663 = vld [vmem:[%s482 + $0x50] sm:$0xf]
        %v664 = vsel %vm632, %v597, %v663
        %665 = vst [vmem:[%s482 + $0x50] sm:$0xf] %v664
        %v666 = vld [vmem:[%s482 + $0x58] sm:$0x1]
        %v667 = vsel %vm485, %v598, %v666
        %668 = vst [vmem:[%s482 + $0x58] sm:$0x1] %v667
        %v669 = vld [vmem:[%s482 + $0x60] sm:$0xf]
        %v670 = vsel %vm632, %v605, %v669
        %671 = vst [vmem:[%s482 + $0x60] sm:$0xf] %v670
        %v672 = vld [vmem:[%s482 + $0x68] sm:$0x1]
        %v673 = vsel %vm485, %v606, %v672
        %674 = vst [vmem:[%s482 + $0x68] sm:$0x1] %v673
        %v675 = vld [vmem:[%s482 + $0x70] sm:$0xf]
        %v676 = vsel %vm632, %v613, %v675
        %677 = vst [vmem:[%s482 + $0x70] sm:$0xf] %v676
        %v678 = vld [vmem:[%s482 + $0x78] sm:$0x1]
        %v679 = vsel %vm485, %v614, %v678
        %680 = vst [vmem:[%s482 + $0x78] sm:$0x1] %v679
        %v681 = vld [vmem:[%s475] sm:$0xf]
        %v682 = vld [vmem:[%s475 + $0x4] sm:$0xf]
        %v683 = vld [vmem:[%s475 + $0x8] sm:$0xf]
        %v684 = vld [vmem:[%s475 + $0xc] sm:$0xf]
        %v685 = vld [vmem:[%s475 + $0x10] sm:$0xf]
        %v686 = vld [vmem:[%s475 + $0x14] sm:$0xf]
        %v687 = vld [vmem:[%s475 + $0x18] sm:$0xf]
        %v688 = vld [vmem:[%s475 + $0x1c] sm:$0xf]
        %v690 = vshrl.u32 %v681, 16
        %v692 = vrot.slane %v690, 7
        %v693 = vshll.u32 %v681, 16
        %v695 = vor.u32 %v692, %v693
        %v696 = vrot.slane %v692, 4
        %v698 = vshrl.u32 %v682, 16
        %v700 = vrot.slane %v698, 7
        %v701 = vshll.u32 %v682, 16
        %v703 = vor.u32 %v700, %v701
        %v704 = vrot.slane %v700, 4
        %v706 = vshrl.u32 %v683, 16
        %v708 = vrot.slane %v706, 7
        %v709 = vshll.u32 %v683, 16
        %v711 = vor.u32 %v708, %v709
        %v712 = vrot.slane %v708, 4
        %v714 = vshrl.u32 %v684, 16
        %v716 = vrot.slane %v714, 7
        %v717 = vshll.u32 %v684, 16
        %v719 = vor.u32 %v716, %v717
        %v720 = vrot.slane %v716, 4
        %v722 = vshrl.u32 %v685, 16
        %v724 = vrot.slane %v722, 7
        %v725 = vshll.u32 %v685, 16
        %v727 = vor.u32 %v724, %v725
        %v728 = vrot.slane %v724, 4
        %v730 = vshrl.u32 %v686, 16
        %v732 = vrot.slane %v730, 7
        %v733 = vshll.u32 %v686, 16
        %v735 = vor.u32 %v732, %v733
        %v736 = vrot.slane %v732, 4
        %v738 = vshrl.u32 %v687, 16
        %v740 = vrot.slane %v738, 7
        %v741 = vshll.u32 %v687, 16
        %v743 = vor.u32 %v740, %v741
        %v744 = vrot.slane %v740, 4
        %v746 = vshrl.u32 %v688, 16
        %v748 = vrot.slane %v746, 7
        %v749 = vshll.u32 %v688, 16
        %v751 = vor.u32 %v748, %v749
        %v752 = vrot.slane %v748, 4
        %v769 = vld [vmem:[%s482 + $0x4] sm:$0xf]
        %v770 = vsel %vm632, %v695, %v769
        %771 = vst [vmem:[%s482 + $0x4] sm:$0xf] %v770
        %v772 = vld [vmem:[%s482 + $0xc] sm:$0x1]
        %v773 = vsel %vm485, %v696, %v772
        %774 = vst [vmem:[%s482 + $0xc] sm:$0x1] %v773
        %v775 = vld [vmem:[%s482 + $0x14] sm:$0xf]
        %v776 = vsel %vm632, %v703, %v775
        %777 = vst [vmem:[%s482 + $0x14] sm:$0xf] %v776
        %v778 = vld [vmem:[%s482 + $0x1c] sm:$0x1]
        %v779 = vsel %vm485, %v704, %v778
        %780 = vst [vmem:[%s482 + $0x1c] sm:$0x1] %v779
        %v781 = vld [vmem:[%s482 + $0x24] sm:$0xf]
        %v782 = vsel %vm632, %v711, %v781
        %783 = vst [vmem:[%s482 + $0x24] sm:$0xf] %v782
        %v784 = vld [vmem:[%s482 + $0x2c] sm:$0x1]
        %v785 = vsel %vm485, %v712, %v784
        %786 = vst [vmem:[%s482 + $0x2c] sm:$0x1] %v785
        %v787 = vld [vmem:[%s482 + $0x34] sm:$0xf]
        %v788 = vsel %vm632, %v719, %v787
        %789 = vst [vmem:[%s482 + $0x34] sm:$0xf] %v788
        %v790 = vld [vmem:[%s482 + $0x3c] sm:$0x1]
        %v791 = vsel %vm485, %v720, %v790
        %792 = vst [vmem:[%s482 + $0x3c] sm:$0x1] %v791
        %v793 = vld [vmem:[%s482 + $0x44] sm:$0xf]
        %v794 = vsel %vm632, %v727, %v793
        %795 = vst [vmem:[%s482 + $0x44] sm:$0xf] %v794
        %v796 = vld [vmem:[%s482 + $0x4c] sm:$0x1]
        %v797 = vsel %vm485, %v728, %v796
        %798 = vst [vmem:[%s482 + $0x4c] sm:$0x1] %v797
        %v799 = vld [vmem:[%s482 + $0x54] sm:$0xf]
        %v800 = vsel %vm632, %v735, %v799
        %801 = vst [vmem:[%s482 + $0x54] sm:$0xf] %v800
        %v802 = vld [vmem:[%s482 + $0x5c] sm:$0x1]
        %v803 = vsel %vm485, %v736, %v802
        %804 = vst [vmem:[%s482 + $0x5c] sm:$0x1] %v803
        %v805 = vld [vmem:[%s482 + $0x64] sm:$0xf]
        %v806 = vsel %vm632, %v743, %v805
        %807 = vst [vmem:[%s482 + $0x64] sm:$0xf] %v806
        %v808 = vld [vmem:[%s482 + $0x6c] sm:$0x1]
        %v809 = vsel %vm485, %v744, %v808
        %810 = vst [vmem:[%s482 + $0x6c] sm:$0x1] %v809
        %v811 = vld [vmem:[%s482 + $0x74] sm:$0xf]
        %v812 = vsel %vm632, %v751, %v811
        %813 = vst [vmem:[%s482 + $0x74] sm:$0xf] %v812
        %v814 = vld [vmem:[%s482 + $0x7c] sm:$0x1]
        %v815 = vsel %vm485, %v752, %v814
        %816 = vst [vmem:[%s482 + $0x7c] sm:$0x1] %v815
        %v817 = vld [vmem:[#allocation2] sm:$0xff]
        %v818 = vld [vmem:[#allocation2 + $0x10] sm:$0xff]
        %v819 = vld [vmem:[#allocation2 + $0x20] sm:$0xff]
        %v820 = vld [vmem:[#allocation2 + $0x30] sm:$0xff]
        %v821 = vld [vmem:[#allocation2 + $0x40] sm:$0xff]
        %v822 = vld [vmem:[#allocation2 + $0x50] sm:$0xff]
        %v823 = vld [vmem:[#allocation2 + $0x60] sm:$0xff]
        %v824 = vld [vmem:[#allocation2 + $0x70] sm:$0xff]
        %v825 = vld [vmem:[#allocation4] sm:$0xf]
        %v826 = vld [vmem:[#allocation4 + $0x4] sm:$0xf]
        %v827 = vld [vmem:[#allocation4 + $0x8] sm:$0xf]
        %v828 = vld [vmem:[#allocation4 + $0xc] sm:$0xf]
        %v829 = vld [vmem:[#allocation4 + $0x10] sm:$0xf]
        %v830 = vld [vmem:[#allocation4 + $0x14] sm:$0xf]
        %v831 = vld [vmem:[#allocation4 + $0x18] sm:$0xf]
        %v832 = vld [vmem:[#allocation4 + $0x1c] sm:$0xf]
        %v833 = vld [vmem:[#allocation4 + $0x20] sm:$0xf]
        %v834 = vld [vmem:[#allocation4 + $0x24] sm:$0xf]
        %v835 = vld [vmem:[#allocation4 + $0x28] sm:$0xf]
        %v836 = vld [vmem:[#allocation4 + $0x2c] sm:$0xf]
        %v837 = vld [vmem:[#allocation4 + $0x30] sm:$0xf]
        %v838 = vld [vmem:[#allocation4 + $0x34] sm:$0xf]
        %v839 = vld [vmem:[#allocation4 + $0x38] sm:$0xf]
        %v840 = vld [vmem:[#allocation4 + $0x3c] sm:$0xf]
        %v841 = vld [vmem:[#allocation4 + $0x40] sm:$0xf]
        %v842 = vld [vmem:[#allocation4 + $0x44] sm:$0xf]
        %v843 = vld [vmem:[#allocation4 + $0x48] sm:$0xf]
        %v844 = vld [vmem:[#allocation4 + $0x4c] sm:$0xf]
        %v845 = vld [vmem:[#allocation4 + $0x50] sm:$0xf]
        %v846 = vld [vmem:[#allocation4 + $0x54] sm:$0xf]
        %v847 = vld [vmem:[#allocation4 + $0x58] sm:$0xf]
        %v848 = vld [vmem:[#allocation4 + $0x5c] sm:$0xf]
        %v849 = vld [vmem:[#allocation4 + $0x60] sm:$0xf]
        %v850 = vld [vmem:[#allocation4 + $0x64] sm:$0xf]
        %v851 = vld [vmem:[#allocation4 + $0x68] sm:$0xf]
        %v852 = vld [vmem:[#allocation4 + $0x6c] sm:$0xf]
        %v853 = vld [vmem:[#allocation4 + $0x70] sm:$0xf]
        %v854 = vld [vmem:[#allocation4 + $0x74] sm:$0xf]
        %v855 = vld [vmem:[#allocation4 + $0x78] sm:$0xf]
        %v856 = vld [vmem:[#allocation4 + $0x7c] sm:$0xf]
        %v857 = vld [vmem:[#allocation2 + $0x8] sm:$0x11]
        %v858 = vld [vmem:[#allocation2 + $0x18] sm:$0x11]
        %v859 = vld [vmem:[#allocation2 + $0x28] sm:$0x11]
        %v860 = vld [vmem:[#allocation2 + $0x38] sm:$0x11]
        %v861 = vld [vmem:[#allocation2 + $0x48] sm:$0x11]
        %v862 = vld [vmem:[#allocation2 + $0x58] sm:$0x11]
        %v863 = vld [vmem:[#allocation2 + $0x68] sm:$0x11]
        %v864 = vld [vmem:[#allocation2 + $0x78] sm:$0x11]
        %vm865 = vsmask.f32 3328
        %vm866 = vsmask.f32 7440
        %vm867 = vmor %vm865, %vm866
        %v869 = vshrl.u32 %v817, 16
        %v871 = vrot.slane %v869, 4
        %v872 = vshll.u32 %v817, 16
        %v874 = vrot.slane %v872, 5
        %v875 = vor.u32 %v871, %v874
        %v876 = vrot.slane %v875, 4
        %v878 = vshll.u32 %v857, 16
        %v880 = vrot.slane %v878, 5
        %v881 = vsel %vm867, %v876, %v880
        %v883 = vshrl.u32 %v818, 16
        %v885 = vrot.slane %v883, 4
        %v886 = vshll.u32 %v818, 16
        %v888 = vrot.slane %v886, 5
        %v889 = vor.u32 %v885, %v888
        %v890 = vrot.slane %v889, 4
        %v892 = vshll.u32 %v858, 16
        %v894 = vrot.slane %v892, 5
        %v895 = vsel %vm867, %v890, %v894
        %v897 = vshrl.u32 %v819, 16
        %v899 = vrot.slane %v897, 4
        %v900 = vshll.u32 %v819, 16
        %v902 = vrot.slane %v900, 5
        %v903 = vor.u32 %v899, %v902
        %v904 = vrot.slane %v903, 4
        %v906 = vshll.u32 %v859, 16
        %v908 = vrot.slane %v906, 5
        %v909 = vsel %vm867, %v904, %v908
        %v911 = vshrl.u32 %v820, 16
        %v913 = vrot.slane %v911, 4
        %v914 = vshll.u32 %v820, 16
        %v916 = vrot.slane %v914, 5
        %v917 = vor.u32 %v913, %v916
        %v918 = vrot.slane %v917, 4
        %v920 = vshll.u32 %v860, 16
        %v922 = vrot.slane %v920, 5
        %v923 = vsel %vm867, %v918, %v922
        %v925 = vshrl.u32 %v821, 16
        %v927 = vrot.slane %v925, 4
        %v928 = vshll.u32 %v821, 16
        %v930 = vrot.slane %v928, 5
        %v931 = vor.u32 %v927, %v930
        %v932 = vrot.slane %v931, 4
        %v934 = vshll.u32 %v861, 16
        %v936 = vrot.slane %v934, 5
        %v937 = vsel %vm867, %v932, %v936
        %v939 = vshrl.u32 %v822, 16
        %v941 = vrot.slane %v939, 4
        %v942 = vshll.u32 %v822, 16
        %v944 = vrot.slane %v942, 5
        %v945 = vor.u32 %v941, %v944
        %v946 = vrot.slane %v945, 4
        %v948 = vshll.u32 %v862, 16
        %v950 = vrot.slane %v948, 5
        %v951 = vsel %vm867, %v946, %v950
        %v953 = vshrl.u32 %v823, 16
        %v955 = vrot.slane %v953, 4
        %v956 = vshll.u32 %v823, 16
        %v958 = vrot.slane %v956, 5
        %v959 = vor.u32 %v955, %v958
        %v960 = vrot.slane %v959, 4
        %v962 = vshll.u32 %v863, 16
        %v964 = vrot.slane %v962, 5
        %v965 = vsel %vm867, %v960, %v964
        %v967 = vshrl.u32 %v824, 16
        %v969 = vrot.slane %v967, 4
        %v970 = vshll.u32 %v824, 16
        %v972 = vrot.slane %v970, 5
        %v973 = vor.u32 %v969, %v972
        %v974 = vrot.slane %v973, 4
        %v976 = vshll.u32 %v864, 16
        %v978 = vrot.slane %v976, 5
        %v979 = vsel %vm867, %v974, %v978
        %s980 = scalar_lea.vmem [#allocation4], 128
        %v981 = vld [vmem:[%s980] sm:$0xf]
        %v982 = vld [vmem:[%s980 + $0x4] sm:$0xf]
        %v983 = vld [vmem:[%s980 + $0x8] sm:$0xf]
        %v984 = vld [vmem:[%s980 + $0xc] sm:$0xf]
        %v985 = vld [vmem:[%s980 + $0x10] sm:$0xf]
        %v986 = vld [vmem:[%s980 + $0x14] sm:$0xf]
        %v987 = vld [vmem:[%s980 + $0x18] sm:$0xf]
        %v988 = vld [vmem:[%s980 + $0x1c] sm:$0xf]
        %v989 = vld [vmem:[%s980 + $0x20] sm:$0xf]
        %v990 = vld [vmem:[%s980 + $0x24] sm:$0xf]
        %v991 = vld [vmem:[%s980 + $0x28] sm:$0xf]
        %v992 = vld [vmem:[%s980 + $0x2c] sm:$0xf]
        %v993 = vld [vmem:[%s980 + $0x30] sm:$0xf]
        %v994 = vld [vmem:[%s980 + $0x34] sm:$0xf]
        %v995 = vld [vmem:[%s980 + $0x38] sm:$0xf]
        %v996 = vld [vmem:[%s980 + $0x3c] sm:$0xf]
        %v997 = vld [vmem:[%s980 + $0x40] sm:$0xf]
        %v998 = vld [vmem:[%s980 + $0x44] sm:$0xf]
        %v999 = vld [vmem:[%s980 + $0x48] sm:$0xf]
        %v1000 = vld [vmem:[%s980 + $0x4c] sm:$0xf]
        %v1001 = vld [vmem:[%s980 + $0x50] sm:$0xf]
        %v1002 = vld [vmem:[%s980 + $0x54] sm:$0xf]
        %v1003 = vld [vmem:[%s980 + $0x58] sm:$0xf]
        %v1004 = vld [vmem:[%s980 + $0x5c] sm:$0xf]
        %v1005 = vld [vmem:[%s980 + $0x60] sm:$0xf]
        %v1006 = vld [vmem:[%s980 + $0x64] sm:$0xf]
        %v1007 = vld [vmem:[%s980 + $0x68] sm:$0xf]
        %v1008 = vld [vmem:[%s980 + $0x6c] sm:$0xf]
        %v1009 = vld [vmem:[%s980 + $0x70] sm:$0xf]
        %v1010 = vld [vmem:[%s980 + $0x74] sm:$0xf]
        %v1011 = vld [vmem:[%s980 + $0x78] sm:$0xf]
        %v1012 = vld [vmem:[%s980 + $0x7c] sm:$0xf]
        %v1013 = vunpack.c.l.b16 %v881
        %v1014 = vunpack.c.h.b16 %v881
        %v1015 = vunpack.c.l.b16 %v895
        %v1016 = vunpack.c.h.b16 %v895
        %v1017 = vunpack.c.l.b16 %v909
        %v1018 = vunpack.c.h.b16 %v909
        %v1019 = vunpack.c.l.b16 %v923
        %v1020 = vunpack.c.h.b16 %v923
        %v1021 = vunpack.c.l.b16 %v937
        %v1022 = vunpack.c.h.b16 %v937
        %v1023 = vunpack.c.l.b16 %v951
        %v1024 = vunpack.c.h.b16 %v951
        %v1025 = vunpack.c.l.b16 %v965
        %v1026 = vunpack.c.h.b16 %v965
        %v1027 = vunpack.c.l.b16 %v979
        %v1028 = vunpack.c.h.b16 %v979
        %v1029 = vpack.c.b16 %v1015, %v1013
        %v1030 = vpack.c.b16 %v1016, %v1014
        %v1031 = vpack.c.b16 %v1019, %v1017
        %v1032 = vpack.c.b16 %v1020, %v1018
        %v1033 = vpack.c.b16 %v1023, %v1021
        %v1034 = vpack.c.b16 %v1024, %v1022
        %v1035 = vpack.c.b16 %v1027, %v1025
        %v1036 = vpack.c.b16 %v1028, %v1026
        %v1077 = vunpack.c.l.b16 %v981
        %v1078 = vunpack.c.l.b16 %v982
        %v1079 = vunpack.c.l.b16 %v983
        %v1080 = vunpack.c.l.b16 %v984
        %v1081 = vunpack.c.l.b16 %v985
        %v1082 = vunpack.c.l.b16 %v986
        %v1083 = vunpack.c.l.b16 %v987
        %v1084 = vunpack.c.l.b16 %v988
        %v1085 = vunpack.c.l.b16 %v989
        %v1086 = vunpack.c.l.b16 %v990
        %v1087 = vunpack.c.l.b16 %v991
        %v1088 = vunpack.c.l.b16 %v992
        %v1089 = vunpack.c.l.b16 %v993
        %v1090 = vunpack.c.l.b16 %v994
        %v1091 = vunpack.c.l.b16 %v995
        %v1092 = vunpack.c.l.b16 %v996
        %v1093 = vunpack.c.l.b16 %v997
        %v1094 = vunpack.c.l.b16 %v998
        %v1095 = vunpack.c.l.b16 %v999
        %v1096 = vunpack.c.l.b16 %v1000
        %v1097 = vunpack.c.l.b16 %v1001
        %v1098 = vunpack.c.l.b16 %v1002
        %v1099 = vunpack.c.l.b16 %v1003
        %v1100 = vunpack.c.l.b16 %v1004
        %v1101 = vunpack.c.l.b16 %v1005
        %v1102 = vunpack.c.l.b16 %v1006
        %v1103 = vunpack.c.l.b16 %v1007
        %v1104 = vunpack.c.l.b16 %v1008
        %v1105 = vunpack.c.l.b16 %v1009
        %v1106 = vunpack.c.l.b16 %v1010
        %v1107 = vunpack.c.l.b16 %v1011
        %v1108 = vunpack.c.l.b16 %v1012
        %v1109 = vpack.c.b16 %v1078, %v1077
        %v1110 = vpack.c.b16 %v1080, %v1079
        %v1111 = vpack.c.b16 %v1082, %v1081
        %v1112 = vpack.c.b16 %v1084, %v1083
        %v1113 = vpack.c.b16 %v1086, %v1085
        %v1114 = vpack.c.b16 %v1088, %v1087
        %v1115 = vpack.c.b16 %v1090, %v1089
        %v1116 = vpack.c.b16 %v1092, %v1091
        %v1117 = vpack.c.b16 %v1094, %v1093
        %v1118 = vpack.c.b16 %v1096, %v1095
        %v1119 = vpack.c.b16 %v1098, %v1097
        %v1120 = vpack.c.b16 %v1100, %v1099
        %v1121 = vpack.c.b16 %v1102, %v1101
        %v1122 = vpack.c.b16 %v1104, %v1103
        %v1123 = vpack.c.b16 %v1106, %v1105
        %v1124 = vpack.c.b16 %v1108, %v1107
        %1141 = vmatprep.subr.bf16.mxu0 0
        %1142 = vmatpush1.bf16.msra.mxu0 %v1109
        %1143 = vmatprep.subr.bf16.mxu0 0
        %1144 = vmatpush1.bf16.msra.mxu0 %v1110
        %1145 = vmatprep.subr.bf16.mxu0 0
        %1146 = vmatpush1.bf16.msra.mxu0 %v1111
        %1147 = vmatprep.subr.bf16.mxu0 0
        %1148 = vmatpush1.bf16.msra.mxu0 %v1112
        %1149 = vmatprep.subr.bf16.mxu0 0
        %1150 = vmatpush1.bf16.msra.mxu0 %v1113
        %1151 = vmatprep.subr.bf16.mxu0 0
        %1152 = vmatpush1.bf16.msra.mxu0 %v1114
        %1153 = vmatprep.subr.bf16.mxu0 0
        %1154 = vmatpush1.bf16.msra.mxu0 %v1115
        %1155 = vmatprep.subr.bf16.mxu0 0
        %1156 = vmatpush1.bf16.msra.mxu0 %v1116
        %1157 = vmatprep.subr.bf16.mxu0 0
        %1158 = vmatpush1.bf16.msra.mxu0 %v1117
        %1159 = vmatprep.subr.bf16.mxu0 0
        %1160 = vmatpush1.bf16.msra.mxu0 %v1118
        %1161 = vmatprep.subr.bf16.mxu0 0
        %1162 = vmatpush1.bf16.msra.mxu0 %v1119
        %1163 = vmatprep.subr.bf16.mxu0 0
        %1164 = vmatpush1.bf16.msra.mxu0 %v1120
        %1165 = vmatprep.subr.bf16.mxu0 0
        %1166 = vmatpush1.bf16.msra.mxu0 %v1121
        %1167 = vmatprep.subr.bf16.mxu0 0
        %1168 = vmatpush1.bf16.msra.mxu0 %v1122
        %1169 = vmatprep.subr.bf16.mxu0 0
        %1170 = vmatpush1.bf16.msra.mxu0 %v1123
        %1171 = vmatprep.subr.bf16.mxu0 0
        %1172 = vmatpush1.bf16.msra.mxu0 %v1124
        %1173 = vmatprep.mubr.bf16.mxu0 %v1030
        %1174 = vmatmul.mubr.bf16.gmra.mrb[0].mxu0 %v1029
        %v1175 = vpop.f32.mrb[0].mxu0
        %v1176 = vadd.f32 0.0, %v1175
        %v1177 = vpop.f32.mrb[0].mxu0
        %v1178 = vpop.f32.mrb[0].mxu0
        %v1179 = vadd.f32 0.0, %v1178
        %v1180 = vpop.f32.mrb[0].mxu0
        %1181 = vmatprep.mubr.bf16.mxu0 %v1032
        %1182 = vmatmul.mubr.bf16.gmra.mrb[0].mxu0 %v1031
        %v1183 = vpop.f32.mrb[0].mxu0
        %v1184 = vadd.f32 0.0, %v1183
        %v1185 = vpop.f32.mrb[0].mxu0
        %v1186 = vpop.f32.mrb[0].mxu0
        %v1187 = vadd.f32 0.0, %v1186
        %v1188 = vpop.f32.mrb[0].mxu0
        %1189 = vmatprep.mubr.bf16.mxu0 %v1034
        %1190 = vmatmul.mubr.bf16.gmra.mrb[0].mxu0 %v1033
        %v1191 = vpop.f32.mrb[0].mxu0
        %v1192 = vadd.f32 0.0, %v1191
        %v1193 = vpop.f32.mrb[0].mxu0
        %v1194 = vpop.f32.mrb[0].mxu0
        %v1195 = vadd.f32 0.0, %v1194
        %v1196 = vpop.f32.mrb[0].mxu0
        %1197 = vmatprep.mubr.bf16.mxu0 %v1036
        %1198 = vmatmul.mubr.bf16.gmra.mrb[0].mxu0 %v1035
        %v1199 = vpop.f32.mrb[0].mxu0
        %v1200 = vadd.f32 0.0, %v1199
        %v1201 = vpop.f32.mrb[0].mxu0
        %v1202 = vpop.f32.mrb[0].mxu0
        %v1203 = vadd.f32 0.0, %v1202
        %v1204 = vpop.f32.mrb[0].mxu0
        %1205 = vdwg.mxu0
        %v1214 = vunpack.c.l.b16 %v817
        %v1215 = vunpack.c.h.b16 %v817
        %v1216 = vunpack.c.l.b16 %v818
        %v1217 = vunpack.c.h.b16 %v818
        %v1218 = vunpack.c.l.b16 %v819
        %v1219 = vunpack.c.h.b16 %v819
        %v1220 = vunpack.c.l.b16 %v820
        %v1221 = vunpack.c.h.b16 %v820
        %v1222 = vunpack.c.l.b16 %v821
        %v1223 = vunpack.c.h.b16 %v821
        %v1224 = vunpack.c.l.b16 %v822
        %v1225 = vunpack.c.h.b16 %v822
        %v1226 = vunpack.c.l.b16 %v823
        %v1227 = vunpack.c.h.b16 %v823
        %v1228 = vunpack.c.l.b16 %v824
        %v1229 = vunpack.c.h.b16 %v824
        %v1230 = vpack.c.b16 %v1216, %v1214
        %v1231 = vpack.c.b16 %v1217, %v1215
        %v1232 = vpack.c.b16 %v1220, %v1218
        %v1233 = vpack.c.b16 %v1221, %v1219
        %v1234 = vpack.c.b16 %v1224, %v1222
        %v1235 = vpack.c.b16 %v1225, %v1223
        %v1236 = vpack.c.b16 %v1228, %v1226
        %v1237 = vpack.c.b16 %v1229, %v1227
        %v1278 = vunpack.c.l.b16 %v825
        %v1279 = vunpack.c.l.b16 %v826
        %v1280 = vunpack.c.l.b16 %v827
        %v1281 = vunpack.c.l.b16 %v828
        %v1282 = vunpack.c.l.b16 %v829
        %v1283 = vunpack.c.l.b16 %v830
        %v1284 = vunpack.c.l.b16 %v831
        %v1285 = vunpack.c.l.b16 %v832
        %v1286 = vunpack.c.l.b16 %v833
        %v1287 = vunpack.c.l.b16 %v834
        %v1288 = vunpack.c.l.b16 %v835
        %v1289 = vunpack.c.l.b16 %v836
        %v1290 = vunpack.c.l.b16 %v837
        %v1291 = vunpack.c.l.b16 %v838
        %v1292 = vunpack.c.l.b16 %v839
        %v1293 = vunpack.c.l.b16 %v840
        %v1294 = vunpack.c.l.b16 %v841
        %v1295 = vunpack.c.l.b16 %v842
        %v1296 = vunpack.c.l.b16 %v843
        %v1297 = vunpack.c.l.b16 %v844
        %v1298 = vunpack.c.l.b16 %v845
        %v1299 = vunpack.c.l.b16 %v846
        %v1300 = vunpack.c.l.b16 %v847
        %v1301 = vunpack.c.l.b16 %v848
        %v1302 = vunpack.c.l.b16 %v849
        %v1303 = vunpack.c.l.b16 %v850
        %v1304 = vunpack.c.l.b16 %v851
        %v1305 = vunpack.c.l.b16 %v852
        %v1306 = vunpack.c.l.b16 %v853
        %v1307 = vunpack.c.l.b16 %v854
        %v1308 = vunpack.c.l.b16 %v855
        %v1309 = vunpack.c.l.b16 %v856
        %v1310 = vpack.c.b16 %v1279, %v1278
        %v1311 = vpack.c.b16 %v1281, %v1280
        %v1312 = vpack.c.b16 %v1283, %v1282
        %v1313 = vpack.c.b16 %v1285, %v1284
        %v1314 = vpack.c.b16 %v1287, %v1286
        %v1315 = vpack.c.b16 %v1289, %v1288
        %v1316 = vpack.c.b16 %v1291, %v1290
        %v1317 = vpack.c.b16 %v1293, %v1292
        %v1318 = vpack.c.b16 %v1295, %v1294
        %v1319 = vpack.c.b16 %v1297, %v1296
        %v1320 = vpack.c.b16 %v1299, %v1298
        %v1321 = vpack.c.b16 %v1301, %v1300
        %v1322 = vpack.c.b16 %v1303, %v1302
        %v1323 = vpack.c.b16 %v1305, %v1304
        %v1324 = vpack.c.b16 %v1307, %v1306
        %v1325 = vpack.c.b16 %v1309, %v1308
        %1342 = vmatprep.subr.bf16.mxu0 0
        %1343 = vmatpush1.bf16.msra.mxu0 %v1310
        %1344 = vmatprep.subr.bf16.mxu0 0
        %1345 = vmatpush1.bf16.msra.mxu0 %v1311
        %1346 = vmatprep.subr.bf16.mxu0 0
        %1347 = vmatpush1.bf16.msra.mxu0 %v1312
        %1348 = vmatprep.subr.bf16.mxu0 0
        %1349 = vmatpush1.bf16.msra.mxu0 %v1313
        %1350 = vmatprep.subr.bf16.mxu0 0
        %1351 = vmatpush1.bf16.msra.mxu0 %v1314
        %1352 = vmatprep.subr.bf16.mxu0 0
        %1353 = vmatpush1.bf16.msra.mxu0 %v1315
        %1354 = vmatprep.subr.bf16.mxu0 0
        %1355 = vmatpush1.bf16.msra.mxu0 %v1316
        %1356 = vmatprep.subr.bf16.mxu0 0
        %1357 = vmatpush1.bf16.msra.mxu0 %v1317
        %1358 = vmatprep.subr.bf16.mxu0 0
        %1359 = vmatpush1.bf16.msra.mxu0 %v1318
        %1360 = vmatprep.subr.bf16.mxu0 0
        %1361 = vmatpush1.bf16.msra.mxu0 %v1319
        %1362 = vmatprep.subr.bf16.mxu0 0
        %1363 = vmatpush1.bf16.msra.mxu0 %v1320
        %1364 = vmatprep.subr.bf16.mxu0 0
        %1365 = vmatpush1.bf16.msra.mxu0 %v1321
        %1366 = vmatprep.subr.bf16.mxu0 0
        %1367 = vmatpush1.bf16.msra.mxu0 %v1322
        %1368 = vmatprep.subr.bf16.mxu0 0
        %1369 = vmatpush1.bf16.msra.mxu0 %v1323
        %1370 = vmatprep.subr.bf16.mxu0 0
        %1371 = vmatpush1.bf16.msra.mxu0 %v1324
        %1372 = vmatprep.subr.bf16.mxu0 0
        %1373 = vmatpush1.bf16.msra.mxu0 %v1325
        %1374 = vmatprep.mubr.bf16.mxu0 %v1231
        %1375 = vmatmul.mubr.bf16.gmra.mrb[0].mxu0 %v1230
        %v1376 = vpop.f32.mrb[0].mxu0
        %v1377 = vadd.f32 %v1176, %v1376
        %v1378 = vpop.f32.mrb[0].mxu0
        %v1379 = vpop.f32.mrb[0].mxu0
        %v1380 = vadd.f32 %v1179, %v1379
        %v1381 = vpop.f32.mrb[0].mxu0
        %1382 = vmatprep.mubr.bf16.mxu0 %v1233
        %1383 = vmatmul.mubr.bf16.gmra.mrb[0].mxu0 %v1232
        %v1384 = vpop.f32.mrb[0].mxu0
        %v1385 = vadd.f32 %v1184, %v1384
        %v1386 = vpop.f32.mrb[0].mxu0
        %v1387 = vpop.f32.mrb[0].mxu0
        %v1388 = vadd.f32 %v1187, %v1387
        %v1389 = vpop.f32.mrb[0].mxu0
        %1390 = vmatprep.mubr.bf16.mxu0 %v1235
        %1391 = vmatmul.mubr.bf16.gmra.mrb[0].mxu0 %v1234
        %v1392 = vpop.f32.mrb[0].mxu0
        %v1393 = vadd.f32 %v1192, %v1392
        %v1394 = vpop.f32.mrb[0].mxu0
        %v1395 = vpop.f32.mrb[0].mxu0
        %v1396 = vadd.f32 %v1195, %v1395
        %v1397 = vpop.f32.mrb[0].mxu0
        %1398 = vmatprep.mubr.bf16.mxu0 %v1237
        %1399 = vmatmul.mubr.bf16.gmra.mrb[0].mxu0 %v1236
        %v1400 = vpop.f32.mrb[0].mxu0
        %v1401 = vadd.f32 %v1200, %v1400
        %v1402 = vpop.f32.mrb[0].mxu0
        %v1403 = vpop.f32.mrb[0].mxu0
        %v1404 = vadd.f32 %v1203, %v1403
        %v1405 = vpop.f32.mrb[0].mxu0
        %1406 = vdwg.mxu0
        %v1407 = vld [vmem:[#allocation2] sm:$0xee]
        %v1408 = vld [vmem:[#allocation2 + $0x10] sm:$0xee]
        %v1409 = vld [vmem:[#allocation2 + $0x20] sm:$0xee]
        %v1410 = vld [vmem:[#allocation2 + $0x30] sm:$0xee]
        %v1411 = vld [vmem:[#allocation2 + $0x40] sm:$0xee]
        %v1412 = vld [vmem:[#allocation2 + $0x50] sm:$0xee]
        %v1413 = vld [vmem:[#allocation2 + $0x60] sm:$0xee]
        %v1414 = vld [vmem:[#allocation2 + $0x70] sm:$0xee]
        %vm1431 = vcmask 1042432
        %vm1432 = vcmask 1046532
        %vm1433 = vmor %vm1431, %vm1432
        %v1434 = vrot.slane %v1407, 5
        %v1435 = vrot.slane %v1434, 4
        %v1436 = vrot.slane %v857, 5
        %v1437 = vsel %vm1433, %v1435, %v1436
        %v1438 = vrot.slane %v1408, 5
        %v1439 = vrot.slane %v1438, 4
        %v1440 = vrot.slane %v858, 5
        %v1441 = vsel %vm1433, %v1439, %v1440
        %v1442 = vrot.slane %v1409, 5
        %v1443 = vrot.slane %v1442, 4
        %v1444 = vrot.slane %v859, 5
        %v1445 = vsel %vm1433, %v1443, %v1444
        %v1446 = vrot.slane %v1410, 5
        %v1447 = vrot.slane %v1446, 4
        %v1448 = vrot.slane %v860, 5
        %v1449 = vsel %vm1433, %v1447, %v1448
        %v1450 = vrot.slane %v1411, 5
        %v1451 = vrot.slane %v1450, 4
        %v1452 = vrot.slane %v861, 5
        %v1453 = vsel %vm1433, %v1451, %v1452
        %v1454 = vrot.slane %v1412, 5
        %v1455 = vrot.slane %v1454, 4
        %v1456 = vrot.slane %v862, 5
        %v1457 = vsel %vm1433, %v1455, %v1456
        %v1458 = vrot.slane %v1413, 5
        %v1459 = vrot.slane %v1458, 4
        %v1460 = vrot.slane %v863, 5
        %v1461 = vsel %vm1433, %v1459, %v1460
        %v1462 = vrot.slane %v1414, 5
        %v1463 = vrot.slane %v1462, 4
        %v1464 = vrot.slane %v864, 5
        %v1465 = vsel %vm1433, %v1463, %v1464
        %s1466 = scalar_lea.vmem [#allocation4], 256
        %v1467 = vld [vmem:[%s1466] sm:$0xf]
        %v1468 = vld [vmem:[%s1466 + $0x4] sm:$0xf]
        %v1469 = vld [vmem:[%s1466 + $0x8] sm:$0xf]
        %v1470 = vld [vmem:[%s1466 + $0xc] sm:$0xf]
        %v1471 = vld [vmem:[%s1466 + $0x10] sm:$0xf]
        %v1472 = vld [vmem:[%s1466 + $0x14] sm:$0xf]
        %v1473 = vld [vmem:[%s1466 + $0x18] sm:$0xf]
        %v1474 = vld [vmem:[%s1466 + $0x1c] sm:$0xf]
        %v1475 = vld [vmem:[%s1466 + $0x20] sm:$0xf]
        %v1476 = vld [vmem:[%s1466 + $0x24] sm:$0xf]
        %v1477 = vld [vmem:[%s1466 + $0x28] sm:$0xf]
        %v1478 = vld [vmem:[%s1466 + $0x2c] sm:$0xf]
        %v1479 = vld [vmem:[%s1466 + $0x30] sm:$0xf]
        %v1480 = vld [vmem:[%s1466 + $0x34] sm:$0xf]
        %v1481 = vld [vmem:[%s1466 + $0x38] sm:$0xf]
        %v1482 = vld [vmem:[%s1466 + $0x3c] sm:$0xf]
        %v1483 = vld [vmem:[%s1466 + $0x40] sm:$0xf]
        %v1484 = vld [vmem:[%s1466 + $0x44] sm:$0xf]
        %v1485 = vld [vmem:[%s1466 + $0x48] sm:$0xf]
        %v1486 = vld [vmem:[%s1466 + $0x4c] sm:$0xf]
        %v1487 = vld [vmem:[%s1466 + $0x50] sm:$0xf]
        %v1488 = vld [vmem:[%s1466 + $0x54] sm:$0xf]
        %v1489 = vld [vmem:[%s1466 + $0x58] sm:$0xf]
        %v1490 = vld [vmem:[%s1466 + $0x5c] sm:$0xf]
        %v1491 = vld [vmem:[%s1466 + $0x60] sm:$0xf]
        %v1492 = vld [vmem:[%s1466 + $0x64] sm:$0xf]
        %v1493 = vld [vmem:[%s1466 + $0x68] sm:$0xf]
        %v1494 = vld [vmem:[%s1466 + $0x6c] sm:$0xf]
        %v1495 = vld [vmem:[%s1466 + $0x70] sm:$0xf]
        %v1496 = vld [vmem:[%s1466 + $0x74] sm:$0xf]
        %v1497 = vld [vmem:[%s1466 + $0x78] sm:$0xf]
        %v1498 = vld [vmem:[%s1466 + $0x7c] sm:$0xf]
        %v1499 = vunpack.c.l.b16 %v1437
        %v1500 = vunpack.c.h.b16 %v1437
        %v1501 = vunpack.c.l.b16 %v1441
        %v1502 = vunpack.c.h.b16 %v1441
        %v1503 = vunpack.c.l.b16 %v1445
        %v1504 = vunpack.c.h.b16 %v1445
        %v1505 = vunpack.c.l.b16 %v1449
        %v1506 = vunpack.c.h.b16 %v1449
        %v1507 = vunpack.c.l.b16 %v1453
        %v1508 = vunpack.c.h.b16 %v1453
        %v1509 = vunpack.c.l.b16 %v1457
        %v1510 = vunpack.c.h.b16 %v1457
        %v1511 = vunpack.c.l.b16 %v1461
        %v1512 = vunpack.c.h.b16 %v1461
        %v1513 = vunpack.c.l.b16 %v1465
        %v1514 = vunpack.c.h.b16 %v1465
        %v1515 = vpack.c.b16 %v1501, %v1499
        %v1516 = vpack.c.b16 %v1502, %v1500
        %v1517 = vpack.c.b16 %v1505, %v1503
        %v1518 = vpack.c.b16 %v1506, %v1504
        %v1519 = vpack.c.b16 %v1509, %v1507
        %v1520 = vpack.c.b16 %v1510, %v1508
        %v1521 = vpack.c.b16 %v1513, %v1511
        %v1522 = vpack.c.b16 %v1514, %v1512
        %v1563 = vunpack.c.l.b16 %v1467
        %v1564 = vunpack.c.l.b16 %v1468
        %v1565 = vunpack.c.l.b16 %v1469
        %v1566 = vunpack.c.l.b16 %v1470
        %v1567 = vunpack.c.l.b16 %v1471
        %v1568 = vunpack.c.l.b16 %v1472
        %v1569 = vunpack.c.l.b16 %v1473
        %v1570 = vunpack.c.l.b16 %v1474
        %v1571 = vunpack.c.l.b16 %v1475
        %v1572 = vunpack.c.l.b16 %v1476
        %v1573 = vunpack.c.l.b16 %v1477
        %v1574 = vunpack.c.l.b16 %v1478
        %v1575 = vunpack.c.l.b16 %v1479
        %v1576 = vunpack.c.l.b16 %v1480
        %v1577 = vunpack.c.l.b16 %v1481
        %v1578 = vunpack.c.l.b16 %v1482
        %v1579 = vunpack.c.l.b16 %v1483
        %v1580 = vunpack.c.l.b16 %v1484
        %v1581 = vunpack.c.l.b16 %v1485
        %v1582 = vunpack.c.l.b16 %v1486
        %v1583 = vunpack.c.l.b16 %v1487
        %v1584 = vunpack.c.l.b16 %v1488
        %v1585 = vunpack.c.l.b16 %v1489
        %v1586 = vunpack.c.l.b16 %v1490
        %v1587 = vunpack.c.l.b16 %v1491
        %v1588 = vunpack.c.l.b16 %v1492
        %v1589 = vunpack.c.l.b16 %v1493
        %v1590 = vunpack.c.l.b16 %v1494
        %v1591 = vunpack.c.l.b16 %v1495
        %v1592 = vunpack.c.l.b16 %v1496
        %v1593 = vunpack.c.l.b16 %v1497
        %v1594 = vunpack.c.l.b16 %v1498
        %v1595 = vpack.c.b16 %v1564, %v1563
        %v1596 = vpack.c.b16 %v1566, %v1565
        %v1597 = vpack.c.b16 %v1568, %v1567
        %v1598 = vpack.c.b16 %v1570, %v1569
        %v1599 = vpack.c.b16 %v1572, %v1571
        %v1600 = vpack.c.b16 %v1574, %v1573
        %v1601 = vpack.c.b16 %v1576, %v1575
        %v1602 = vpack.c.b16 %v1578, %v1577
        %v1603 = vpack.c.b16 %v1580, %v1579
        %v1604 = vpack.c.b16 %v1582, %v1581
        %v1605 = vpack.c.b16 %v1584, %v1583
        %v1606 = vpack.c.b16 %v1586, %v1585
        %v1607 = vpack.c.b16 %v1588, %v1587
        %v1608 = vpack.c.b16 %v1590, %v1589
        %v1609 = vpack.c.b16 %v1592, %v1591
        %v1610 = vpack.c.b16 %v1594, %v1593
        %1627 = vmatprep.subr.bf16.mxu0 0
        %1628 = vmatpush1.bf16.msra.mxu0 %v1595
        %1629 = vmatprep.subr.bf16.mxu0 0
        %1630 = vmatpush1.bf16.msra.mxu0 %v1596
        %1631 = vmatprep.subr.bf16.mxu0 0
        %1632 = vmatpush1.bf16.msra.mxu0 %v1597
        %1633 = vmatprep.subr.bf16.mxu0 0
        %1634 = vmatpush1.bf16.msra.mxu0 %v1598
        %1635 = vmatprep.subr.bf16.mxu0 0
        %1636 = vmatpush1.bf16.msra.mxu0 %v1599
        %1637 = vmatprep.subr.bf16.mxu0 0
        %1638 = vmatpush1.bf16.msra.mxu0 %v1600
        %1639 = vmatprep.subr.bf16.mxu0 0
        %1640 = vmatpush1.bf16.msra.mxu0 %v1601
        %1641 = vmatprep.subr.bf16.mxu0 0
        %1642 = vmatpush1.bf16.msra.mxu0 %v1602
        %1643 = vmatprep.subr.bf16.mxu0 0
        %1644 = vmatpush1.bf16.msra.mxu0 %v1603
        %1645 = vmatprep.subr.bf16.mxu0 0
        %1646 = vmatpush1.bf16.msra.mxu0 %v1604
        %1647 = vmatprep.subr.bf16.mxu0 0
        %1648 = vmatpush1.bf16.msra.mxu0 %v1605
        %1649 = vmatprep.subr.bf16.mxu0 0
        %1650 = vmatpush1.bf16.msra.mxu0 %v1606
        %1651 = vmatprep.subr.bf16.mxu0 0
        %1652 = vmatpush1.bf16.msra.mxu0 %v1607
        %1653 = vmatprep.subr.bf16.mxu0 0
        %1654 = vmatpush1.bf16.msra.mxu0 %v1608
        %1655 = vmatprep.subr.bf16.mxu0 0
        %1656 = vmatpush1.bf16.msra.mxu0 %v1609
        %1657 = vmatprep.subr.bf16.mxu0 0
        %1658 = vmatpush1.bf16.msra.mxu0 %v1610
        %1659 = vmatprep.mubr.bf16.mxu0 %v1516
        %1660 = vmatmul.mubr.bf16.gmra.mrb[0].mxu0 %v1515
        %v1661 = vpop.f32.mrb[0].mxu0
        %v1662 = vadd.f32 0.0, %v1661
        %v1663 = vpop.f32.mrb[0].mxu0
        %v1664 = vpop.f32.mrb[0].mxu0
        %v1665 = vadd.f32 0.0, %v1664
        %v1666 = vpop.f32.mrb[0].mxu0
        %1667 = vmatprep.mubr.bf16.mxu0 %v1518
        %1668 = vmatmul.mubr.bf16.gmra.mrb[0].mxu0 %v1517
        %v1669 = vpop.f32.mrb[0].mxu0
        %v1670 = vadd.f32 0.0, %v1669
        %v1671 = vpop.f32.mrb[0].mxu0
        %v1672 = vpop.f32.mrb[0].mxu0
        %v1673 = vadd.f32 0.0, %v1672
        %v1674 = vpop.f32.mrb[0].mxu0
        %1675 = vmatprep.mubr.bf16.mxu0 %v1520
        %1676 = vmatmul.mubr.bf16.gmra.mrb[0].mxu0 %v1519
        %v1677 = vpop.f32.mrb[0].mxu0
        %v1678 = vadd.f32 0.0, %v1677
        %v1679 = vpop.f32.mrb[0].mxu0
        %v1680 = vpop.f32.mrb[0].mxu0
        %v1681 = vadd.f32 0.0, %v1680
        %v1682 = vpop.f32.mrb[0].mxu0
        %1683 = vmatprep.mubr.bf16.mxu0 %v1522
        %1684 = vmatmul.mubr.bf16.gmra.mrb[0].mxu0 %v1521
        %v1685 = vpop.f32.mrb[0].mxu0
        %v1686 = vadd.f32 0.0, %v1685
        %v1687 = vpop.f32.mrb[0].mxu0
        %v1688 = vpop.f32.mrb[0].mxu0
        %v1689 = vadd.f32 0.0, %v1688
        %v1690 = vpop.f32.mrb[0].mxu0
        %1691 = vdwg.mxu0
        %v1692 = vadd.f32 %v1377, %v1662
        %v1693 = vadd.f32 %v1380, %v1665
        %v1694 = vadd.f32 %v1385, %v1670
        %v1695 = vadd.f32 %v1388, %v1673
        %v1696 = vadd.f32 %v1393, %v1678
        %v1697 = vadd.f32 %v1396, %v1681
        %v1698 = vadd.f32 %v1401, %v1686
        %v1699 = vadd.f32 %v1404, %v1689
        %v1700 = vld [vmem:[%s482] sm:$0xff]
        %v1701 = vld [vmem:[%s482 + $0x10] sm:$0xff]
        %v1702 = vld [vmem:[%s482 + $0x20] sm:$0xff]
        %v1703 = vld [vmem:[%s482 + $0x30] sm:$0xff]
        %v1704 = vld [vmem:[%s482 + $0x40] sm:$0xff]
        %v1705 = vld [vmem:[%s482 + $0x50] sm:$0xff]
        %v1706 = vld [vmem:[%s482 + $0x60] sm:$0xff]
        %v1707 = vld [vmem:[%s482 + $0x70] sm:$0xff]
        %s1708 = scalar_lea.vmem [#allocation4], 384
        %v1709 = vld [vmem:[%s1708] sm:$0xf]
        %v1710 = vld [vmem:[%s1708 + $0x4] sm:$0xf]
        %v1711 = vld [vmem:[%s1708 + $0x8] sm:$0xf]
        %v1712 = vld [vmem:[%s1708 + $0xc] sm:$0xf]
        %v1713 = vld [vmem:[%s1708 + $0x10] sm:$0xf]
        %v1714 = vld [vmem:[%s1708 + $0x14] sm:$0xf]
        %v1715 = vld [vmem:[%s1708 + $0x18] sm:$0xf]
        %v1716 = vld [vmem:[%s1708 + $0x1c] sm:$0xf]
        %v1717 = vld [vmem:[%s1708 + $0x20] sm:$0xf]
        %v1718 = vld [vmem:[%s1708 + $0x24] sm:$0xf]
        %v1719 = vld [vmem:[%s1708 + $0x28] sm:$0xf]
        %v1720 = vld [vmem:[%s1708 + $0x2c] sm:$0xf]
        %v1721 = vld [vmem:[%s1708 + $0x30] sm:$0xf]
        %v1722 = vld [vmem:[%s1708 + $0x34] sm:$0xf]
        %v1723 = vld [vmem:[%s1708 + $0x38] sm:$0xf]
        %v1724 = vld [vmem:[%s1708 + $0x3c] sm:$0xf]
        %v1725 = vld [vmem:[%s1708 + $0x40] sm:$0xf]
        %v1726 = vld [vmem:[%s1708 + $0x44] sm:$0xf]
        %v1727 = vld [vmem:[%s1708 + $0x48] sm:$0xf]
        %v1728 = vld [vmem:[%s1708 + $0x4c] sm:$0xf]
        %v1729 = vld [vmem:[%s1708 + $0x50] sm:$0xf]
        %v1730 = vld [vmem:[%s1708 + $0x54] sm:$0xf]
        %v1731 = vld [vmem:[%s1708 + $0x58] sm:$0xf]
        %v1732 = vld [vmem:[%s1708 + $0x5c] sm:$0xf]
        %v1733 = vld [vmem:[%s1708 + $0x60] sm:$0xf]
        %v1734 = vld [vmem:[%s1708 + $0x64] sm:$0xf]
        %v1735 = vld [vmem:[%s1708 + $0x68] sm:$0xf]
        %v1736 = vld [vmem:[%s1708 + $0x6c] sm:$0xf]
        %v1737 = vld [vmem:[%s1708 + $0x70] sm:$0xf]
        %v1738 = vld [vmem:[%s1708 + $0x74] sm:$0xf]
        %v1739 = vld [vmem:[%s1708 + $0x78] sm:$0xf]
        %v1740 = vld [vmem:[%s1708 + $0x7c] sm:$0xf]
        %v1749 = vunpack.c.l.b16 %v1700
        %v1750 = vunpack.c.h.b16 %v1700
        %v1751 = vunpack.c.l.b16 %v1701
        %v1752 = vunpack.c.h.b16 %v1701
        %v1753 = vunpack.c.l.b16 %v1702
        %v1754 = vunpack.c.h.b16 %v1702
        %v1755 = vunpack.c.l.b16 %v1703
        %v1756 = vunpack.c.h.b16 %v1703
        %v1757 = vunpack.c.l.b16 %v1704
        %v1758 = vunpack.c.h.b16 %v1704
        %v1759 = vunpack.c.l.b16 %v1705
        %v1760 = vunpack.c.h.b16 %v1705
        %v1761 = vunpack.c.l.b16 %v1706
        %v1762 = vunpack.c.h.b16 %v1706
        %v1763 = vunpack.c.l.b16 %v1707
        %v1764 = vunpack.c.h.b16 %v1707
        %v1765 = vpack.c.b16 %v1751, %v1749
        %v1766 = vpack.c.b16 %v1752, %v1750
        %v1767 = vpack.c.b16 %v1755, %v1753
        %v1768 = vpack.c.b16 %v1756, %v1754
        %v1769 = vpack.c.b16 %v1759, %v1757
        %v1770 = vpack.c.b16 %v1760, %v1758
        %v1771 = vpack.c.b16 %v1763, %v1761
        %v1772 = vpack.c.b16 %v1764, %v1762
        %v1813 = vunpack.c.l.b16 %v1709
        %v1814 = vunpack.c.l.b16 %v1710
        %v1815 = vunpack.c.l.b16 %v1711
        %v1816 = vunpack.c.l.b16 %v1712
        %v1817 = vunpack.c.l.b16 %v1713
        %v1818 = vunpack.c.l.b16 %v1714
        %v1819 = vunpack.c.l.b16 %v1715
        %v1820 = vunpack.c.l.b16 %v1716
        %v1821 = vunpack.c.l.b16 %v1717
        %v1822 = vunpack.c.l.b16 %v1718
        %v1823 = vunpack.c.l.b16 %v1719
        %v1824 = vunpack.c.l.b16 %v1720
        %v1825 = vunpack.c.l.b16 %v1721
        %v1826 = vunpack.c.l.b16 %v1722
        %v1827 = vunpack.c.l.b16 %v1723
        %v1828 = vunpack.c.l.b16 %v1724
        %v1829 = vunpack.c.l.b16 %v1725
        %v1830 = vunpack.c.l.b16 %v1726
        %v1831 = vunpack.c.l.b16 %v1727
        %v1832 = vunpack.c.l.b16 %v1728
        %v1833 = vunpack.c.l.b16 %v1729
        %v1834 = vunpack.c.l.b16 %v1730
        %v1835 = vunpack.c.l.b16 %v1731
        %v1836 = vunpack.c.l.b16 %v1732
        %v1837 = vunpack.c.l.b16 %v1733
        %v1838 = vunpack.c.l.b16 %v1734
        %v1839 = vunpack.c.l.b16 %v1735
        %v1840 = vunpack.c.l.b16 %v1736
        %v1841 = vunpack.c.l.b16 %v1737
        %v1842 = vunpack.c.l.b16 %v1738
        %v1843 = vunpack.c.l.b16 %v1739
        %v1844 = vunpack.c.l.b16 %v1740
        %v1845 = vpack.c.b16 %v1814, %v1813
        %v1846 = vpack.c.b16 %v1816, %v1815
        %v1847 = vpack.c.b16 %v1818, %v1817
        %v1848 = vpack.c.b16 %v1820, %v1819
        %v1849 = vpack.c.b16 %v1822, %v1821
        %v1850 = vpack.c.b16 %v1824, %v1823
        %v1851 = vpack.c.b16 %v1826, %v1825
        %v1852 = vpack.c.b16 %v1828, %v1827
        %v1853 = vpack.c.b16 %v1830, %v1829
        %v1854 = vpack.c.b16 %v1832, %v1831
        %v1855 = vpack.c.b16 %v1834, %v1833
        %v1856 = vpack.c.b16 %v1836, %v1835
        %v1857 = vpack.c.b16 %v1838, %v1837
        %v1858 = vpack.c.b16 %v1840, %v1839
        %v1859 = vpack.c.b16 %v1842, %v1841
        %v1860 = vpack.c.b16 %v1844, %v1843
        %1877 = vmatprep.subr.bf16.mxu0 0
        %1878 = vmatpush1.bf16.msra.mxu0 %v1845
        %1879 = vmatprep.subr.bf16.mxu0 0
        %1880 = vmatpush1.bf16.msra.mxu0 %v1846
        %1881 = vmatprep.subr.bf16.mxu0 0
        %1882 = vmatpush1.bf16.msra.mxu0 %v1847
        %1883 = vmatprep.subr.bf16.mxu0 0
        %1884 = vmatpush1.bf16.msra.mxu0 %v1848
        %1885 = vmatprep.subr.bf16.mxu0 0
        %1886 = vmatpush1.bf16.msra.mxu0 %v1849
        %1887 = vmatprep.subr.bf16.mxu0 0
        %1888 = vmatpush1.bf16.msra.mxu0 %v1850
        %1889 = vmatprep.subr.bf16.mxu0 0
        %1890 = vmatpush1.bf16.msra.mxu0 %v1851
        %1891 = vmatprep.subr.bf16.mxu0 0
        %1892 = vmatpush1.bf16.msra.mxu0 %v1852
        %1893 = vmatprep.subr.bf16.mxu0 0
        %1894 = vmatpush1.bf16.msra.mxu0 %v1853
        %1895 = vmatprep.subr.bf16.mxu0 0
        %1896 = vmatpush1.bf16.msra.mxu0 %v1854
        %1897 = vmatprep.subr.bf16.mxu0 0
        %1898 = vmatpush1.bf16.msra.mxu0 %v1855
        %1899 = vmatprep.subr.bf16.mxu0 0
        %1900 = vmatpush1.bf16.msra.mxu0 %v1856
        %1901 = vmatprep.subr.bf16.mxu0 0
        %1902 = vmatpush1.bf16.msra.mxu0 %v1857
        %1903 = vmatprep.subr.bf16.mxu0 0
        %1904 = vmatpush1.bf16.msra.mxu0 %v1858
        %1905 = vmatprep.subr.bf16.mxu0 0
        %1906 = vmatpush1.bf16.msra.mxu0 %v1859
        %1907 = vmatprep.subr.bf16.mxu0 0
        %1908 = vmatpush1.bf16.msra.mxu0 %v1860
        %1909 = vmatprep.mubr.bf16.mxu0 %v1766
        %1910 = vmatmul.mubr.bf16.gmra.mrb[0].mxu0 %v1765
        %v1911 = vpop.f32.mrb[0].mxu0
        %v1912 = vadd.f32 0.0, %v1911
        %v1913 = vpop.f32.mrb[0].mxu0
        %v1914 = vpop.f32.mrb[0].mxu0
        %v1915 = vadd.f32 0.0, %v1914
        %v1916 = vpop.f32.mrb[0].mxu0
        %1917 = vmatprep.mubr.bf16.mxu0 %v1768
        %1918 = vmatmul.mubr.bf16.gmra.mrb[0].mxu0 %v1767
        %v1919 = vpop.f32.mrb[0].mxu0
        %v1920 = vadd.f32 0.0, %v1919
        %v1921 = vpop.f32.mrb[0].mxu0
        %v1922 = vpop.f32.mrb[0].mxu0
        %v1923 = vadd.f32 0.0, %v1922
        %v1924 = vpop.f32.mrb[0].mxu0
        %1925 = vmatprep.mubr.bf16.mxu0 %v1770
        %1926 = vmatmul.mubr.bf16.gmra.mrb[0].mxu0 %v1769
        %v1927 = vpop.f32.mrb[0].mxu0
        %v1928 = vadd.f32 0.0, %v1927
        %v1929 = vpop.f32.mrb[0].mxu0
        %v1930 = vpop.f32.mrb[0].mxu0
        %v1931 = vadd.f32 0.0, %v1930
        %v1932 = vpop.f32.mrb[0].mxu0
        %1933 = vmatprep.mubr.bf16.mxu0 %v1772
        %1934 = vmatmul.mubr.bf16.gmra.mrb[0].mxu0 %v1771
        %v1935 = vpop.f32.mrb[0].mxu0
        %v1936 = vadd.f32 0.0, %v1935
        %v1937 = vpop.f32.mrb[0].mxu0
        %v1938 = vpop.f32.mrb[0].mxu0
        %v1939 = vadd.f32 0.0, %v1938
        %v1940 = vpop.f32.mrb[0].mxu0
        %1941 = vdwg.mxu0
        %v1942 = vadd.f32 %v1692, %v1912
        %v1943 = vadd.f32 %v1693, %v1915
        %v1944 = vadd.f32 %v1694, %v1920
        %v1945 = vadd.f32 %v1695, %v1923
        %v1946 = vadd.f32 %v1696, %v1928
        %v1947 = vadd.f32 %v1697, %v1931
        %v1948 = vadd.f32 %v1698, %v1936
        %v1949 = vadd.f32 %v1699, %v1939
        %v1950 = vld [vmem:[%s482] sm:$0xff]
        %v1951 = vld [vmem:[%s482 + $0x8] sm:$0x11]
        %v1952 = vld [vmem:[%s482 + $0x10] sm:$0xff]
        %v1953 = vld [vmem:[%s482 + $0x18] sm:$0x11]
        %v1954 = vld [vmem:[%s482 + $0x20] sm:$0xff]
        %v1955 = vld [vmem:[%s482 + $0x28] sm:$0x11]
        %v1956 = vld [vmem:[%s482 + $0x30] sm:$0xff]
        %v1957 = vld [vmem:[%s482 + $0x38] sm:$0x11]
        %v1958 = vld [vmem:[%s482 + $0x40] sm:$0xff]
        %v1959 = vld [vmem:[%s482 + $0x48] sm:$0x11]
        %v1960 = vld [vmem:[%s482 + $0x50] sm:$0xff]
        %v1961 = vld [vmem:[%s482 + $0x58] sm:$0x11]
        %v1962 = vld [vmem:[%s482 + $0x60] sm:$0xff]
        %v1963 = vld [vmem:[%s482 + $0x68] sm:$0x11]
        %v1964 = vld [vmem:[%s482 + $0x70] sm:$0xff]
        %v1965 = vld [vmem:[%s482 + $0x78] sm:$0x11]
        %v1967 = vshrl.u32 %v1950, 16
        %v1969 = vrot.slane %v1967, 4
        %v1970 = vshll.u32 %v1950, 16
        %v1972 = vrot.slane %v1970, 5
        %v1973 = vor.u32 %v1969, %v1972
        %v1974 = vrot.slane %v1973, 4
        %v1976 = vshll.u32 %v1951, 16
        %v1978 = vrot.slane %v1976, 5
        %v1979 = vsel %vm867, %v1974, %v1978
        %v1981 = vshrl.u32 %v1952, 16
        %v1983 = vrot.slane %v1981, 4
        %v1984 = vshll.u32 %v1952, 16
        %v1986 = vrot.slane %v1984, 5
        %v1987 = vor.u32 %v1983, %v1986
        %v1988 = vrot.slane %v1987, 4
        %v1990 = vshll.u32 %v1953, 16
        %v1992 = vrot.slane %v1990, 5
        %v1993 = vsel %vm867, %v1988, %v1992
        %v1995 = vshrl.u32 %v1954, 16
        %v1997 = vrot.slane %v1995, 4
        %v1998 = vshll.u32 %v1954, 16
        %v2000 = vrot.slane %v1998, 5
        %v2001 = vor.u32 %v1997, %v2000
        %v2002 = vrot.slane %v2001, 4
        %v2004 = vshll.u32 %v1955, 16
        %v2006 = vrot.slane %v2004, 5
        %v2007 = vsel %vm867, %v2002, %v2006
        %v2009 = vshrl.u32 %v1956, 16
        %v2011 = vrot.slane %v2009, 4
        %v2012 = vshll.u32 %v1956, 16
        %v2014 = vrot.slane %v2012, 5
        %v2015 = vor.u32 %v2011, %v2014
        %v2016 = vrot.slane %v2015, 4
        %v2018 = vshll.u32 %v1957, 16
        %v2020 = vrot.slane %v2018, 5
        %v2021 = vsel %vm867, %v2016, %v2020
        %v2023 = vshrl.u32 %v1958, 16
        %v2025 = vrot.slane %v2023, 4
        %v2026 = vshll.u32 %v1958, 16
        %v2028 = vrot.slane %v2026, 5
        %v2029 = vor.u32 %v2025, %v2028
        %v2030 = vrot.slane %v2029, 4
        %v2032 = vshll.u32 %v1959, 16
        %v2034 = vrot.slane %v2032, 5
        %v2035 = vsel %vm867, %v2030, %v2034
        %v2037 = vshrl.u32 %v1960, 16
        %v2039 = vrot.slane %v2037, 4
        %v2040 = vshll.u32 %v1960, 16
        %v2042 = vrot.slane %v2040, 5
        %v2043 = vor.u32 %v2039, %v2042
        %v2044 = vrot.slane %v2043, 4
        %v2046 = vshll.u32 %v1961, 16
        %v2048 = vrot.slane %v2046, 5
        %v2049 = vsel %vm867, %v2044, %v2048
        %v2051 = vshrl.u32 %v1962, 16
        %v2053 = vrot.slane %v2051, 4
        %v2054 = vshll.u32 %v1962, 16
        %v2056 = vrot.slane %v2054, 5
        %v2057 = vor.u32 %v2053, %v2056
        %v2058 = vrot.slane %v2057, 4
        %v2060 = vshll.u32 %v1963, 16
        %v2062 = vrot.slane %v2060, 5
        %v2063 = vsel %vm867, %v2058, %v2062
        %v2065 = vshrl.u32 %v1964, 16
        %v2067 = vrot.slane %v2065, 4
        %v2068 = vshll.u32 %v1964, 16
        %v2070 = vrot.slane %v2068, 5
        %v2071 = vor.u32 %v2067, %v2070
        %v2072 = vrot.slane %v2071, 4
        %v2074 = vshll.u32 %v1965, 16
        %v2076 = vrot.slane %v2074, 5
        %v2077 = vsel %vm867, %v2072, %v2076
        %s2078 = scalar_lea.vmem [#allocation4], 512
        %v2079 = vld [vmem:[%s2078] sm:$0xf]
        %v2080 = vld [vmem:[%s2078 + $0x4] sm:$0xf]
        %v2081 = vld [vmem:[%s2078 + $0x8] sm:$0xf]
        %v2082 = vld [vmem:[%s2078 + $0xc] sm:$0xf]
        %v2083 = vld [vmem:[%s2078 + $0x10] sm:$0xf]
        %v2084 = vld [vmem:[%s2078 + $0x14] sm:$0xf]
        %v2085 = vld [vmem:[%s2078 + $0x18] sm:$0xf]
        %v2086 = vld [vmem:[%s2078 + $0x1c] sm:$0xf]
        %v2087 = vld [vmem:[%s2078 + $0x20] sm:$0xf]
        %v2088 = vld [vmem:[%s2078 + $0x24] sm:$0xf]
        %v2089 = vld [vmem:[%s2078 + $0x28] sm:$0xf]
        %v2090 = vld [vmem:[%s2078 + $0x2c] sm:$0xf]
        %v2091 = vld [vmem:[%s2078 + $0x30] sm:$0xf]
        %v2092 = vld [vmem:[%s2078 + $0x34] sm:$0xf]
        %v2093 = vld [vmem:[%s2078 + $0x38] sm:$0xf]
        %v2094 = vld [vmem:[%s2078 + $0x3c] sm:$0xf]
        %v2095 = vld [vmem:[%s2078 + $0x40] sm:$0xf]
        %v2096 = vld [vmem:[%s2078 + $0x44] sm:$0xf]
        %v2097 = vld [vmem:[%s2078 + $0x48] sm:$0xf]
        %v2098 = vld [vmem:[%s2078 + $0x4c] sm:$0xf]
        %v2099 = vld [vmem:[%s2078 + $0x50] sm:$0xf]
        %v2100 = vld [vmem:[%s2078 + $0x54] sm:$0xf]
        %v2101 = vld [vmem:[%s2078 + $0x58] sm:$0xf]
        %v2102 = vld [vmem:[%s2078 + $0x5c] sm:$0xf]
        %v2103 = vld [vmem:[%s2078 + $0x60] sm:$0xf]
        %v2104 = vld [vmem:[%s2078 + $0x64] sm:$0xf]
        %v2105 = vld [vmem:[%s2078 + $0x68] sm:$0xf]
        %v2106 = vld [vmem:[%s2078 + $0x6c] sm:$0xf]
        %v2107 = vld [vmem:[%s2078 + $0x70] sm:$0xf]
        %v2108 = vld [vmem:[%s2078 + $0x74] sm:$0xf]
        %v2109 = vld [vmem:[%s2078 + $0x78] sm:$0xf]
        %v2110 = vld [vmem:[%s2078 + $0x7c] sm:$0xf]
        %v2111 = vunpack.c.l.b16 %v1979
        %v2112 = vunpack.c.h.b16 %v1979
        %v2113 = vunpack.c.l.b16 %v1993
        %v2114 = vunpack.c.h.b16 %v1993
        %v2115 = vunpack.c.l.b16 %v2007
        %v2116 = vunpack.c.h.b16 %v2007
        %v2117 = vunpack.c.l.b16 %v2021
        %v2118 = vunpack.c.h.b16 %v2021
        %v2119 = vunpack.c.l.b16 %v2035
        %v2120 = vunpack.c.h.b16 %v2035
        %v2121 = vunpack.c.l.b16 %v2049
        %v2122 = vunpack.c.h.b16 %v2049
        %v2123 = vunpack.c.l.b16 %v2063
        %v2124 = vunpack.c.h.b16 %v2063
        %v2125 = vunpack.c.l.b16 %v2077
        %v2126 = vunpack.c.h.b16 %v2077
        %v2127 = vpack.c.b16 %v2113, %v2111
        %v2128 = vpack.c.b16 %v2114, %v2112
        %v2129 = vpack.c.b16 %v2117, %v2115
        %v2130 = vpack.c.b16 %v2118, %v2116
        %v2131 = vpack.c.b16 %v2121, %v2119
        %v2132 = vpack.c.b16 %v2122, %v2120
        %v2133 = vpack.c.b16 %v2125, %v2123
        %v2134 = vpack.c.b16 %v2126, %v2124
        %v2175 = vunpack.c.l.b16 %v2079
        %v2176 = vunpack.c.l.b16 %v2080
        %v2177 = vunpack.c.l.b16 %v2081
        %v2178 = vunpack.c.l.b16 %v2082
        %v2179 = vunpack.c.l.b16 %v2083
        %v2180 = vunpack.c.l.b16 %v2084
        %v2181 = vunpack.c.l.b16 %v2085
        %v2182 = vunpack.c.l.b16 %v2086
        %v2183 = vunpack.c.l.b16 %v2087
        %v2184 = vunpack.c.l.b16 %v2088
        %v2185 = vunpack.c.l.b16 %v2089
        %v2186 = vunpack.c.l.b16 %v2090
        %v2187 = vunpack.c.l.b16 %v2091
        %v2188 = vunpack.c.l.b16 %v2092
        %v2189 = vunpack.c.l.b16 %v2093
        %v2190 = vunpack.c.l.b16 %v2094
        %v2191 = vunpack.c.l.b16 %v2095
        %v2192 = vunpack.c.l.b16 %v2096
        %v2193 = vunpack.c.l.b16 %v2097
        %v2194 = vunpack.c.l.b16 %v2098
        %v2195 = vunpack.c.l.b16 %v2099
        %v2196 = vunpack.c.l.b16 %v2100
        %v2197 = vunpack.c.l.b16 %v2101
        %v2198 = vunpack.c.l.b16 %v2102
        %v2199 = vunpack.c.l.b16 %v2103
        %v2200 = vunpack.c.l.b16 %v2104
        %v2201 = vunpack.c.l.b16 %v2105
        %v2202 = vunpack.c.l.b16 %v2106
        %v2203 = vunpack.c.l.b16 %v2107
        %v2204 = vunpack.c.l.b16 %v2108
        %v2205 = vunpack.c.l.b16 %v2109
        %v2206 = vunpack.c.l.b16 %v2110
        %v2207 = vpack.c.b16 %v2176, %v2175
        %v2208 = vpack.c.b16 %v2178, %v2177
        %v2209 = vpack.c.b16 %v2180, %v2179
        %v2210 = vpack.c.b16 %v2182, %v2181
        %v2211 = vpack.c.b16 %v2184, %v2183
        %v2212 = vpack.c.b16 %v2186, %v2185
        %v2213 = vpack.c.b16 %v2188, %v2187
        %v2214 = vpack.c.b16 %v2190, %v2189
        %v2215 = vpack.c.b16 %v2192, %v2191
        %v2216 = vpack.c.b16 %v2194, %v2193
        %v2217 = vpack.c.b16 %v2196, %v2195
        %v2218 = vpack.c.b16 %v2198, %v2197
        %v2219 = vpack.c.b16 %v2200, %v2199
        %v2220 = vpack.c.b16 %v2202, %v2201
        %v2221 = vpack.c.b16 %v2204, %v2203
        %v2222 = vpack.c.b16 %v2206, %v2205
        %2239 = vmatprep.subr.bf16.mxu0 0
        %2240 = vmatpush1.bf16.msra.mxu0 %v2207
        %2241 = vmatprep.subr.bf16.mxu0 0
        %2242 = vmatpush1.bf16.msra.mxu0 %v2208
        %2243 = vmatprep.subr.bf16.mxu0 0
        %2244 = vmatpush1.bf16.msra.mxu0 %v2209
        %2245 = vmatprep.subr.bf16.mxu0 0
        %2246 = vmatpush1.bf16.msra.mxu0 %v2210
        %2247 = vmatprep.subr.bf16.mxu0 0
        %2248 = vmatpush1.bf16.msra.mxu0 %v2211
        %2249 = vmatprep.subr.bf16.mxu0 0
        %2250 = vmatpush1.bf16.msra.mxu0 %v2212
        %2251 = vmatprep.subr.bf16.mxu0 0
        %2252 = vmatpush1.bf16.msra.mxu0 %v2213
        %2253 = vmatprep.subr.bf16.mxu0 0
        %2254 = vmatpush1.bf16.msra.mxu0 %v2214
        %2255 = vmatprep.subr.bf16.mxu0 0
        %2256 = vmatpush1.bf16.msra.mxu0 %v2215
        %2257 = vmatprep.subr.bf16.mxu0 0
        %2258 = vmatpush1.bf16.msra.mxu0 %v2216
        %2259 = vmatprep.subr.bf16.mxu0 0
        %2260 = vmatpush1.bf16.msra.mxu0 %v2217
        %2261 = vmatprep.subr.bf16.mxu0 0
        %2262 = vmatpush1.bf16.msra.mxu0 %v2218
        %2263 = vmatprep.subr.bf16.mxu0 0
        %2264 = vmatpush1.bf16.msra.mxu0 %v2219
        %2265 = vmatprep.subr.bf16.mxu0 0
        %2266 = vmatpush1.bf16.msra.mxu0 %v2220
        %2267 = vmatprep.subr.bf16.mxu0 0
        %2268 = vmatpush1.bf16.msra.mxu0 %v2221
        %2269 = vmatprep.subr.bf16.mxu0 0
        %2270 = vmatpush1.bf16.msra.mxu0 %v2222
        %2271 = vmatprep.mubr.bf16.mxu0 %v2128
        %2272 = vmatmul.mubr.bf16.gmra.mrb[0].mxu0 %v2127
        %v2273 = vpop.f32.mrb[0].mxu0
        %v2274 = vadd.f32 0.0, %v2273
        %v2275 = vpop.f32.mrb[0].mxu0
        %v2276 = vpop.f32.mrb[0].mxu0
        %v2277 = vadd.f32 0.0, %v2276
        %v2278 = vpop.f32.mrb[0].mxu0
        %2279 = vmatprep.mubr.bf16.mxu0 %v2130
        %2280 = vmatmul.mubr.bf16.gmra.mrb[0].mxu0 %v2129
        %v2281 = vpop.f32.mrb[0].mxu0
        %v2282 = vadd.f32 0.0, %v2281
        %v2283 = vpop.f32.mrb[0].mxu0
        %v2284 = vpop.f32.mrb[0].mxu0
        %v2285 = vadd.f32 0.0, %v2284
        %v2286 = vpop.f32.mrb[0].mxu0
        %2287 = vmatprep.mubr.bf16.mxu0 %v2132
        %2288 = vmatmul.mubr.bf16.gmra.mrb[0].mxu0 %v2131
        %v2289 = vpop.f32.mrb[0].mxu0
        %v2290 = vadd.f32 0.0, %v2289
        %v2291 = vpop.f32.mrb[0].mxu0
        %v2292 = vpop.f32.mrb[0].mxu0
        %v2293 = vadd.f32 0.0, %v2292
        %v2294 = vpop.f32.mrb[0].mxu0
        %2295 = vmatprep.mubr.bf16.mxu0 %v2134
        %2296 = vmatmul.mubr.bf16.gmra.mrb[0].mxu0 %v2133
        %v2297 = vpop.f32.mrb[0].mxu0
        %v2298 = vadd.f32 0.0, %v2297
        %v2299 = vpop.f32.mrb[0].mxu0
        %v2300 = vpop.f32.mrb[0].mxu0
        %v2301 = vadd.f32 0.0, %v2300
        %v2302 = vpop.f32.mrb[0].mxu0
        %2303 = vdwg.mxu0
        %v2304 = vadd.f32 %v1942, %v2274
        %v2305 = vadd.f32 %v1943, %v2277
        %v2306 = vadd.f32 %v1944, %v2282
        %v2307 = vadd.f32 %v1945, %v2285
        %v2308 = vadd.f32 %v1946, %v2290
        %v2309 = vadd.f32 %v1947, %v2293
        %v2310 = vadd.f32 %v1948, %v2298
        %v2311 = vadd.f32 %v1949, %v2301
        %v2312 = vld [vmem:[%s482] sm:$0xee]
        %v2313 = vld [vmem:[%s482 + $0x10] sm:$0xee]
        %v2314 = vld [vmem:[%s482 + $0x20] sm:$0xee]
        %v2315 = vld [vmem:[%s482 + $0x30] sm:$0xee]
        %v2316 = vld [vmem:[%s482 + $0x40] sm:$0xee]
        %v2317 = vld [vmem:[%s482 + $0x50] sm:$0xee]
        %v2318 = vld [vmem:[%s482 + $0x60] sm:$0xee]
        %v2319 = vld [vmem:[%s482 + $0x70] sm:$0xee]
        %v2336 = vrot.slane %v2312, 5
        %v2337 = vrot.slane %v2336, 4
        %v2338 = vrot.slane %v1951, 5
        %v2339 = vsel %vm1433, %v2337, %v2338
        %v2340 = vrot.slane %v2313, 5
        %v2341 = vrot.slane %v2340, 4
        %v2342 = vrot.slane %v1953, 5
        %v2343 = vsel %vm1433, %v2341, %v2342
        %v2344 = vrot.slane %v2314, 5
        %v2345 = vrot.slane %v2344, 4
        %v2346 = vrot.slane %v1955, 5
        %v2347 = vsel %vm1433, %v2345, %v2346
        %v2348 = vrot.slane %v2315, 5
        %v2349 = vrot.slane %v2348, 4
        %v2350 = vrot.slane %v1957, 5
        %v2351 = vsel %vm1433, %v2349, %v2350
        %v2352 = vrot.slane %v2316, 5
        %v2353 = vrot.slane %v2352, 4
        %v2354 = vrot.slane %v1959, 5
        %v2355 = vsel %vm1433, %v2353, %v2354
        %v2356 = vrot.slane %v2317, 5
        %v2357 = vrot.slane %v2356, 4
        %v2358 = vrot.slane %v1961, 5
        %v2359 = vsel %vm1433, %v2357, %v2358
        %v2360 = vrot.slane %v2318, 5
        %v2361 = vrot.slane %v2360, 4
        %v2362 = vrot.slane %v1963, 5
        %v2363 = vsel %vm1433, %v2361, %v2362
        %v2364 = vrot.slane %v2319, 5
        %v2365 = vrot.slane %v2364, 4
        %v2366 = vrot.slane %v1965, 5
        %v2367 = vsel %vm1433, %v2365, %v2366
        %s2368 = scalar_lea.vmem [#allocation4], 640
        %v2369 = vld [vmem:[%s2368] sm:$0xf]
        %v2370 = vld [vmem:[%s2368 + $0x4] sm:$0xf]
        %v2371 = vld [vmem:[%s2368 + $0x8] sm:$0xf]
        %v2372 = vld [vmem:[%s2368 + $0xc] sm:$0xf]
        %v2373 = vld [vmem:[%s2368 + $0x10] sm:$0xf]
        %v2374 = vld [vmem:[%s2368 + $0x14] sm:$0xf]
        %v2375 = vld [vmem:[%s2368 + $0x18] sm:$0xf]
        %v2376 = vld [vmem:[%s2368 + $0x1c] sm:$0xf]
        %v2377 = vld [vmem:[%s2368 + $0x20] sm:$0xf]
        %v2378 = vld [vmem:[%s2368 + $0x24] sm:$0xf]
        %v2379 = vld [vmem:[%s2368 + $0x28] sm:$0xf]
        %v2380 = vld [vmem:[%s2368 + $0x2c] sm:$0xf]
        %v2381 = vld [vmem:[%s2368 + $0x30] sm:$0xf]
        %v2382 = vld [vmem:[%s2368 + $0x34] sm:$0xf]
        %v2383 = vld [vmem:[%s2368 + $0x38] sm:$0xf]
        %v2384 = vld [vmem:[%s2368 + $0x3c] sm:$0xf]
        %v2385 = vld [vmem:[%s2368 + $0x40] sm:$0xf]
        %v2386 = vld [vmem:[%s2368 + $0x44] sm:$0xf]
        %v2387 = vld [vmem:[%s2368 + $0x48] sm:$0xf]
        %v2388 = vld [vmem:[%s2368 + $0x4c] sm:$0xf]
        %v2389 = vld [vmem:[%s2368 + $0x50] sm:$0xf]
        %v2390 = vld [vmem:[%s2368 + $0x54] sm:$0xf]
        %v2391 = vld [vmem:[%s2368 + $0x58] sm:$0xf]
        %v2392 = vld [vmem:[%s2368 + $0x5c] sm:$0xf]
        %v2393 = vld [vmem:[%s2368 + $0x60] sm:$0xf]
        %v2394 = vld [vmem:[%s2368 + $0x64] sm:$0xf]
        %v2395 = vld [vmem:[%s2368 + $0x68] sm:$0xf]
        %v2396 = vld [vmem:[%s2368 + $0x6c] sm:$0xf]
        %v2397 = vld [vmem:[%s2368 + $0x70] sm:$0xf]
        %v2398 = vld [vmem:[%s2368 + $0x74] sm:$0xf]
        %v2399 = vld [vmem:[%s2368 + $0x78] sm:$0xf]
        %v2400 = vld [vmem:[%s2368 + $0x7c] sm:$0xf]
        %v2401 = vunpack.c.l.b16 %v2339
        %v2402 = vunpack.c.h.b16 %v2339
        %v2403 = vunpack.c.l.b16 %v2343
        %v2404 = vunpack.c.h.b16 %v2343
        %v2405 = vunpack.c.l.b16 %v2347
        %v2406 = vunpack.c.h.b16 %v2347
        %v2407 = vunpack.c.l.b16 %v2351
        %v2408 = vunpack.c.h.b16 %v2351
        %v2409 = vunpack.c.l.b16 %v2355
        %v2410 = vunpack.c.h.b16 %v2355
        %v2411 = vunpack.c.l.b16 %v2359
        %v2412 = vunpack.c.h.b16 %v2359
        %v2413 = vunpack.c.l.b16 %v2363
        %v2414 = vunpack.c.h.b16 %v2363
        %v2415 = vunpack.c.l.b16 %v2367
        %v2416 = vunpack.c.h.b16 %v2367
        %v2417 = vpack.c.b16 %v2403, %v2401
        %v2418 = vpack.c.b16 %v2404, %v2402
        %v2419 = vpack.c.b16 %v2407, %v2405
        %v2420 = vpack.c.b16 %v2408, %v2406
        %v2421 = vpack.c.b16 %v2411, %v2409
        %v2422 = vpack.c.b16 %v2412, %v2410
        %v2423 = vpack.c.b16 %v2415, %v2413
        %v2424 = vpack.c.b16 %v2416, %v2414
        %v2465 = vunpack.c.l.b16 %v2369
        %v2466 = vunpack.c.l.b16 %v2370
        %v2467 = vunpack.c.l.b16 %v2371
        %v2468 = vunpack.c.l.b16 %v2372
        %v2469 = vunpack.c.l.b16 %v2373
        %v2470 = vunpack.c.l.b16 %v2374
        %v2471 = vunpack.c.l.b16 %v2375
        %v2472 = vunpack.c.l.b16 %v2376
        %v2473 = vunpack.c.l.b16 %v2377
        %v2474 = vunpack.c.l.b16 %v2378
        %v2475 = vunpack.c.l.b16 %v2379
        %v2476 = vunpack.c.l.b16 %v2380
        %v2477 = vunpack.c.l.b16 %v2381
        %v2478 = vunpack.c.l.b16 %v2382
        %v2479 = vunpack.c.l.b16 %v2383
        %v2480 = vunpack.c.l.b16 %v2384
        %v2481 = vunpack.c.l.b16 %v2385
        %v2482 = vunpack.c.l.b16 %v2386
        %v2483 = vunpack.c.l.b16 %v2387
        %v2484 = vunpack.c.l.b16 %v2388
        %v2485 = vunpack.c.l.b16 %v2389
        %v2486 = vunpack.c.l.b16 %v2390
        %v2487 = vunpack.c.l.b16 %v2391
        %v2488 = vunpack.c.l.b16 %v2392
        %v2489 = vunpack.c.l.b16 %v2393
        %v2490 = vunpack.c.l.b16 %v2394
        %v2491 = vunpack.c.l.b16 %v2395
        %v2492 = vunpack.c.l.b16 %v2396
        %v2493 = vunpack.c.l.b16 %v2397
        %v2494 = vunpack.c.l.b16 %v2398
        %v2495 = vunpack.c.l.b16 %v2399
        %v2496 = vunpack.c.l.b16 %v2400
        %v2497 = vpack.c.b16 %v2466, %v2465
        %v2498 = vpack.c.b16 %v2468, %v2467
        %v2499 = vpack.c.b16 %v2470, %v2469
        %v2500 = vpack.c.b16 %v2472, %v2471
        %v2501 = vpack.c.b16 %v2474, %v2473
        %v2502 = vpack.c.b16 %v2476, %v2475
        %v2503 = vpack.c.b16 %v2478, %v2477
        %v2504 = vpack.c.b16 %v2480, %v2479
        %v2505 = vpack.c.b16 %v2482, %v2481
        %v2506 = vpack.c.b16 %v2484, %v2483
        %v2507 = vpack.c.b16 %v2486, %v2485
        %v2508 = vpack.c.b16 %v2488, %v2487
        %v2509 = vpack.c.b16 %v2490, %v2489
        %v2510 = vpack.c.b16 %v2492, %v2491
        %v2511 = vpack.c.b16 %v2494, %v2493
        %v2512 = vpack.c.b16 %v2496, %v2495
        %2529 = vmatprep.subr.bf16.mxu0 0
        %2530 = vmatpush1.bf16.msra.mxu0 %v2497
        %2531 = vmatprep.subr.bf16.mxu0 0
        %2532 = vmatpush1.bf16.msra.mxu0 %v2498
        %2533 = vmatprep.subr.bf16.mxu0 0
        %2534 = vmatpush1.bf16.msra.mxu0 %v2499
        %2535 = vmatprep.subr.bf16.mxu0 0
        %2536 = vmatpush1.bf16.msra.mxu0 %v2500
        %2537 = vmatprep.subr.bf16.mxu0 0
        %2538 = vmatpush1.bf16.msra.mxu0 %v2501
        %2539 = vmatprep.subr.bf16.mxu0 0
        %2540 = vmatpush1.bf16.msra.mxu0 %v2502
        %2541 = vmatprep.subr.bf16.mxu0 0
        %2542 = vmatpush1.bf16.msra.mxu0 %v2503
        %2543 = vmatprep.subr.bf16.mxu0 0
        %2544 = vmatpush1.bf16.msra.mxu0 %v2504
        %2545 = vmatprep.subr.bf16.mxu0 0
        %2546 = vmatpush1.bf16.msra.mxu0 %v2505
        %2547 = vmatprep.subr.bf16.mxu0 0
        %2548 = vmatpush1.bf16.msra.mxu0 %v2506
        %2549 = vmatprep.subr.bf16.mxu0 0
        %2550 = vmatpush1.bf16.msra.mxu0 %v2507
        %2551 = vmatprep.subr.bf16.mxu0 0
        %2552 = vmatpush1.bf16.msra.mxu0 %v2508
        %2553 = vmatprep.subr.bf16.mxu0 0
        %2554 = vmatpush1.bf16.msra.mxu0 %v2509
        %2555 = vmatprep.subr.bf16.mxu0 0
        %2556 = vmatpush1.bf16.msra.mxu0 %v2510
        %2557 = vmatprep.subr.bf16.mxu0 0
        %2558 = vmatpush1.bf16.msra.mxu0 %v2511
        %2559 = vmatprep.subr.bf16.mxu0 0
        %2560 = vmatpush1.bf16.msra.mxu0 %v2512
        %2561 = vmatprep.mubr.bf16.mxu0 %v2418
        %2562 = vmatmul.mubr.bf16.gmra.mrb[0].mxu0 %v2417
        %v2563 = vpop.f32.mrb[0].mxu0
        %v2564 = vadd.f32 0.0, %v2563
        %v2565 = vpop.f32.mrb[0].mxu0
        %v2566 = vpop.f32.mrb[0].mxu0
        %v2567 = vadd.f32 0.0, %v2566
        %v2568 = vpop.f32.mrb[0].mxu0
        %2569 = vmatprep.mubr.bf16.mxu0 %v2420
        %2570 = vmatmul.mubr.bf16.gmra.mrb[0].mxu0 %v2419
        %v2571 = vpop.f32.mrb[0].mxu0
        %v2572 = vadd.f32 0.0, %v2571
        %v2573 = vpop.f32.mrb[0].mxu0
        %v2574 = vpop.f32.mrb[0].mxu0
        %v2575 = vadd.f32 0.0, %v2574
        %v2576 = vpop.f32.mrb[0].mxu0
        %2577 = vmatprep.mubr.bf16.mxu0 %v2422
        %2578 = vmatmul.mubr.bf16.gmra.mrb[0].mxu0 %v2421
        %v2579 = vpop.f32.mrb[0].mxu0
        %v2580 = vadd.f32 0.0, %v2579
        %v2581 = vpop.f32.mrb[0].mxu0
        %v2582 = vpop.f32.mrb[0].mxu0
        %v2583 = vadd.f32 0.0, %v2582
        %v2584 = vpop.f32.mrb[0].mxu0
        %2585 = vmatprep.mubr.bf16.mxu0 %v2424
        %2586 = vmatmul.mubr.bf16.gmra.mrb[0].mxu0 %v2423
        %v2587 = vpop.f32.mrb[0].mxu0
        %v2588 = vadd.f32 0.0, %v2587
        %v2589 = vpop.f32.mrb[0].mxu0
        %v2590 = vpop.f32.mrb[0].mxu0
        %v2591 = vadd.f32 0.0, %v2590
        %v2592 = vpop.f32.mrb[0].mxu0
        %2593 = vdwg.mxu0
        %v2594 = vadd.f32 %v2304, %v2564
        %v2595 = vadd.f32 %v2305, %v2567
        %v2596 = vadd.f32 %v2306, %v2572
        %v2597 = vadd.f32 %v2307, %v2575
        %v2598 = vadd.f32 %v2308, %v2580
        %v2599 = vadd.f32 %v2309, %v2583
        %v2600 = vadd.f32 %v2310, %v2588
        %v2601 = vadd.f32 %v2311, %v2591
        %s2602 = scalar_lea.vmem [#allocation2], 32
        %v2603 = vld [vmem:[%s2602] sm:$0xff]
        %v2604 = vld [vmem:[%s2602 + $0x10] sm:$0xff]
        %v2605 = vld [vmem:[%s2602 + $0x20] sm:$0xff]
        %v2606 = vld [vmem:[%s2602 + $0x30] sm:$0xff]
        %v2607 = vld [vmem:[%s2602 + $0x40] sm:$0xff]
        %v2608 = vld [vmem:[%s2602 + $0x50] sm:$0xff]
        %v2609 = vld [vmem:[%s2602 + $0x60] sm:$0xff]
        %v2610 = vld [vmem:[%s2602 + $0x70] sm:$0xff]
        %s2611 = scalar_lea.vmem [#allocation4], 768
        %v2612 = vld [vmem:[%s2611] sm:$0xf]
        %v2613 = vld [vmem:[%s2611 + $0x4] sm:$0xf]
        %v2614 = vld [vmem:[%s2611 + $0x8] sm:$0xf]
        %v2615 = vld [vmem:[%s2611 + $0xc] sm:$0xf]
        %v2616 = vld [vmem:[%s2611 + $0x10] sm:$0xf]
        %v2617 = vld [vmem:[%s2611 + $0x14] sm:$0xf]
        %v2618 = vld [vmem:[%s2611 + $0x18] sm:$0xf]
        %v2619 = vld [vmem:[%s2611 + $0x1c] sm:$0xf]
        %v2620 = vld [vmem:[%s2611 + $0x20] sm:$0xf]
        %v2621 = vld [vmem:[%s2611 + $0x24] sm:$0xf]
        %v2622 = vld [vmem:[%s2611 + $0x28] sm:$0xf]
        %v2623 = vld [vmem:[%s2611 + $0x2c] sm:$0xf]
        %v2624 = vld [vmem:[%s2611 + $0x30] sm:$0xf]
        %v2625 = vld [vmem:[%s2611 + $0x34] sm:$0xf]
        %v2626 = vld [vmem:[%s2611 + $0x38] sm:$0xf]
        %v2627 = vld [vmem:[%s2611 + $0x3c] sm:$0xf]
        %v2628 = vld [vmem:[%s2611 + $0x40] sm:$0xf]
        %v2629 = vld [vmem:[%s2611 + $0x44] sm:$0xf]
        %v2630 = vld [vmem:[%s2611 + $0x48] sm:$0xf]
        %v2631 = vld [vmem:[%s2611 + $0x4c] sm:$0xf]
        %v2632 = vld [vmem:[%s2611 + $0x50] sm:$0xf]
        %v2633 = vld [vmem:[%s2611 + $0x54] sm:$0xf]
        %v2634 = vld [vmem:[%s2611 + $0x58] sm:$0xf]
        %v2635 = vld [vmem:[%s2611 + $0x5c] sm:$0xf]
        %v2636 = vld [vmem:[%s2611 + $0x60] sm:$0xf]
        %v2637 = vld [vmem:[%s2611 + $0x64] sm:$0xf]
        %v2638 = vld [vmem:[%s2611 + $0x68] sm:$0xf]
        %v2639 = vld [vmem:[%s2611 + $0x6c] sm:$0xf]
        %v2640 = vld [vmem:[%s2611 + $0x70] sm:$0xf]
        %v2641 = vld [vmem:[%s2611 + $0x74] sm:$0xf]
        %v2642 = vld [vmem:[%s2611 + $0x78] sm:$0xf]
        %v2643 = vld [vmem:[%s2611 + $0x7c] sm:$0xf]
        %v2652 = vunpack.c.l.b16 %v2603
        %v2653 = vunpack.c.h.b16 %v2603
        %v2654 = vunpack.c.l.b16 %v2604
        %v2655 = vunpack.c.h.b16 %v2604
        %v2656 = vunpack.c.l.b16 %v2605
        %v2657 = vunpack.c.h.b16 %v2605
        %v2658 = vunpack.c.l.b16 %v2606
        %v2659 = vunpack.c.h.b16 %v2606
        %v2660 = vunpack.c.l.b16 %v2607
        %v2661 = vunpack.c.h.b16 %v2607
        %v2662 = vunpack.c.l.b16 %v2608
        %v2663 = vunpack.c.h.b16 %v2608
        %v2664 = vunpack.c.l.b16 %v2609
        %v2665 = vunpack.c.h.b16 %v2609
        %v2666 = vunpack.c.l.b16 %v2610
        %v2667 = vunpack.c.h.b16 %v2610
        %v2668 = vpack.c.b16 %v2654, %v2652
        %v2669 = vpack.c.b16 %v2655, %v2653
        %v2670 = vpack.c.b16 %v2658, %v2656
        %v2671 = vpack.c.b16 %v2659, %v2657
        %v2672 = vpack.c.b16 %v2662, %v2660
        %v2673 = vpack.c.b16 %v2663, %v2661
        %v2674 = vpack.c.b16 %v2666, %v2664
        %v2675 = vpack.c.b16 %v2667, %v2665
        %v2716 = vunpack.c.l.b16 %v2612
        %v2717 = vunpack.c.l.b16 %v2613
        %v2718 = vunpack.c.l.b16 %v2614
        %v2719 = vunpack.c.l.b16 %v2615
        %v2720 = vunpack.c.l.b16 %v2616
        %v2721 = vunpack.c.l.b16 %v2617
        %v2722 = vunpack.c.l.b16 %v2618
        %v2723 = vunpack.c.l.b16 %v2619
        %v2724 = vunpack.c.l.b16 %v2620
        %v2725 = vunpack.c.l.b16 %v2621
        %v2726 = vunpack.c.l.b16 %v2622
        %v2727 = vunpack.c.l.b16 %v2623
        %v2728 = vunpack.c.l.b16 %v2624
        %v2729 = vunpack.c.l.b16 %v2625
        %v2730 = vunpack.c.l.b16 %v2626
        %v2731 = vunpack.c.l.b16 %v2627
        %v2732 = vunpack.c.l.b16 %v2628
        %v2733 = vunpack.c.l.b16 %v2629
        %v2734 = vunpack.c.l.b16 %v2630
        %v2735 = vunpack.c.l.b16 %v2631
        %v2736 = vunpack.c.l.b16 %v2632
        %v2737 = vunpack.c.l.b16 %v2633
        %v2738 = vunpack.c.l.b16 %v2634
        %v2739 = vunpack.c.l.b16 %v2635
        %v2740 = vunpack.c.l.b16 %v2636
        %v2741 = vunpack.c.l.b16 %v2637
        %v2742 = vunpack.c.l.b16 %v2638
        %v2743 = vunpack.c.l.b16 %v2639
        %v2744 = vunpack.c.l.b16 %v2640
        %v2745 = vunpack.c.l.b16 %v2641
        %v2746 = vunpack.c.l.b16 %v2642
        %v2747 = vunpack.c.l.b16 %v2643
        %v2748 = vpack.c.b16 %v2717, %v2716
        %v2749 = vpack.c.b16 %v2719, %v2718
        %v2750 = vpack.c.b16 %v2721, %v2720
        %v2751 = vpack.c.b16 %v2723, %v2722
        %v2752 = vpack.c.b16 %v2725, %v2724
        %v2753 = vpack.c.b16 %v2727, %v2726
        %v2754 = vpack.c.b16 %v2729, %v2728
        %v2755 = vpack.c.b16 %v2731, %v2730
        %v2756 = vpack.c.b16 %v2733, %v2732
        %v2757 = vpack.c.b16 %v2735, %v2734
        %v2758 = vpack.c.b16 %v2737, %v2736
        %v2759 = vpack.c.b16 %v2739, %v2738
        %v2760 = vpack.c.b16 %v2741, %v2740
        %v2761 = vpack.c.b16 %v2743, %v2742
        %v2762 = vpack.c.b16 %v2745, %v2744
        %v2763 = vpack.c.b16 %v2747, %v2746
        %2780 = vmatprep.subr.bf16.mxu0 0
        %2781 = vmatpush1.bf16.msra.mxu0 %v2748
        %2782 = vmatprep.subr.bf16.mxu0 0
        %2783 = vmatpush1.bf16.msra.mxu0 %v2749
        %2784 = vmatprep.subr.bf16.mxu0 0
        %2785 = vmatpush1.bf16.msra.mxu0 %v2750
        %2786 = vmatprep.subr.bf16.mxu0 0
        %2787 = vmatpush1.bf16.msra.mxu0 %v2751
        %2788 = vmatprep.subr.bf16.mxu0 0
        %2789 = vmatpush1.bf16.msra.mxu0 %v2752
        %2790 = vmatprep.subr.bf16.mxu0 0
        %2791 = vmatpush1.bf16.msra.mxu0 %v2753
        %2792 = vmatprep.subr.bf16.mxu0 0
        %2793 = vmatpush1.bf16.msra.mxu0 %v2754
        %2794 = vmatprep.subr.bf16.mxu0 0
        %2795 = vmatpush1.bf16.msra.mxu0 %v2755
        %2796 = vmatprep.subr.bf16.mxu0 0
        %2797 = vmatpush1.bf16.msra.mxu0 %v2756
        %2798 = vmatprep.subr.bf16.mxu0 0
        %2799 = vmatpush1.bf16.msra.mxu0 %v2757
        %2800 = vmatprep.subr.bf16.mxu0 0
        %2801 = vmatpush1.bf16.msra.mxu0 %v2758
        %2802 = vmatprep.subr.bf16.mxu0 0
        %2803 = vmatpush1.bf16.msra.mxu0 %v2759
        %2804 = vmatprep.subr.bf16.mxu0 0
        %2805 = vmatpush1.bf16.msra.mxu0 %v2760
        %2806 = vmatprep.subr.bf16.mxu0 0
        %2807 = vmatpush1.bf16.msra.mxu0 %v2761
        %2808 = vmatprep.subr.bf16.mxu0 0
        %2809 = vmatpush1.bf16.msra.mxu0 %v2762
        %2810 = vmatprep.subr.bf16.mxu0 0
        %2811 = vmatpush1.bf16.msra.mxu0 %v2763
        %2812 = vmatprep.mubr.bf16.mxu0 %v2669
        %2813 = vmatmul.mubr.bf16.gmra.mrb[0].mxu0 %v2668
        %v2814 = vpop.f32.mrb[0].mxu0
        %v2815 = vadd.f32 0.0, %v2814
        %v2816 = vpop.f32.mrb[0].mxu0
        %v2817 = vpop.f32.mrb[0].mxu0
        %v2818 = vadd.f32 0.0, %v2817
        %v2819 = vpop.f32.mrb[0].mxu0
        %2820 = vmatprep.mubr.bf16.mxu0 %v2671
        %2821 = vmatmul.mubr.bf16.gmra.mrb[0].mxu0 %v2670
        %v2822 = vpop.f32.mrb[0].mxu0
        %v2823 = vadd.f32 0.0, %v2822
        %v2824 = vpop.f32.mrb[0].mxu0
        %v2825 = vpop.f32.mrb[0].mxu0
        %v2826 = vadd.f32 0.0, %v2825
        %v2827 = vpop.f32.mrb[0].mxu0
        %2828 = vmatprep.mubr.bf16.mxu0 %v2673
        %2829 = vmatmul.mubr.bf16.gmra.mrb[0].mxu0 %v2672
        %v2830 = vpop.f32.mrb[0].mxu0
        %v2831 = vadd.f32 0.0, %v2830
        %v2832 = vpop.f32.mrb[0].mxu0
        %v2833 = vpop.f32.mrb[0].mxu0
        %v2834 = vadd.f32 0.0, %v2833
        %v2835 = vpop.f32.mrb[0].mxu0
        %2836 = vmatprep.mubr.bf16.mxu0 %v2675
        %2837 = vmatmul.mubr.bf16.gmra.mrb[0].mxu0 %v2674
        %v2838 = vpop.f32.mrb[0].mxu0
        %v2839 = vadd.f32 0.0, %v2838
        %v2840 = vpop.f32.mrb[0].mxu0
        %v2841 = vpop.f32.mrb[0].mxu0
        %v2842 = vadd.f32 0.0, %v2841
        %v2843 = vpop.f32.mrb[0].mxu0
        %2844 = vdwg.mxu0
        %v2845 = vadd.f32 %v2594, %v2815
        %v2846 = vadd.f32 %v2595, %v2818
        %v2847 = vadd.f32 %v2596, %v2823
        %v2848 = vadd.f32 %v2597, %v2826
        %v2849 = vadd.f32 %v2598, %v2831
        %v2850 = vadd.f32 %v2599, %v2834
        %v2851 = vadd.f32 %v2600, %v2839
        %v2852 = vadd.f32 %v2601, %v2842
        %v2853 = vld [vmem:[%s2602] sm:$0xff]
        %v2854 = vld [vmem:[%s2602 + $0x8] sm:$0x11]
        %v2855 = vld [vmem:[%s2602 + $0x10] sm:$0xff]
        %v2856 = vld [vmem:[%s2602 + $0x18] sm:$0x11]
        %v2857 = vld [vmem:[%s2602 + $0x20] sm:$0xff]
        %v2858 = vld [vmem:[%s2602 + $0x28] sm:$0x11]
        %v2859 = vld [vmem:[%s2602 + $0x30] sm:$0xff]
        %v2860 = vld [vmem:[%s2602 + $0x38] sm:$0x11]
        %v2861 = vld [vmem:[%s2602 + $0x40] sm:$0xff]
        %v2862 = vld [vmem:[%s2602 + $0x48] sm:$0x11]
        %v2863 = vld [vmem:[%s2602 + $0x50] sm:$0xff]
        %v2864 = vld [vmem:[%s2602 + $0x58] sm:$0x11]
        %v2865 = vld [vmem:[%s2602 + $0x60] sm:$0xff]
        %v2866 = vld [vmem:[%s2602 + $0x68] sm:$0x11]
        %v2867 = vld [vmem:[%s2602 + $0x70] sm:$0xff]
        %v2868 = vld [vmem:[%s2602 + $0x78] sm:$0x11]
        %v2870 = vshrl.u32 %v2853, 16
        %v2872 = vrot.slane %v2870, 4
        %v2873 = vshll.u32 %v2853, 16
        %v2875 = vrot.slane %v2873, 5
        %v2876 = vor.u32 %v2872, %v2875
        %v2877 = vrot.slane %v2876, 4
        %v2879 = vshll.u32 %v2854, 16
        %v2881 = vrot.slane %v2879, 5
        %v2882 = vsel %vm867, %v2877, %v2881
        %v2884 = vshrl.u32 %v2855, 16
        %v2886 = vrot.slane %v2884, 4
        %v2887 = vshll.u32 %v2855, 16
        %v2889 = vrot.slane %v2887, 5
        %v2890 = vor.u32 %v2886, %v2889
        %v2891 = vrot.slane %v2890, 4
        %v2893 = vshll.u32 %v2856, 16
        %v2895 = vrot.slane %v2893, 5
        %v2896 = vsel %vm867, %v2891, %v2895
        %v2898 = vshrl.u32 %v2857, 16
        %v2900 = vrot.slane %v2898, 4
        %v2901 = vshll.u32 %v2857, 16
        %v2903 = vrot.slane %v2901, 5
        %v2904 = vor.u32 %v2900, %v2903
        %v2905 = vrot.slane %v2904, 4
        %v2907 = vshll.u32 %v2858, 16
        %v2909 = vrot.slane %v2907, 5
        %v2910 = vsel %vm867, %v2905, %v2909
        %v2912 = vshrl.u32 %v2859, 16
        %v2914 = vrot.slane %v2912, 4
        %v2915 = vshll.u32 %v2859, 16
        %v2917 = vrot.slane %v2915, 5
        %v2918 = vor.u32 %v2914, %v2917
        %v2919 = vrot.slane %v2918, 4
        %v2921 = vshll.u32 %v2860, 16
        %v2923 = vrot.slane %v2921, 5
        %v2924 = vsel %vm867, %v2919, %v2923
        %v2926 = vshrl.u32 %v2861, 16
        %v2928 = vrot.slane %v2926, 4
        %v2929 = vshll.u32 %v2861, 16
        %v2931 = vrot.slane %v2929, 5
        %v2932 = vor.u32 %v2928, %v2931
        %v2933 = vrot.slane %v2932, 4
        %v2935 = vshll.u32 %v2862, 16
        %v2937 = vrot.slane %v2935, 5
        %v2938 = vsel %vm867, %v2933, %v2937
        %v2940 = vshrl.u32 %v2863, 16
        %v2942 = vrot.slane %v2940, 4
        %v2943 = vshll.u32 %v2863, 16
        %v2945 = vrot.slane %v2943, 5
        %v2946 = vor.u32 %v2942, %v2945
        %v2947 = vrot.slane %v2946, 4
        %v2949 = vshll.u32 %v2864, 16
        %v2951 = vrot.slane %v2949, 5
        %v2952 = vsel %vm867, %v2947, %v2951
        %v2954 = vshrl.u32 %v2865, 16
        %v2956 = vrot.slane %v2954, 4
        %v2957 = vshll.u32 %v2865, 16
        %v2959 = vrot.slane %v2957, 5
        %v2960 = vor.u32 %v2956, %v2959
        %v2961 = vrot.slane %v2960, 4
        %v2963 = vshll.u32 %v2866, 16
        %v2965 = vrot.slane %v2963, 5
        %v2966 = vsel %vm867, %v2961, %v2965
        %v2968 = vshrl.u32 %v2867, 16
        %v2970 = vrot.slane %v2968, 4
        %v2971 = vshll.u32 %v2867, 16
        %v2973 = vrot.slane %v2971, 5
        %v2974 = vor.u32 %v2970, %v2973
        %v2975 = vrot.slane %v2974, 4
        %v2977 = vshll.u32 %v2868, 16
        %v2979 = vrot.slane %v2977, 5
        %v2980 = vsel %vm867, %v2975, %v2979
        %s2981 = scalar_lea.vmem [#allocation4], 896
        %v2982 = vld [vmem:[%s2981] sm:$0xf]
        %v2983 = vld [vmem:[%s2981 + $0x4] sm:$0xf]
        %v2984 = vld [vmem:[%s2981 + $0x8] sm:$0xf]
        %v2985 = vld [vmem:[%s2981 + $0xc] sm:$0xf]
        %v2986 = vld [vmem:[%s2981 + $0x10] sm:$0xf]
        %v2987 = vld [vmem:[%s2981 + $0x14] sm:$0xf]
        %v2988 = vld [vmem:[%s2981 + $0x18] sm:$0xf]
        %v2989 = vld [vmem:[%s2981 + $0x1c] sm:$0xf]
        %v2990 = vld [vmem:[%s2981 + $0x20] sm:$0xf]
        %v2991 = vld [vmem:[%s2981 + $0x24] sm:$0xf]
        %v2992 = vld [vmem:[%s2981 + $0x28] sm:$0xf]
        %v2993 = vld [vmem:[%s2981 + $0x2c] sm:$0xf]
        %v2994 = vld [vmem:[%s2981 + $0x30] sm:$0xf]
        %v2995 = vld [vmem:[%s2981 + $0x34] sm:$0xf]
        %v2996 = vld [vmem:[%s2981 + $0x38] sm:$0xf]
        %v2997 = vld [vmem:[%s2981 + $0x3c] sm:$0xf]
        %v2998 = vld [vmem:[%s2981 + $0x40] sm:$0xf]
        %v2999 = vld [vmem:[%s2981 + $0x44] sm:$0xf]
        %v3000 = vld [vmem:[%s2981 + $0x48] sm:$0xf]
        %v3001 = vld [vmem:[%s2981 + $0x4c] sm:$0xf]
        %v3002 = vld [vmem:[%s2981 + $0x50] sm:$0xf]
        %v3003 = vld [vmem:[%s2981 + $0x54] sm:$0xf]
        %v3004 = vld [vmem:[%s2981 + $0x58] sm:$0xf]
        %v3005 = vld [vmem:[%s2981 + $0x5c] sm:$0xf]
        %v3006 = vld [vmem:[%s2981 + $0x60] sm:$0xf]
        %v3007 = vld [vmem:[%s2981 + $0x64] sm:$0xf]
        %v3008 = vld [vmem:[%s2981 + $0x68] sm:$0xf]
        %v3009 = vld [vmem:[%s2981 + $0x6c] sm:$0xf]
        %v3010 = vld [vmem:[%s2981 + $0x70] sm:$0xf]
        %v3011 = vld [vmem:[%s2981 + $0x74] sm:$0xf]
        %v3012 = vld [vmem:[%s2981 + $0x78] sm:$0xf]
        %v3013 = vld [vmem:[%s2981 + $0x7c] sm:$0xf]
        %v3014 = vunpack.c.l.b16 %v2882
        %v3015 = vunpack.c.h.b16 %v2882
        %v3016 = vunpack.c.l.b16 %v2896
        %v3017 = vunpack.c.h.b16 %v2896
        %v3018 = vunpack.c.l.b16 %v2910
        %v3019 = vunpack.c.h.b16 %v2910
        %v3020 = vunpack.c.l.b16 %v2924
        %v3021 = vunpack.c.h.b16 %v2924
        %v3022 = vunpack.c.l.b16 %v2938
        %v3023 = vunpack.c.h.b16 %v2938
        %v3024 = vunpack.c.l.b16 %v2952
        %v3025 = vunpack.c.h.b16 %v2952
        %v3026 = vunpack.c.l.b16 %v2966
        %v3027 = vunpack.c.h.b16 %v2966
        %v3028 = vunpack.c.l.b16 %v2980
        %v3029 = vunpack.c.h.b16 %v2980
        %v3030 = vpack.c.b16 %v3016, %v3014
        %v3031 = vpack.c.b16 %v3017, %v3015
        %v3032 = vpack.c.b16 %v3020, %v3018
        %v3033 = vpack.c.b16 %v3021, %v3019
        %v3034 = vpack.c.b16 %v3024, %v3022
        %v3035 = vpack.c.b16 %v3025, %v3023
        %v3036 = vpack.c.b16 %v3028, %v3026
        %v3037 = vpack.c.b16 %v3029, %v3027
        %v3078 = vunpack.c.l.b16 %v2982
        %v3079 = vunpack.c.l.b16 %v2983
        %v3080 = vunpack.c.l.b16 %v2984
        %v3081 = vunpack.c.l.b16 %v2985
        %v3082 = vunpack.c.l.b16 %v2986
        %v3083 = vunpack.c.l.b16 %v2987
        %v3084 = vunpack.c.l.b16 %v2988
        %v3085 = vunpack.c.l.b16 %v2989
        %v3086 = vunpack.c.l.b16 %v2990
        %v3087 = vunpack.c.l.b16 %v2991
        %v3088 = vunpack.c.l.b16 %v2992
        %v3089 = vunpack.c.l.b16 %v2993
        %v3090 = vunpack.c.l.b16 %v2994
        %v3091 = vunpack.c.l.b16 %v2995
        %v3092 = vunpack.c.l.b16 %v2996
        %v3093 = vunpack.c.l.b16 %v2997
        %v3094 = vunpack.c.l.b16 %v2998
        %v3095 = vunpack.c.l.b16 %v2999
        %v3096 = vunpack.c.l.b16 %v3000
        %v3097 = vunpack.c.l.b16 %v3001
        %v3098 = vunpack.c.l.b16 %v3002
        %v3099 = vunpack.c.l.b16 %v3003
        %v3100 = vunpack.c.l.b16 %v3004
        %v3101 = vunpack.c.l.b16 %v3005
        %v3102 = vunpack.c.l.b16 %v3006
        %v3103 = vunpack.c.l.b16 %v3007
        %v3104 = vunpack.c.l.b16 %v3008
        %v3105 = vunpack.c.l.b16 %v3009
        %v3106 = vunpack.c.l.b16 %v3010
        %v3107 = vunpack.c.l.b16 %v3011
        %v3108 = vunpack.c.l.b16 %v3012
        %v3109 = vunpack.c.l.b16 %v3013
        %v3110 = vpack.c.b16 %v3079, %v3078
        %v3111 = vpack.c.b16 %v3081, %v3080
        %v3112 = vpack.c.b16 %v3083, %v3082
        %v3113 = vpack.c.b16 %v3085, %v3084
        %v3114 = vpack.c.b16 %v3087, %v3086
        %v3115 = vpack.c.b16 %v3089, %v3088
        %v3116 = vpack.c.b16 %v3091, %v3090
        %v3117 = vpack.c.b16 %v3093, %v3092
        %v3118 = vpack.c.b16 %v3095, %v3094
        %v3119 = vpack.c.b16 %v3097, %v3096
        %v3120 = vpack.c.b16 %v3099, %v3098
        %v3121 = vpack.c.b16 %v3101, %v3100
        %v3122 = vpack.c.b16 %v3103, %v3102
        %v3123 = vpack.c.b16 %v3105, %v3104
        %v3124 = vpack.c.b16 %v3107, %v3106
        %v3125 = vpack.c.b16 %v3109, %v3108
        %3142 = vmatprep.subr.bf16.mxu0 0
        %3143 = vmatpush1.bf16.msra.mxu0 %v3110
        %3144 = vmatprep.subr.bf16.mxu0 0
        %3145 = vmatpush1.bf16.msra.mxu0 %v3111
        %3146 = vmatprep.subr.bf16.mxu0 0
        %3147 = vmatpush1.bf16.msra.mxu0 %v3112
        %3148 = vmatprep.subr.bf16.mxu0 0
        %3149 = vmatpush1.bf16.msra.mxu0 %v3113
        %3150 = vmatprep.subr.bf16.mxu0 0
        %3151 = vmatpush1.bf16.msra.mxu0 %v3114
        %3152 = vmatprep.subr.bf16.mxu0 0
        %3153 = vmatpush1.bf16.msra.mxu0 %v3115
        %3154 = vmatprep.subr.bf16.mxu0 0
        %3155 = vmatpush1.bf16.msra.mxu0 %v3116
        %3156 = vmatprep.subr.bf16.mxu0 0
        %3157 = vmatpush1.bf16.msra.mxu0 %v3117
        %3158 = vmatprep.subr.bf16.mxu0 0
        %3159 = vmatpush1.bf16.msra.mxu0 %v3118
        %3160 = vmatprep.subr.bf16.mxu0 0
        %3161 = vmatpush1.bf16.msra.mxu0 %v3119
        %3162 = vmatprep.subr.bf16.mxu0 0
        %3163 = vmatpush1.bf16.msra.mxu0 %v3120
        %3164 = vmatprep.subr.bf16.mxu0 0
        %3165 = vmatpush1.bf16.msra.mxu0 %v3121
        %3166 = vmatprep.subr.bf16.mxu0 0
        %3167 = vmatpush1.bf16.msra.mxu0 %v3122
        %3168 = vmatprep.subr.bf16.mxu0 0
        %3169 = vmatpush1.bf16.msra.mxu0 %v3123
        %3170 = vmatprep.subr.bf16.mxu0 0
        %3171 = vmatpush1.bf16.msra.mxu0 %v3124
        %3172 = vmatprep.subr.bf16.mxu0 0
        %3173 = vmatpush1.bf16.msra.mxu0 %v3125
        %3174 = vmatprep.mubr.bf16.mxu0 %v3031
        %3175 = vmatmul.mubr.bf16.gmra.mrb[0].mxu0 %v3030
        %v3176 = vpop.f32.mrb[0].mxu0
        %v3177 = vadd.f32 0.0, %v3176
        %v3178 = vpop.f32.mrb[0].mxu0
        %v3179 = vpop.f32.mrb[0].mxu0
        %v3180 = vadd.f32 0.0, %v3179
        %v3181 = vpop.f32.mrb[0].mxu0
        %3182 = vmatprep.mubr.bf16.mxu0 %v3033
        %3183 = vmatmul.mubr.bf16.gmra.mrb[0].mxu0 %v3032
        %v3184 = vpop.f32.mrb[0].mxu0
        %v3185 = vadd.f32 0.0, %v3184
        %v3186 = vpop.f32.mrb[0].mxu0
        %v3187 = vpop.f32.mrb[0].mxu0
        %v3188 = vadd.f32 0.0, %v3187
        %v3189 = vpop.f32.mrb[0].mxu0
        %3190 = vmatprep.mubr.bf16.mxu0 %v3035
        %3191 = vmatmul.mubr.bf16.gmra.mrb[0].mxu0 %v3034
        %v3192 = vpop.f32.mrb[0].mxu0
        %v3193 = vadd.f32 0.0, %v3192
        %v3194 = vpop.f32.mrb[0].mxu0
        %v3195 = vpop.f32.mrb[0].mxu0
        %v3196 = vadd.f32 0.0, %v3195
        %v3197 = vpop.f32.mrb[0].mxu0
        %3198 = vmatprep.mubr.bf16.mxu0 %v3037
        %3199 = vmatmul.mubr.bf16.gmra.mrb[0].mxu0 %v3036
        %v3200 = vpop.f32.mrb[0].mxu0
        %v3201 = vadd.f32 0.0, %v3200
        %v3202 = vpop.f32.mrb[0].mxu0
        %v3203 = vpop.f32.mrb[0].mxu0
        %v3204 = vadd.f32 0.0, %v3203
        %v3205 = vpop.f32.mrb[0].mxu0
        %3206 = vdwg.mxu0
        %v3207 = vadd.f32 %v2845, %v3177
        %v3208 = vadd.f32 %v2846, %v3180
        %v3209 = vadd.f32 %v2847, %v3185
        %v3210 = vadd.f32 %v2848, %v3188
        %v3211 = vadd.f32 %v2849, %v3193
        %v3212 = vadd.f32 %v2850, %v3196
        %v3213 = vadd.f32 %v2851, %v3201
        %v3214 = vadd.f32 %v2852, %v3204
        %v3215 = vld [vmem:[%s2602] sm:$0xee]
        %v3216 = vld [vmem:[%s2602 + $0x10] sm:$0xee]
        %v3217 = vld [vmem:[%s2602 + $0x20] sm:$0xee]
        %v3218 = vld [vmem:[%s2602 + $0x30] sm:$0xee]
        %v3219 = vld [vmem:[%s2602 + $0x40] sm:$0xee]
        %v3220 = vld [vmem:[%s2602 + $0x50] sm:$0xee]
        %v3221 = vld [vmem:[%s2602 + $0x60] sm:$0xee]
        %v3222 = vld [vmem:[%s2602 + $0x70] sm:$0xee]
        %v3239 = vrot.slane %v3215, 5
        %v3240 = vrot.slane %v3239, 4
        %v3241 = vrot.slane %v2854, 5
        %v3242 = vsel %vm1433, %v3240, %v3241
        %v3243 = vrot.slane %v3216, 5
        %v3244 = vrot.slane %v3243, 4
        %v3245 = vrot.slane %v2856, 5
        %v3246 = vsel %vm1433, %v3244, %v3245
        %v3247 = vrot.slane %v3217, 5
        %v3248 = vrot.slane %v3247, 4
        %v3249 = vrot.slane %v2858, 5
        %v3250 = vsel %vm1433, %v3248, %v3249
        %v3251 = vrot.slane %v3218, 5
        %v3252 = vrot.slane %v3251, 4
        %v3253 = vrot.slane %v2860, 5
        %v3254 = vsel %vm1433, %v3252, %v3253
        %v3255 = vrot.slane %v3219, 5
        %v3256 = vrot.slane %v3255, 4
        %v3257 = vrot.slane %v2862, 5
        %v3258 = vsel %vm1433, %v3256, %v3257
        %v3259 = vrot.slane %v3220, 5
        %v3260 = vrot.slane %v3259, 4
        %v3261 = vrot.slane %v2864, 5
        %v3262 = vsel %vm1433, %v3260, %v3261
        %v3263 = vrot.slane %v3221, 5
        %v3264 = vrot.slane %v3263, 4
        %v3265 = vrot.slane %v2866, 5
        %v3266 = vsel %vm1433, %v3264, %v3265
        %v3267 = vrot.slane %v3222, 5
        %v3268 = vrot.slane %v3267, 4
        %v3269 = vrot.slane %v2868, 5
        %v3270 = vsel %vm1433, %v3268, %v3269
        %s3271 = scalar_lea.vmem [#allocation4], 1024
        %v3272 = vld [vmem:[%s3271] sm:$0xf]
        %v3273 = vld [vmem:[%s3271 + $0x4] sm:$0xf]
        %v3274 = vld [vmem:[%s3271 + $0x8] sm:$0xf]
        %v3275 = vld [vmem:[%s3271 + $0xc] sm:$0xf]
        %v3276 = vld [vmem:[%s3271 + $0x10] sm:$0xf]
        %v3277 = vld [vmem:[%s3271 + $0x14] sm:$0xf]
        %v3278 = vld [vmem:[%s3271 + $0x18] sm:$0xf]
        %v3279 = vld [vmem:[%s3271 + $0x1c] sm:$0xf]
        %v3280 = vld [vmem:[%s3271 + $0x20] sm:$0xf]
        %v3281 = vld [vmem:[%s3271 + $0x24] sm:$0xf]
        %v3282 = vld [vmem:[%s3271 + $0x28] sm:$0xf]
        %v3283 = vld [vmem:[%s3271 + $0x2c] sm:$0xf]
        %v3284 = vld [vmem:[%s3271 + $0x30] sm:$0xf]
        %v3285 = vld [vmem:[%s3271 + $0x34] sm:$0xf]
        %v3286 = vld [vmem:[%s3271 + $0x38] sm:$0xf]
        %v3287 = vld [vmem:[%s3271 + $0x3c] sm:$0xf]
        %v3288 = vld [vmem:[%s3271 + $0x40] sm:$0xf]
        %v3289 = vld [vmem:[%s3271 + $0x44] sm:$0xf]
        %v3290 = vld [vmem:[%s3271 + $0x48] sm:$0xf]
        %v3291 = vld [vmem:[%s3271 + $0x4c] sm:$0xf]
        %v3292 = vld [vmem:[%s3271 + $0x50] sm:$0xf]
        %v3293 = vld [vmem:[%s3271 + $0x54] sm:$0xf]
        %v3294 = vld [vmem:[%s3271 + $0x58] sm:$0xf]
        %v3295 = vld [vmem:[%s3271 + $0x5c] sm:$0xf]
        %v3296 = vld [vmem:[%s3271 + $0x60] sm:$0xf]
        %v3297 = vld [vmem:[%s3271 + $0x64] sm:$0xf]
        %v3298 = vld [vmem:[%s3271 + $0x68] sm:$0xf]
        %v3299 = vld [vmem:[%s3271 + $0x6c] sm:$0xf]
        %v3300 = vld [vmem:[%s3271 + $0x70] sm:$0xf]
        %v3301 = vld [vmem:[%s3271 + $0x74] sm:$0xf]
        %v3302 = vld [vmem:[%s3271 + $0x78] sm:$0xf]
        %v3303 = vld [vmem:[%s3271 + $0x7c] sm:$0xf]
        %v3304 = vunpack.c.l.b16 %v3242
        %v3305 = vunpack.c.h.b16 %v3242
        %v3306 = vunpack.c.l.b16 %v3246
        %v3307 = vunpack.c.h.b16 %v3246
        %v3308 = vunpack.c.l.b16 %v3250
        %v3309 = vunpack.c.h.b16 %v3250
        %v3310 = vunpack.c.l.b16 %v3254
        %v3311 = vunpack.c.h.b16 %v3254
        %v3312 = vunpack.c.l.b16 %v3258
        %v3313 = vunpack.c.h.b16 %v3258
        %v3314 = vunpack.c.l.b16 %v3262
        %v3315 = vunpack.c.h.b16 %v3262
        %v3316 = vunpack.c.l.b16 %v3266
        %v3317 = vunpack.c.h.b16 %v3266
        %v3318 = vunpack.c.l.b16 %v3270
        %v3319 = vunpack.c.h.b16 %v3270
        %v3320 = vpack.c.b16 %v3306, %v3304
        %v3321 = vpack.c.b16 %v3307, %v3305
        %v3322 = vpack.c.b16 %v3310, %v3308
        %v3323 = vpack.c.b16 %v3311, %v3309
        %v3324 = vpack.c.b16 %v3314, %v3312
        %v3325 = vpack.c.b16 %v3315, %v3313
        %v3326 = vpack.c.b16 %v3318, %v3316
        %v3327 = vpack.c.b16 %v3319, %v3317
        %v3368 = vunpack.c.l.b16 %v3272
        %v3369 = vunpack.c.l.b16 %v3273
        %v3370 = vunpack.c.l.b16 %v3274
        %v3371 = vunpack.c.l.b16 %v3275
        %v3372 = vunpack.c.l.b16 %v3276
        %v3373 = vunpack.c.l.b16 %v3277
        %v3374 = vunpack.c.l.b16 %v3278
        %v3375 = vunpack.c.l.b16 %v3279
        %v3376 = vunpack.c.l.b16 %v3280
        %v3377 = vunpack.c.l.b16 %v3281
        %v3378 = vunpack.c.l.b16 %v3282
        %v3379 = vunpack.c.l.b16 %v3283
        %v3380 = vunpack.c.l.b16 %v3284
        %v3381 = vunpack.c.l.b16 %v3285
        %v3382 = vunpack.c.l.b16 %v3286
        %v3383 = vunpack.c.l.b16 %v3287
        %v3384 = vunpack.c.l.b16 %v3288
        %v3385 = vunpack.c.l.b16 %v3289
        %v3386 = vunpack.c.l.b16 %v3290
        %v3387 = vunpack.c.l.b16 %v3291
        %v3388 = vunpack.c.l.b16 %v3292
        %v3389 = vunpack.c.l.b16 %v3293
        %v3390 = vunpack.c.l.b16 %v3294
        %v3391 = vunpack.c.l.b16 %v3295
        %v3392 = vunpack.c.l.b16 %v3296
        %v3393 = vunpack.c.l.b16 %v3297
        %v3394 = vunpack.c.l.b16 %v3298
        %v3395 = vunpack.c.l.b16 %v3299
        %v3396 = vunpack.c.l.b16 %v3300
        %v3397 = vunpack.c.l.b16 %v3301
        %v3398 = vunpack.c.l.b16 %v3302
        %v3399 = vunpack.c.l.b16 %v3303
        %v3400 = vpack.c.b16 %v3369, %v3368
        %v3401 = vpack.c.b16 %v3371, %v3370
        %v3402 = vpack.c.b16 %v3373, %v3372
        %v3403 = vpack.c.b16 %v3375, %v3374
        %v3404 = vpack.c.b16 %v3377, %v3376
        %v3405 = vpack.c.b16 %v3379, %v3378
        %v3406 = vpack.c.b16 %v3381, %v3380
        %v3407 = vpack.c.b16 %v3383, %v3382
        %v3408 = vpack.c.b16 %v3385, %v3384
        %v3409 = vpack.c.b16 %v3387, %v3386
        %v3410 = vpack.c.b16 %v3389, %v3388
        %v3411 = vpack.c.b16 %v3391, %v3390
        %v3412 = vpack.c.b16 %v3393, %v3392
        %v3413 = vpack.c.b16 %v3395, %v3394
        %v3414 = vpack.c.b16 %v3397, %v3396
        %v3415 = vpack.c.b16 %v3399, %v3398
        %3432 = vmatprep.subr.bf16.mxu0 0
        %3433 = vmatpush1.bf16.msra.mxu0 %v3400
        %3434 = vmatprep.subr.bf16.mxu0 0
        %3435 = vmatpush1.bf16.msra.mxu0 %v3401
        %3436 = vmatprep.subr.bf16.mxu0 0
        %3437 = vmatpush1.bf16.msra.mxu0 %v3402
        %3438 = vmatprep.subr.bf16.mxu0 0
        %3439 = vmatpush1.bf16.msra.mxu0 %v3403
        %3440 = vmatprep.subr.bf16.mxu0 0
        %3441 = vmatpush1.bf16.msra.mxu0 %v3404
        %3442 = vmatprep.subr.bf16.mxu0 0
        %3443 = vmatpush1.bf16.msra.mxu0 %v3405
        %3444 = vmatprep.subr.bf16.mxu0 0
        %3445 = vmatpush1.bf16.msra.mxu0 %v3406
        %3446 = vmatprep.subr.bf16.mxu0 0
        %3447 = vmatpush1.bf16.msra.mxu0 %v3407
        %3448 = vmatprep.subr.bf16.mxu0 0
        %3449 = vmatpush1.bf16.msra.mxu0 %v3408
        %3450 = vmatprep.subr.bf16.mxu0 0
        %3451 = vmatpush1.bf16.msra.mxu0 %v3409
        %3452 = vmatprep.subr.bf16.mxu0 0
        %3453 = vmatpush1.bf16.msra.mxu0 %v3410
        %3454 = vmatprep.subr.bf16.mxu0 0
        %3455 = vmatpush1.bf16.msra.mxu0 %v3411
        %3456 = vmatprep.subr.bf16.mxu0 0
        %3457 = vmatpush1.bf16.msra.mxu0 %v3412
        %3458 = vmatprep.subr.bf16.mxu0 0
        %3459 = vmatpush1.bf16.msra.mxu0 %v3413
        %3460 = vmatprep.subr.bf16.mxu0 0
        %3461 = vmatpush1.bf16.msra.mxu0 %v3414
        %3462 = vmatprep.subr.bf16.mxu0 0
        %3463 = vmatpush1.bf16.msra.mxu0 %v3415
        %3464 = vmatprep.mubr.bf16.mxu0 %v3321
        %3465 = vmatmul.mubr.bf16.gmra.mrb[0].mxu0 %v3320
        %v3466 = vpop.f32.mrb[0].mxu0
        %v3467 = vadd.f32 0.0, %v3466
        %v3468 = vpop.f32.mrb[0].mxu0
        %v3469 = vpop.f32.mrb[0].mxu0
        %v3470 = vadd.f32 0.0, %v3469
        %v3471 = vpop.f32.mrb[0].mxu0
        %3472 = vmatprep.mubr.bf16.mxu0 %v3323
        %3473 = vmatmul.mubr.bf16.gmra.mrb[0].mxu0 %v3322
        %v3474 = vpop.f32.mrb[0].mxu0
        %v3475 = vadd.f32 0.0, %v3474
        %v3476 = vpop.f32.mrb[0].mxu0
        %v3477 = vpop.f32.mrb[0].mxu0
        %v3478 = vadd.f32 0.0, %v3477
        %v3479 = vpop.f32.mrb[0].mxu0
        %3480 = vmatprep.mubr.bf16.mxu0 %v3325
        %3481 = vmatmul.mubr.bf16.gmra.mrb[0].mxu0 %v3324
        %v3482 = vpop.f32.mrb[0].mxu0
        %v3483 = vadd.f32 0.0, %v3482
        %v3484 = vpop.f32.mrb[0].mxu0
        %v3485 = vpop.f32.mrb[0].mxu0
        %v3486 = vadd.f32 0.0, %v3485
        %v3487 = vpop.f32.mrb[0].mxu0
        %3488 = vmatprep.mubr.bf16.mxu0 %v3327
        %3489 = vmatmul.mubr.bf16.gmra.mrb[0].mxu0 %v3326
        %v3490 = vpop.f32.mrb[0].mxu0
        %v3491 = vadd.f32 0.0, %v3490
        %v3492 = vpop.f32.mrb[0].mxu0
        %v3493 = vpop.f32.mrb[0].mxu0
        %v3494 = vadd.f32 0.0, %v3493
        %v3495 = vpop.f32.mrb[0].mxu0
        %3496 = vdwg.mxu0
        %v3497 = vadd.f32 %v3207, %v3467
        %v3498 = vadd.f32 %v3208, %v3470
        %v3499 = vadd.f32 %v3209, %v3475
        %v3500 = vadd.f32 %v3210, %v3478
        %v3501 = vadd.f32 %v3211, %v3483
        %v3502 = vadd.f32 %v3212, %v3486
        %v3503 = vadd.f32 %v3213, %v3491
        %v3504 = vadd.f32 %v3214, %v3494
        %v3505 = vld [vmem:[%s3] sm:$0x1]
        %v3507 = vlaneseq
        %v3508 = vshrl.u32 %v3507, 7
        %v3509 = vsub.s32 0, %v3508
        %v3510 = vrot.slane %v3505, %v3509
        %v3512 = vadd.f32 %v3497, %v3510
        %v3513 = vadd.f32 %v3498, %v3510
        %v3514 = vadd.f32 %v3499, %v3510
        %v3515 = vadd.f32 %v3500, %v3510
        %v3516 = vadd.f32 %v3501, %v3510
        %v3517 = vadd.f32 %v3502, %v3510
        %v3518 = vadd.f32 %v3503, %v3510
        %v3519 = vadd.f32 %v3504, %v3510
        %v3520 = vmax.f32 %v3512, 0.0
        %v3521 = vmax.f32 %v3513, 0.0
        %v3522 = vmax.f32 %v3514, 0.0
        %v3523 = vmax.f32 %v3515, 0.0
        %v3524 = vmax.f32 %v3516, 0.0
        %v3525 = vmax.f32 %v3517, 0.0
        %v3526 = vmax.f32 %v3518, 0.0
        %v3527 = vmax.f32 %v3519, 0.0
        %v3528 = vpack.c.bf16 %v3521, %v3520
        %v3529 = vpack.c.bf16 %v3523, %v3522
        %v3530 = vpack.c.bf16 %v3525, %v3524
        %v3531 = vpack.c.bf16 %v3527, %v3526
        %v3532 = vld [vmem:[%s4] sm:$0xf]
        %v3533 = vld [vmem:[%s4 + $0x4] sm:$0xf]
        %v3534 = vld [vmem:[%s4 + $0x8] sm:$0xf]
        %v3535 = vld [vmem:[%s4 + $0xc] sm:$0xf]
        %v3536 = vld [vmem:[%s4 + $0x10] sm:$0xf]
        %v3537 = vld [vmem:[%s4 + $0x14] sm:$0xf]
        %v3538 = vld [vmem:[%s4 + $0x18] sm:$0xf]
        %v3539 = vld [vmem:[%s4 + $0x1c] sm:$0xf]
        %v3540 = vld [vmem:[%s4 + $0x20] sm:$0xf]
        %v3541 = vld [vmem:[%s4 + $0x24] sm:$0xf]
        %v3542 = vld [vmem:[%s4 + $0x28] sm:$0xf]
        %v3543 = vld [vmem:[%s4 + $0x2c] sm:$0xf]
        %v3544 = vld [vmem:[%s4 + $0x30] sm:$0xf]
        %v3545 = vld [vmem:[%s4 + $0x34] sm:$0xf]
        %v3546 = vld [vmem:[%s4 + $0x38] sm:$0xf]
        %v3547 = vld [vmem:[%s4 + $0x3c] sm:$0xf]
        %s3548 = sld [smem:[#allocation3]]
        %v3549 = vstv %s3548
        %v3566 = vunpack.c.l.b16 %v3532
        %v3567 = vunpack.c.l.b16 %v3533
        %v3568 = vunpack.c.l.b16 %v3534
        %v3569 = vunpack.c.l.b16 %v3535
        %v3570 = vunpack.c.l.b16 %v3536
        %v3571 = vunpack.c.l.b16 %v3537
        %v3572 = vunpack.c.l.b16 %v3538
        %v3573 = vunpack.c.l.b16 %v3539
        %v3574 = vunpack.c.l.b16 %v3540
        %v3575 = vunpack.c.l.b16 %v3541
        %v3576 = vunpack.c.l.b16 %v3542
        %v3577 = vunpack.c.l.b16 %v3543
        %v3578 = vunpack.c.l.b16 %v3544
        %v3579 = vunpack.c.l.b16 %v3545
        %v3580 = vunpack.c.l.b16 %v3546
        %v3581 = vunpack.c.l.b16 %v3547
        %v3582 = vpack.c.b16 %v3567, %v3566
        %v3583 = vpack.c.b16 %v3569, %v3568
        %v3584 = vpack.c.b16 %v3571, %v3570
        %v3585 = vpack.c.b16 %v3573, %v3572
        %v3586 = vpack.c.b16 %v3575, %v3574
        %v3587 = vpack.c.b16 %v3577, %v3576
        %v3588 = vpack.c.b16 %v3579, %v3578
        %v3589 = vpack.c.b16 %v3581, %v3580
        %3598 = vmatprep.subr.bf16.mxu0 0
        %3599 = vmatpush1.bf16.msra.mxu0 %v3582
        %3600 = vmatprep.subr.bf16.mxu0 0
        %3601 = vmatpush1.bf16.msra.mxu0 %v3583
        %3602 = vmatprep.subr.bf16.mxu0 0
        %3603 = vmatpush1.bf16.msra.mxu0 %v3584
        %3604 = vmatprep.subr.bf16.mxu0 0
        %3605 = vmatpush1.bf16.msra.mxu0 %v3585
        %3606 = vmatprep.subr.bf16.mxu0 0
        %3607 = vmatpush1.bf16.msra.mxu0 %v3586
        %3608 = vmatprep.subr.bf16.mxu0 0
        %3609 = vmatpush1.bf16.msra.mxu0 %v3587
        %3610 = vmatprep.subr.bf16.mxu0 0
        %3611 = vmatpush1.bf16.msra.mxu0 %v3588
        %3612 = vmatprep.subr.bf16.mxu0 0
        %3613 = vmatpush1.bf16.msra.mxu0 %v3589
        %3614 = vmatprep.subr.bf16.mxu0 0
        %3615 = vmatpush1.bf16.msra.mxu0 0
        %3616 = vmatprep.subr.bf16.mxu0 0
        %3617 = vmatpush1.bf16.msra.mxu0 0
        %3618 = vmatprep.subr.bf16.mxu0 0
        %3619 = vmatpush1.bf16.msra.mxu0 0
        %3620 = vmatprep.subr.bf16.mxu0 0
        %3621 = vmatpush1.bf16.msra.mxu0 0
        %3622 = vmatprep.subr.bf16.mxu0 0
        %3623 = vmatpush1.bf16.msra.mxu0 0
        %3624 = vmatprep.subr.bf16.mxu0 0
        %3625 = vmatpush1.bf16.msra.mxu0 0
        %3626 = vmatprep.subr.bf16.mxu0 0
        %3627 = vmatpush1.bf16.msra.mxu0 0
        %3628 = vmatprep.subr.bf16.mxu0 0
        %3629 = vmatpush1.bf16.msra.mxu0 0
        %3630 = vmatprep.mubr.bf16.mxu0 0
        %3631 = vmatmul.mubr.bf16.gmra.mrb[0].mxu0 %v3528
        %v3632 = vpop.f32.mrb[0].mxu0
        %v3633 = vadd.f32 %v3549, %v3632
        %v3634 = vpop.f32.mrb[0].mxu0
        %v3635 = vpop.f32.mrb[0].mxu0
        %v3636 = vadd.f32 %v3549, %v3635
        %v3637 = vpop.f32.mrb[0].mxu0
        %3638 = vmatprep.mubr.bf16.mxu0 0
        %3639 = vmatmul.mubr.bf16.gmra.mrb[0].mxu0 %v3529
        %v3640 = vpop.f32.mrb[0].mxu0
        %v3641 = vadd.f32 %v3549, %v3640
        %v3642 = vpop.f32.mrb[0].mxu0
        %v3643 = vpop.f32.mrb[0].mxu0
        %v3644 = vadd.f32 %v3549, %v3643
        %v3645 = vpop.f32.mrb[0].mxu0
        %3646 = vmatprep.mubr.bf16.mxu0 0
        %3647 = vmatmul.mubr.bf16.gmra.mrb[0].mxu0 %v3530
        %v3648 = vpop.f32.mrb[0].mxu0
        %v3649 = vadd.f32 %v3549, %v3648
        %v3650 = vpop.f32.mrb[0].mxu0
        %v3651 = vpop.f32.mrb[0].mxu0
        %v3652 = vadd.f32 %v3549, %v3651
        %v3653 = vpop.f32.mrb[0].mxu0
        %3654 = vmatprep.mubr.bf16.mxu0 0
        %3655 = vmatmul.mubr.bf16.gmra.mrb[0].mxu0 %v3531
        %v3656 = vpop.f32.mrb[0].mxu0
        %v3657 = vadd.f32 %v3549, %v3656
        %v3658 = vpop.f32.mrb[0].mxu0
        %v3659 = vpop.f32.mrb[0].mxu0
        %v3660 = vadd.f32 %v3549, %v3659
        %v3661 = vpop.f32.mrb[0].mxu0
        %3662 = vdwg.mxu0
        %v3663 = vxor.u32 %v3633, 2147483648
        %v3664 = vxor.u32 %v3636, 2147483648
        %v3665 = vxor.u32 %v3641, 2147483648
        %v3666 = vxor.u32 %v3644, 2147483648
        %v3667 = vxor.u32 %v3649, 2147483648
        %v3668 = vxor.u32 %v3652, 2147483648
        %v3669 = vxor.u32 %v3657, 2147483648
        %v3670 = vxor.u32 %v3660, 2147483648
        %v3671 = vmul.f32 %v3663, 1.442695
        %v3672 = vpow.pop %v3671
        %v3673 = vmul.f32 %v3664, 1.442695
        %v3674 = vpow.pop %v3673
        %v3675 = vmul.f32 %v3665, 1.442695
        %v3676 = vpow.pop %v3675
        %v3677 = vmul.f32 %v3666, 1.442695
        %v3678 = vpow.pop %v3677
        %v3679 = vmul.f32 %v3667, 1.442695
        %v3680 = vpow.pop %v3679
        %v3681 = vmul.f32 %v3668, 1.442695
        %v3682 = vpow.pop %v3681
        %v3683 = vmul.f32 %v3669, 1.442695
        %v3684 = vpow.pop %v3683
        %v3685 = vmul.f32 %v3670, 1.442695
        %v3686 = vpow.pop %v3685
        %v3687 = vadd.f32 %v3672, 1.0
        %v3688 = vadd.f32 %v3674, 1.0
        %v3689 = vadd.f32 %v3676, 1.0
        %v3690 = vadd.f32 %v3678, 1.0
        %v3691 = vadd.f32 %v3680, 1.0
        %v3692 = vadd.f32 %v3682, 1.0
        %v3693 = vadd.f32 %v3684, 1.0
        %v3694 = vadd.f32 %v3686, 1.0
        %v3695 = vrcp.pop %v3687
        %v3696 = vmul.f32 1.0, %v3695
        %v3697 = vrcp.pop %v3688
        %v3698 = vmul.f32 1.0, %v3697
        %v3699 = vrcp.pop %v3689
        %v3700 = vmul.f32 1.0, %v3699
        %v3701 = vrcp.pop %v3690
        %v3702 = vmul.f32 1.0, %v3701
        %v3703 = vrcp.pop %v3691
        %v3704 = vmul.f32 1.0, %v3703
        %v3705 = vrcp.pop %v3692
        %v3706 = vmul.f32 1.0, %v3705
        %v3707 = vrcp.pop %v3693
        %v3708 = vmul.f32 1.0, %v3707
        %v3709 = vrcp.pop %v3694
        %v3710 = vmul.f32 1.0, %v3709
        %v3711 = vld [vmem:[%s470] sm:$0xf]
        %v3712 = vld [vmem:[%s470 + $0x4] sm:$0xf]
        %v3713 = vld [vmem:[%s470 + $0x8] sm:$0xf]
        %v3714 = vld [vmem:[%s470 + $0xc] sm:$0xf]
        %v3715 = vld [vmem:[%s470 + $0x10] sm:$0xf]
        %v3716 = vld [vmem:[%s470 + $0x14] sm:$0xf]
        %v3717 = vld [vmem:[%s470 + $0x18] sm:$0xf]
        %v3718 = vld [vmem:[%s470 + $0x1c] sm:$0xf]
        %v3719 = vunpack.c.l.bf16 %v3711
        %v3720 = vunpack.c.l.bf16 %v3712
        %v3721 = vunpack.c.l.bf16 %v3713
        %v3722 = vunpack.c.l.bf16 %v3714
        %v3723 = vunpack.c.l.bf16 %v3715
        %v3724 = vunpack.c.l.bf16 %v3716
        %v3725 = vunpack.c.l.bf16 %v3717
        %v3726 = vunpack.c.l.bf16 %v3718
        %v3727 = vld [vmem:[%s475] sm:$0xf]
        %v3728 = vld [vmem:[%s475 + $0x4] sm:$0xf]
        %v3729 = vld [vmem:[%s475 + $0x8] sm:$0xf]
        %v3730 = vld [vmem:[%s475 + $0xc] sm:$0xf]
        %v3731 = vld [vmem:[%s475 + $0x10] sm:$0xf]
        %v3732 = vld [vmem:[%s475 + $0x14] sm:$0xf]
        %v3733 = vld [vmem:[%s475 + $0x18] sm:$0xf]
        %v3734 = vld [vmem:[%s475 + $0x1c] sm:$0xf]
        %v3735 = vunpack.c.l.bf16 %v3727
        %v3736 = vunpack.c.l.bf16 %v3728
        %v3737 = vunpack.c.l.bf16 %v3729
        %v3738 = vunpack.c.l.bf16 %v3730
        %v3739 = vunpack.c.l.bf16 %v3731
        %v3740 = vunpack.c.l.bf16 %v3732
        %v3741 = vunpack.c.l.bf16 %v3733
        %v3742 = vunpack.c.l.bf16 %v3734
        %3744 = vset.pattern.permute.xlu0 0
        %3745 = vperm.xlu0 %3744, %v3696
        %v3746 = vpop.permute.xlu0 %3745
        %3749 = vset.pattern.permute.xlu0 0
        %3750 = vperm.xlu0 %3749, %v3698
        %v3751 = vpop.permute.xlu0 %3750
        %3754 = vset.pattern.permute.xlu0 0
        %3755 = vperm.xlu0 %3754, %v3700
        %v3756 = vpop.permute.xlu0 %3755
        %3759 = vset.pattern.permute.xlu0 0
        %3760 = vperm.xlu0 %3759, %v3702
        %v3761 = vpop.permute.xlu0 %3760
        %3764 = vset.pattern.permute.xlu0 0
        %3765 = vperm.xlu0 %3764, %v3704
        %v3766 = vpop.permute.xlu0 %3765
        %3769 = vset.pattern.permute.xlu0 0
        %3770 = vperm.xlu0 %3769, %v3706
        %v3771 = vpop.permute.xlu0 %3770
        %3774 = vset.pattern.permute.xlu0 0
        %3775 = vperm.xlu0 %3774, %v3708
        %v3776 = vpop.permute.xlu0 %3775
        %3779 = vset.pattern.permute.xlu0 0
        %3780 = vperm.xlu0 %3779, %v3710
        %v3781 = vpop.permute.xlu0 %3780
        %v3783 = vmul.f32 %v3735, %v3746
        %v3784 = vmul.f32 %v3736, %v3751
        %v3785 = vmul.f32 %v3737, %v3756
        %v3786 = vmul.f32 %v3738, %v3761
        %v3787 = vmul.f32 %v3739, %v3766
        %v3788 = vmul.f32 %v3740, %v3771
        %v3789 = vmul.f32 %v3741, %v3776
        %v3790 = vmul.f32 %v3742, %v3781
        %v3791 = vadd.f32 %v3719, %v3783
        %v3792 = vadd.f32 %v3720, %v3784
        %v3793 = vadd.f32 %v3721, %v3785
        %v3794 = vadd.f32 %v3722, %v3786
        %v3795 = vadd.f32 %v3723, %v3787
        %v3796 = vadd.f32 %v3724, %v3788
        %v3797 = vadd.f32 %v3725, %v3789
        %v3798 = vadd.f32 %v3726, %v3790
        %v3799 = vadd.f32 %v3791, %v3792
        %v3800 = vadd.f32 %v3799, %v3793
        %v3801 = vadd.f32 %v3800, %v3794
        %v3802 = vadd.f32 %v3801, %v3795
        %v3803 = vadd.f32 %v3802, %v3796
        %v3804 = vadd.f32 %v3803, %v3797
        %v3805 = vadd.f32 %v3804, %v3798
        %v3806 = vrot.slane %v3805, 4
        %v3807 = vadd.f32 %v3805, %v3806
        %v3808 = vrot.slane %v3807, 2
        %v3809 = vadd.f32 %v3807, %v3808
        %v3810 = vrot.slane %v3809, 1
        %v3811 = vadd.f32 %v3809, %v3810
        %v3812 = vrcp.pop 64.0
        %v3813 = vmul.f32 %v3811, %v3812
        %v3814 = vpack.c.bf16 %v3813, %v3813
        %v3815 = vld [vmem:[#allocation7] sm:$0xff]
        %v3816 = vld [vmem:[#allocation7 + $0x8] sm:$0xff]
        %v3817 = vld [vmem:[#allocation7 + $0x10] sm:$0xff]
        %v3818 = vld [vmem:[#allocation7 + $0x18] sm:$0xff]
        %v3819 = vld [vmem:[#allocation7 + $0x20] sm:$0xff]
        %v3820 = vld [vmem:[#allocation7 + $0x28] sm:$0xff]
        %v3821 = vld [vmem:[#allocation7 + $0x30] sm:$0xff]
        %v3822 = vld [vmem:[#allocation7 + $0x38] sm:$0xff]
        %v3823 = vld [vmem:[#allocation7 + $0x40] sm:$0xff]
        %v3824 = vld [vmem:[#allocation7 + $0x48] sm:$0xff]
        %v3825 = vld [vmem:[#allocation7 + $0x50] sm:$0xff]
        %v3826 = vld [vmem:[#allocation7 + $0x58] sm:$0xff]
        %v3827 = vld [vmem:[#allocation7 + $0x60] sm:$0xff]
        %v3828 = vld [vmem:[#allocation7 + $0x68] sm:$0xff]
        %v3829 = vld [vmem:[#allocation7 + $0x70] sm:$0xff]
        %v3830 = vld [vmem:[#allocation7 + $0x78] sm:$0xff]
        %v3831 = vld [vmem:[#allocation7 + $0x80] sm:$0xff]
        %v3832 = vld [vmem:[#allocation7 + $0x88] sm:$0xff]
        %v3833 = vld [vmem:[#allocation7 + $0x90] sm:$0xff]
        %v3834 = vld [vmem:[#allocation7 + $0x98] sm:$0xff]
        %v3835 = vld [vmem:[#allocation7 + $0xa0] sm:$0xff]
        %v3836 = vld [vmem:[#allocation7 + $0xa8] sm:$0xff]
        %v3837 = vld [vmem:[#allocation7 + $0xb0] sm:$0xff]
        %v3838 = vld [vmem:[#allocation7 + $0xb8] sm:$0xff]
        %v3839 = vld [vmem:[#allocation7 + $0xc0] sm:$0xff]
        %v3840 = vld [vmem:[#allocation7 + $0xc8] sm:$0xff]
        %v3841 = vld [vmem:[#allocation7 + $0xd0] sm:$0xff]
        %v3842 = vld [vmem:[#allocation7 + $0xd8] sm:$0xff]
        %v3843 = vld [vmem:[#allocation7 + $0xe0] sm:$0xff]
        %v3844 = vld [vmem:[#allocation7 + $0xe8] sm:$0xff]
        %v3845 = vld [vmem:[#allocation7 + $0xf0] sm:$0xff]
        %v3846 = vld [vmem:[#allocation7 + $0xf8] sm:$0xff]
        %v3847 = vld [vmem:[%s7] sm:$0xf]
        %v3880 = vunpack.c.l.b16 %v3815
        %v3881 = vunpack.c.h.b16 %v3815
        %v3882 = vunpack.c.l.b16 %v3816
        %v3883 = vunpack.c.h.b16 %v3816
        %v3884 = vunpack.c.l.b16 %v3817
        %v3885 = vunpack.c.h.b16 %v3817
        %v3886 = vunpack.c.l.b16 %v3818
        %v3887 = vunpack.c.h.b16 %v3818
        %v3888 = vunpack.c.l.b16 %v3819
        %v3889 = vunpack.c.h.b16 %v3819
        %v3890 = vunpack.c.l.b16 %v3820
        %v3891 = vunpack.c.h.b16 %v3820
        %v3892 = vunpack.c.l.b16 %v3821
        %v3893 = vunpack.c.h.b16 %v3821
        %v3894 = vunpack.c.l.b16 %v3822
        %v3895 = vunpack.c.h.b16 %v3822
        %v3896 = vunpack.c.l.b16 %v3823
        %v3897 = vunpack.c.h.b16 %v3823
        %v3898 = vunpack.c.l.b16 %v3824
        %v3899 = vunpack.c.h.b16 %v3824
        %v3900 = vunpack.c.l.b16 %v3825
        %v3901 = vunpack.c.h.b16 %v3825
        %v3902 = vunpack.c.l.b16 %v3826
        %v3903 = vunpack.c.h.b16 %v3826
        %v3904 = vunpack.c.l.b16 %v3827
        %v3905 = vunpack.c.h.b16 %v3827
        %v3906 = vunpack.c.l.b16 %v3828
        %v3907 = vunpack.c.h.b16 %v3828
        %v3908 = vunpack.c.l.b16 %v3829
        %v3909 = vunpack.c.h.b16 %v3829
        %v3910 = vunpack.c.l.b16 %v3830
        %v3911 = vunpack.c.h.b16 %v3830
        %v3912 = vunpack.c.l.b16 %v3831
        %v3913 = vunpack.c.h.b16 %v3831
        %v3914 = vunpack.c.l.b16 %v3832
        %v3915 = vunpack.c.h.b16 %v3832
        %v3916 = vunpack.c.l.b16 %v3833
        %v3917 = vunpack.c.h.b16 %v3833
        %v3918 = vunpack.c.l.b16 %v3834
        %v3919 = vunpack.c.h.b16 %v3834
        %v3920 = vunpack.c.l.b16 %v3835
        %v3921 = vunpack.c.h.b16 %v3835
        %v3922 = vunpack.c.l.b16 %v3836
        %v3923 = vunpack.c.h.b16 %v3836
        %v3924 = vunpack.c.l.b16 %v3837
        %v3925 = vunpack.c.h.b16 %v3837
        %v3926 = vunpack.c.l.b16 %v3838
        %v3927 = vunpack.c.h.b16 %v3838
        %v3928 = vunpack.c.l.b16 %v3839
        %v3929 = vunpack.c.h.b16 %v3839
        %v3930 = vunpack.c.l.b16 %v3840
        %v3931 = vunpack.c.h.b16 %v3840
        %v3932 = vunpack.c.l.b16 %v3841
        %v3933 = vunpack.c.h.b16 %v3841
        %v3934 = vunpack.c.l.b16 %v3842
        %v3935 = vunpack.c.h.b16 %v3842
        %v3936 = vunpack.c.l.b16 %v3843
        %v3937 = vunpack.c.h.b16 %v3843
        %v3938 = vunpack.c.l.b16 %v3844
        %v3939 = vunpack.c.h.b16 %v3844
        %v3940 = vunpack.c.l.b16 %v3845
        %v3941 = vunpack.c.h.b16 %v3845
        %v3942 = vunpack.c.l.b16 %v3846
        %v3943 = vunpack.c.h.b16 %v3846
        %v3944 = vpack.c.b16 %v3884, %v3880
        %v3945 = vpack.c.b16 %v3885, %v3881
        %v3946 = vpack.c.b16 %v3886, %v3882
        %v3947 = vpack.c.b16 %v3887, %v3883
        %v3948 = vpack.c.b16 %v3892, %v3888
        %v3949 = vpack.c.b16 %v3893, %v3889
        %v3950 = vpack.c.b16 %v3894, %v3890
        %v3951 = vpack.c.b16 %v3895, %v3891
        %v3952 = vpack.c.b16 %v3900, %v3896
        %v3953 = vpack.c.b16 %v3901, %v3897
        %v3954 = vpack.c.b16 %v3902, %v3898
        %v3955 = vpack.c.b16 %v3903, %v3899
        %v3956 = vpack.c.b16 %v3908, %v3904
        %v3957 = vpack.c.b16 %v3909, %v3905
        %v3958 = vpack.c.b16 %v3910, %v3906
        %v3959 = vpack.c.b16 %v3911, %v3907
        %v3960 = vpack.c.b16 %v3916, %v3912
        %v3961 = vpack.c.b16 %v3917, %v3913
        %v3962 = vpack.c.b16 %v3918, %v3914
        %v3963 = vpack.c.b16 %v3919, %v3915
        %v3964 = vpack.c.b16 %v3924, %v3920
        %v3965 = vpack.c.b16 %v3925, %v3921
        %v3966 = vpack.c.b16 %v3926, %v3922
        %v3967 = vpack.c.b16 %v3927, %v3923
        %v3968 = vpack.c.b16 %v3932, %v3928
        %v3969 = vpack.c.b16 %v3933, %v3929
        %v3970 = vpack.c.b16 %v3934, %v3930
        %v3971 = vpack.c.b16 %v3935, %v3931
        %v3972 = vpack.c.b16 %v3940, %v3936
        %v3973 = vpack.c.b16 %v3941, %v3937
        %v3974 = vpack.c.b16 %v3942, %v3938
        %v3975 = vpack.c.b16 %v3943, %v3939
        %v4009 = vlaneseq
        %v4010 = vshrl.u32 %v4009, 7
        %v4011 = vsub.s32 0, %v4010
        %v4012 = vrot.slane %v3847, %v4011
        %v4013 = vlaneseq
        %v4014 = vshrl.u32 %v4013, 7
        %v4015 = vsub.s32 1, %v4014
        %v4016 = vrot.slane %v3847, %v4015
        %v4017 = vlaneseq
        %v4018 = vshrl.u32 %v4017, 7
        %v4019 = vsub.s32 2, %v4018
        %v4020 = vrot.slane %v3847, %v4019
        %v4021 = vlaneseq
        %v4022 = vshrl.u32 %v4021, 7
        %v4023 = vsub.s32 3, %v4022
        %v4024 = vrot.slane %v3847, %v4023
        %4029 = vmatprep.subr.bf16.mxu0 %v3945
        %4030 = vmatpush1.bf16.msra.mxu0 %v3944
        %4031 = vmatprep.subr.bf16.mxu0 %v3949
        %4032 = vmatpush1.bf16.msra.mxu0 %v3948
        %4033 = vmatprep.subr.bf16.mxu0 %v3953
        %4034 = vmatpush1.bf16.msra.mxu0 %v3952
        %4035 = vmatprep.subr.bf16.mxu0 %v3957
        %4036 = vmatpush1.bf16.msra.mxu0 %v3956
        %4037 = vmatprep.subr.bf16.mxu0 %v3961
        %4038 = vmatpush1.bf16.msra.mxu0 %v3960
        %4039 = vmatprep.subr.bf16.mxu0 %v3965
        %4040 = vmatpush1.bf16.msra.mxu0 %v3964
        %4041 = vmatprep.subr.bf16.mxu0 %v3969
        %4042 = vmatpush1.bf16.msra.mxu0 %v3968
        %4043 = vmatprep.subr.bf16.mxu0 %v3973
        %4044 = vmatpush1.bf16.msra.mxu0 %v3972
        %4045 = vmatprep.subr.bf16.mxu0 0
        %4046 = vmatpush1.bf16.msra.mxu0 0
        %4047 = vmatprep.subr.bf16.mxu0 0
        %4048 = vmatpush1.bf16.msra.mxu0 0
        %4049 = vmatprep.subr.bf16.mxu0 0
        %4050 = vmatpush1.bf16.msra.mxu0 0
        %4051 = vmatprep.subr.bf16.mxu0 0
        %4052 = vmatpush1.bf16.msra.mxu0 0
        %4053 = vmatprep.subr.bf16.mxu0 0
        %4054 = vmatpush1.bf16.msra.mxu0 0
        %4055 = vmatprep.subr.bf16.mxu0 0
        %4056 = vmatpush1.bf16.msra.mxu0 0
        %4057 = vmatprep.subr.bf16.mxu0 0
        %4058 = vmatpush1.bf16.msra.mxu0 0
        %4059 = vmatprep.subr.bf16.mxu0 0
        %4060 = vmatpush1.bf16.msra.mxu0 0
        %4061 = vmatprep.mubr.bf16.mxu0 0
        %4062 = vmatmul.mubr.bf16.gmra.mrb[0].mxu0 %v3814
        %v4063 = vpop.f32.mrb[0].mxu0
        %v4064 = vadd.f32 %v4012, %v4063
        %v4065 = vpop.f32.mrb[0].mxu0
        %v4066 = vadd.f32 %v4016, %v4065
        %v4067 = vpop.f32.mrb[0].mxu0
        %v4068 = vpop.f32.mrb[0].mxu0
        %4069 = vdwg.mxu0
        %4070 = vmatprep.subr.bf16.mxu0 %v3947
        %4071 = vmatpush1.bf16.msra.mxu0 %v3946
        %4072 = vmatprep.subr.bf16.mxu0 %v3951
        %4073 = vmatpush1.bf16.msra.mxu0 %v3950
        %4074 = vmatprep.subr.bf16.mxu0 %v3955
        %4075 = vmatpush1.bf16.msra.mxu0 %v3954
        %4076 = vmatprep.subr.bf16.mxu0 %v3959
        %4077 = vmatpush1.bf16.msra.mxu0 %v3958
        %4078 = vmatprep.subr.bf16.mxu0 %v3963
        %4079 = vmatpush1.bf16.msra.mxu0 %v3962
        %4080 = vmatprep.subr.bf16.mxu0 %v3967
        %4081 = vmatpush1.bf16.msra.mxu0 %v3966
        %4082 = vmatprep.subr.bf16.mxu0 %v3971
        %4083 = vmatpush1.bf16.msra.mxu0 %v3970
        %4084 = vmatprep.subr.bf16.mxu0 %v3975
        %4085 = vmatpush1.bf16.msra.mxu0 %v3974
        %4086 = vmatprep.subr.bf16.mxu0 0
        %4087 = vmatpush1.bf16.msra.mxu0 0
        %4088 = vmatprep.subr.bf16.mxu0 0
        %4089 = vmatpush1.bf16.msra.mxu0 0
        %4090 = vmatprep.subr.bf16.mxu0 0
        %4091 = vmatpush1.bf16.msra.mxu0 0
        %4092 = vmatprep.subr.bf16.mxu0 0
        %4093 = vmatpush1.bf16.msra.mxu0 0
        %4094 = vmatprep.subr.bf16.mxu0 0
        %4095 = vmatpush1.bf16.msra.mxu0 0
        %4096 = vmatprep.subr.bf16.mxu0 0
        %4097 = vmatpush1.bf16.msra.mxu0 0
        %4098 = vmatprep.subr.bf16.mxu0 0
        %4099 = vmatpush1.bf16.msra.mxu0 0
        %4100 = vmatprep.subr.bf16.mxu0 0
        %4101 = vmatpush1.bf16.msra.mxu0 0
        %4102 = vmatprep.mubr.bf16.mxu0 0
        %4103 = vmatmul.mubr.bf16.gmra.mrb[0].mxu0 %v3814
        %v4104 = vpop.f32.mrb[0].mxu0
        %v4105 = vadd.f32 %v4020, %v4104
        %v4106 = vpop.f32.mrb[0].mxu0
        %v4107 = vadd.f32 %v4024, %v4106
        %v4108 = vpop.f32.mrb[0].mxu0
        %v4109 = vpop.f32.mrb[0].mxu0
        %4110 = vdwg.mxu0
        %v4111 = vmax.f32 %v4064, 0.0
        %v4112 = vmax.f32 %v4066, 0.0
        %v4113 = vmax.f32 %v4105, 0.0
        %v4114 = vmax.f32 %v4107, 0.0
        %v4115 = vpack.c.bf16 %v4111, %v4111
        %v4116 = vpack.c.bf16 %v4112, %v4112
        %v4117 = vpack.c.bf16 %v4113, %v4113
        %v4118 = vpack.c.bf16 %v4114, %v4114
        %v4119 = vld [vmem:[#allocation9] sm:$0xff]
        %v4120 = vld [vmem:[#allocation9 + $0x8] sm:$0xff]
        %v4121 = vld [vmem:[#allocation9 + $0x10] sm:$0xff]
        %v4122 = vld [vmem:[#allocation9 + $0x18] sm:$0xff]
        %v4123 = vld [vmem:[#allocation9 + $0x20] sm:$0xff]
        %v4124 = vld [vmem:[#allocation9 + $0x28] sm:$0xff]
        %v4125 = vld [vmem:[#allocation9 + $0x30] sm:$0xff]
        %v4126 = vld [vmem:[#allocation9 + $0x38] sm:$0xff]
        %v4127 = vld [vmem:[#allocation9 + $0x40] sm:$0xff]
        %v4128 = vld [vmem:[#allocation9 + $0x48] sm:$0xff]
        %v4129 = vld [vmem:[#allocation9 + $0x50] sm:$0xff]
        %v4130 = vld [vmem:[#allocation9 + $0x58] sm:$0xff]
        %v4131 = vld [vmem:[#allocation9 + $0x60] sm:$0xff]
        %v4132 = vld [vmem:[#allocation9 + $0x68] sm:$0xff]
        %v4133 = vld [vmem:[#allocation9 + $0x70] sm:$0xff]
        %v4134 = vld [vmem:[#allocation9 + $0x78] sm:$0xff]
        %v4135 = vld [vmem:[#allocation9 + $0x80] sm:$0xff]
        %v4136 = vld [vmem:[#allocation9 + $0x88] sm:$0xff]
        %v4137 = vld [vmem:[#allocation9 + $0x90] sm:$0xff]
        %v4138 = vld [vmem:[#allocation9 + $0x98] sm:$0xff]
        %v4139 = vld [vmem:[#allocation9 + $0xa0] sm:$0xff]
        %v4140 = vld [vmem:[#allocation9 + $0xa8] sm:$0xff]
        %v4141 = vld [vmem:[#allocation9 + $0xb0] sm:$0xff]
        %v4142 = vld [vmem:[#allocation9 + $0xb8] sm:$0xff]
        %v4143 = vld [vmem:[#allocation9 + $0xc0] sm:$0xff]
        %v4144 = vld [vmem:[#allocation9 + $0xc8] sm:$0xff]
        %v4145 = vld [vmem:[#allocation9 + $0xd0] sm:$0xff]
        %v4146 = vld [vmem:[#allocation9 + $0xd8] sm:$0xff]
        %v4147 = vld [vmem:[#allocation9 + $0xe0] sm:$0xff]
        %v4148 = vld [vmem:[#allocation9 + $0xe8] sm:$0xff]
        %v4149 = vld [vmem:[#allocation9 + $0xf0] sm:$0xff]
        %v4150 = vld [vmem:[#allocation9 + $0xf8] sm:$0xff]
        %v4151 = vld [vmem:[#allocation9 + $0x100] sm:$0xff]
        %v4152 = vld [vmem:[#allocation9 + $0x108] sm:$0xff]
        %v4153 = vld [vmem:[#allocation9 + $0x110] sm:$0xff]
        %v4154 = vld [vmem:[#allocation9 + $0x118] sm:$0xff]
        %v4155 = vld [vmem:[#allocation9 + $0x120] sm:$0xff]
        %v4156 = vld [vmem:[#allocation9 + $0x128] sm:$0xff]
        %v4157 = vld [vmem:[#allocation9 + $0x130] sm:$0xff]
        %v4158 = vld [vmem:[#allocation9 + $0x138] sm:$0xff]
        %v4159 = vld [vmem:[#allocation9 + $0x140] sm:$0xff]
        %v4160 = vld [vmem:[#allocation9 + $0x148] sm:$0xff]
        %v4161 = vld [vmem:[#allocation9 + $0x150] sm:$0xff]
        %v4162 = vld [vmem:[#allocation9 + $0x158] sm:$0xff]
        %v4163 = vld [vmem:[#allocation9 + $0x160] sm:$0xff]
        %v4164 = vld [vmem:[#allocation9 + $0x168] sm:$0xff]
        %v4165 = vld [vmem:[#allocation9 + $0x170] sm:$0xff]
        %v4166 = vld [vmem:[#allocation9 + $0x178] sm:$0xff]
        %v4167 = vld [vmem:[#allocation9 + $0x180] sm:$0xff]
        %v4168 = vld [vmem:[#allocation9 + $0x188] sm:$0xff]
        %v4169 = vld [vmem:[#allocation9 + $0x190] sm:$0xff]
        %v4170 = vld [vmem:[#allocation9 + $0x198] sm:$0xff]
        %v4171 = vld [vmem:[#allocation9 + $0x1a0] sm:$0xff]
        %v4172 = vld [vmem:[#allocation9 + $0x1a8] sm:$0xff]
        %v4173 = vld [vmem:[#allocation9 + $0x1b0] sm:$0xff]
        %v4174 = vld [vmem:[#allocation9 + $0x1b8] sm:$0xff]
        %v4175 = vld [vmem:[#allocation9 + $0x1c0] sm:$0xff]
        %v4176 = vld [vmem:[#allocation9 + $0x1c8] sm:$0xff]
        %v4177 = vld [vmem:[#allocation9 + $0x1d0] sm:$0xff]
        %v4178 = vld [vmem:[#allocation9 + $0x1d8] sm:$0xff]
        %v4179 = vld [vmem:[#allocation9 + $0x1e0] sm:$0xff]
        %v4180 = vld [vmem:[#allocation9 + $0x1e8] sm:$0xff]
        %v4181 = vld [vmem:[#allocation9 + $0x1f0] sm:$0xff]
        %v4182 = vld [vmem:[#allocation9 + $0x1f8] sm:$0xff]
        %v4183 = vld [vmem:[%s9] sm:$0x3]
        %v4248 = vunpack.c.l.b16 %v4119
        %v4249 = vunpack.c.h.b16 %v4119
        %v4250 = vunpack.c.l.b16 %v4120
        %v4251 = vunpack.c.h.b16 %v4120
        %v4252 = vunpack.c.l.b16 %v4121
        %v4253 = vunpack.c.h.b16 %v4121
        %v4254 = vunpack.c.l.b16 %v4122
        %v4255 = vunpack.c.h.b16 %v4122
        %v4256 = vunpack.c.l.b16 %v4123
        %v4257 = vunpack.c.h.b16 %v4123
        %v4258 = vunpack.c.l.b16 %v4124
        %v4259 = vunpack.c.h.b16 %v4124
        %v4260 = vunpack.c.l.b16 %v4125
        %v4261 = vunpack.c.h.b16 %v4125
        %v4262 = vunpack.c.l.b16 %v4126
        %v4263 = vunpack.c.h.b16 %v4126
        %v4264 = vunpack.c.l.b16 %v4127
        %v4265 = vunpack.c.h.b16 %v4127
        %v4266 = vunpack.c.l.b16 %v4128
        %v4267 = vunpack.c.h.b16 %v4128
        %v4268 = vunpack.c.l.b16 %v4129
        %v4269 = vunpack.c.h.b16 %v4129
        %v4270 = vunpack.c.l.b16 %v4130
        %v4271 = vunpack.c.h.b16 %v4130
        %v4272 = vunpack.c.l.b16 %v4131
        %v4273 = vunpack.c.h.b16 %v4131
        %v4274 = vunpack.c.l.b16 %v4132
        %v4275 = vunpack.c.h.b16 %v4132
        %v4276 = vunpack.c.l.b16 %v4133
        %v4277 = vunpack.c.h.b16 %v4133
        %v4278 = vunpack.c.l.b16 %v4134
        %v4279 = vunpack.c.h.b16 %v4134
        %v4280 = vunpack.c.l.b16 %v4135
        %v4281 = vunpack.c.h.b16 %v4135
        %v4282 = vunpack.c.l.b16 %v4136
        %v4283 = vunpack.c.h.b16 %v4136
        %v4284 = vunpack.c.l.b16 %v4137
        %v4285 = vunpack.c.h.b16 %v4137
        %v4286 = vunpack.c.l.b16 %v4138
        %v4287 = vunpack.c.h.b16 %v4138
        %v4288 = vunpack.c.l.b16 %v4139
        %v4289 = vunpack.c.h.b16 %v4139
        %v4290 = vunpack.c.l.b16 %v4140
        %v4291 = vunpack.c.h.b16 %v4140
        %v4292 = vunpack.c.l.b16 %v4141
        %v4293 = vunpack.c.h.b16 %v4141
        %v4294 = vunpack.c.l.b16 %v4142
        %v4295 = vunpack.c.h.b16 %v4142
        %v4296 = vunpack.c.l.b16 %v4143
        %v4297 = vunpack.c.h.b16 %v4143
        %v4298 = vunpack.c.l.b16 %v4144
        %v4299 = vunpack.c.h.b16 %v4144
        %v4300 = vunpack.c.l.b16 %v4145
        %v4301 = vunpack.c.h.b16 %v4145
        %v4302 = vunpack.c.l.b16 %v4146
        %v4303 = vunpack.c.h.b16 %v4146
        %v4304 = vunpack.c.l.b16 %v4147
        %v4305 = vunpack.c.h.b16 %v4147
        %v4306 = vunpack.c.l.b16 %v4148
        %v4307 = vunpack.c.h.b16 %v4148
        %v4308 = vunpack.c.l.b16 %v4149
        %v4309 = vunpack.c.h.b16 %v4149
        %v4310 = vunpack.c.l.b16 %v4150
        %v4311 = vunpack.c.h.b16 %v4150
        %v4312 = vunpack.c.l.b16 %v4151
        %v4313 = vunpack.c.h.b16 %v4151
        %v4314 = vunpack.c.l.b16 %v4152
        %v4315 = vunpack.c.h.b16 %v4152
        %v4316 = vunpack.c.l.b16 %v4153
        %v4317 = vunpack.c.h.b16 %v4153
        %v4318 = vunpack.c.l.b16 %v4154
        %v4319 = vunpack.c.h.b16 %v4154
        %v4320 = vunpack.c.l.b16 %v4155
        %v4321 = vunpack.c.h.b16 %v4155
        %v4322 = vunpack.c.l.b16 %v4156
        %v4323 = vunpack.c.h.b16 %v4156
        %v4324 = vunpack.c.l.b16 %v4157
        %v4325 = vunpack.c.h.b16 %v4157
        %v4326 = vunpack.c.l.b16 %v4158
        %v4327 = vunpack.c.h.b16 %v4158
        %v4328 = vunpack.c.l.b16 %v4159
        %v4329 = vunpack.c.h.b16 %v4159
        %v4330 = vunpack.c.l.b16 %v4160
        %v4331 = vunpack.c.h.b16 %v4160
        %v4332 = vunpack.c.l.b16 %v4161
        %v4333 = vunpack.c.h.b16 %v4161
        %v4334 = vunpack.c.l.b16 %v4162
        %v4335 = vunpack.c.h.b16 %v4162
        %v4336 = vunpack.c.l.b16 %v4163
        %v4337 = vunpack.c.h.b16 %v4163
        %v4338 = vunpack.c.l.b16 %v4164
        %v4339 = vunpack.c.h.b16 %v4164
        %v4340 = vunpack.c.l.b16 %v4165
        %v4341 = vunpack.c.h.b16 %v4165
        %v4342 = vunpack.c.l.b16 %v4166
        %v4343 = vunpack.c.h.b16 %v4166
        %v4344 = vunpack.c.l.b16 %v4167
        %v4345 = vunpack.c.h.b16 %v4167
        %v4346 = vunpack.c.l.b16 %v4168
        %v4347 = vunpack.c.h.b16 %v4168
        %v4348 = vunpack.c.l.b16 %v4169
        %v4349 = vunpack.c.h.b16 %v4169
        %v4350 = vunpack.c.l.b16 %v4170
        %v4351 = vunpack.c.h.b16 %v4170
        %v4352 = vunpack.c.l.b16 %v4171
        %v4353 = vunpack.c.h.b16 %v4171
        %v4354 = vunpack.c.l.b16 %v4172
        %v4355 = vunpack.c.h.b16 %v4172
        %v4356 = vunpack.c.l.b16 %v4173
        %v4357 = vunpack.c.h.b16 %v4173
        %v4358 = vunpack.c.l.b16 %v4174
        %v4359 = vunpack.c.h.b16 %v4174
        %v4360 = vunpack.c.l.b16 %v4175
        %v4361 = vunpack.c.h.b16 %v4175
        %v4362 = vunpack.c.l.b16 %v4176
        %v4363 = vunpack.c.h.b16 %v4176
        %v4364 = vunpack.c.l.b16 %v4177
        %v4365 = vunpack.c.h.b16 %v4177
        %v4366 = vunpack.c.l.b16 %v4178
        %v4367 = vunpack.c.h.b16 %v4178
        %v4368 = vunpack.c.l.b16 %v4179
        %v4369 = vunpack.c.h.b16 %v4179
        %v4370 = vunpack.c.l.b16 %v4180
        %v4371 = vunpack.c.h.b16 %v4180
        %v4372 = vunpack.c.l.b16 %v4181
        %v4373 = vunpack.c.h.b16 %v4181
        %v4374 = vunpack.c.l.b16 %v4182
        %v4375 = vunpack.c.h.b16 %v4182
        %v4376 = vpack.c.b16 %v4250, %v4248
        %v4377 = vpack.c.b16 %v4251, %v4249
        %v4378 = vpack.c.b16 %v4254, %v4252
        %v4379 = vpack.c.b16 %v4255, %v4253
        %v4380 = vpack.c.b16 %v4258, %v4256
        %v4381 = vpack.c.b16 %v4259, %v4257
        %v4382 = vpack.c.b16 %v4262, %v4260
        %v4383 = vpack.c.b16 %v4263, %v4261
        %v4384 = vpack.c.b16 %v4266, %v4264
        %v4385 = vpack.c.b16 %v4267, %v4265
        %v4386 = vpack.c.b16 %v4270, %v4268
        %v4387 = vpack.c.b16 %v4271, %v4269
        %v4388 = vpack.c.b16 %v4274, %v4272
        %v4389 = vpack.c.b16 %v4275, %v4273
        %v4390 = vpack.c.b16 %v4278, %v4276
        %v4391 = vpack.c.b16 %v4279, %v4277
        %v4392 = vpack.c.b16 %v4282, %v4280
        %v4393 = vpack.c.b16 %v4283, %v4281
        %v4394 = vpack.c.b16 %v4286, %v4284
        %v4395 = vpack.c.b16 %v4287, %v4285
        %v4396 = vpack.c.b16 %v4290, %v4288
        %v4397 = vpack.c.b16 %v4291, %v4289
        %v4398 = vpack.c.b16 %v4294, %v4292
        %v4399 = vpack.c.b16 %v4295, %v4293
        %v4400 = vpack.c.b16 %v4298, %v4296
        %v4401 = vpack.c.b16 %v4299, %v4297
        %v4402 = vpack.c.b16 %v4302, %v4300
        %v4403 = vpack.c.b16 %v4303, %v4301
        %v4404 = vpack.c.b16 %v4306, %v4304
        %v4405 = vpack.c.b16 %v4307, %v4305
        %v4406 = vpack.c.b16 %v4310, %v4308
        %v4407 = vpack.c.b16 %v4311, %v4309
        %v4408 = vpack.c.b16 %v4314, %v4312
        %v4409 = vpack.c.b16 %v4315, %v4313
        %v4410 = vpack.c.b16 %v4318, %v4316
        %v4411 = vpack.c.b16 %v4319, %v4317
        %v4412 = vpack.c.b16 %v4322, %v4320
        %v4413 = vpack.c.b16 %v4323, %v4321
        %v4414 = vpack.c.b16 %v4326, %v4324
        %v4415 = vpack.c.b16 %v4327, %v4325
        %v4416 = vpack.c.b16 %v4330, %v4328
        %v4417 = vpack.c.b16 %v4331, %v4329
        %v4418 = vpack.c.b16 %v4334, %v4332
        %v4419 = vpack.c.b16 %v4335, %v4333
        %v4420 = vpack.c.b16 %v4338, %v4336
        %v4421 = vpack.c.b16 %v4339, %v4337
        %v4422 = vpack.c.b16 %v4342, %v4340
        %v4423 = vpack.c.b16 %v4343, %v4341
        %v4424 = vpack.c.b16 %v4346, %v4344
        %v4425 = vpack.c.b16 %v4347, %v4345
        %v4426 = vpack.c.b16 %v4350, %v4348
        %v4427 = vpack.c.b16 %v4351, %v4349
        %v4428 = vpack.c.b16 %v4354, %v4352
        %v4429 = vpack.c.b16 %v4355, %v4353
        %v4430 = vpack.c.b16 %v4358, %v4356
        %v4431 = vpack.c.b16 %v4359, %v4357
        %v4432 = vpack.c.b16 %v4362, %v4360
        %v4433 = vpack.c.b16 %v4363, %v4361
        %v4434 = vpack.c.b16 %v4366, %v4364
        %v4435 = vpack.c.b16 %v4367, %v4365
        %v4436 = vpack.c.b16 %v4370, %v4368
        %v4437 = vpack.c.b16 %v4371, %v4369
        %v4438 = vpack.c.b16 %v4374, %v4372
        %v4439 = vpack.c.b16 %v4375, %v4373
        %v4505 = vlaneseq
        %v4506 = vshrl.u32 %v4505, 7
        %v4507 = vsub.s32 0, %v4506
        %v4508 = vrot.slane %v4183, %v4507
        %v4509 = vlaneseq
        %v4510 = vshrl.u32 %v4509, 7
        %v4511 = vsub.s32 1, %v4510
        %v4512 = vrot.slane %v4183, %v4511
        %4515 = vmatprep.subr.bf16.mxu0 %v4377
        %4516 = vmatpush1.bf16.msra.mxu0 %v4376
        %4517 = vmatprep.subr.bf16.mxu0 %v4379
        %4518 = vmatpush1.bf16.msra.mxu0 %v4378
        %4519 = vmatprep.subr.bf16.mxu0 %v4381
        %4520 = vmatpush1.bf16.msra.mxu0 %v4380
        %4521 = vmatprep.subr.bf16.mxu0 %v4383
        %4522 = vmatpush1.bf16.msra.mxu0 %v4382
        %4523 = vmatprep.subr.bf16.mxu0 %v4385
        %4524 = vmatpush1.bf16.msra.mxu0 %v4384
        %4525 = vmatprep.subr.bf16.mxu0 %v4387
        %4526 = vmatpush1.bf16.msra.mxu0 %v4386
        %4527 = vmatprep.subr.bf16.mxu0 %v4389
        %4528 = vmatpush1.bf16.msra.mxu0 %v4388
        %4529 = vmatprep.subr.bf16.mxu0 %v4391
        %4530 = vmatpush1.bf16.msra.mxu0 %v4390
        %4531 = vmatprep.subr.bf16.mxu0 %v4393
        %4532 = vmatpush1.bf16.msra.mxu0 %v4392
        %4533 = vmatprep.subr.bf16.mxu0 %v4395
        %4534 = vmatpush1.bf16.msra.mxu0 %v4394
        %4535 = vmatprep.subr.bf16.mxu0 %v4397
        %4536 = vmatpush1.bf16.msra.mxu0 %v4396
        %4537 = vmatprep.subr.bf16.mxu0 %v4399
        %4538 = vmatpush1.bf16.msra.mxu0 %v4398
        %4539 = vmatprep.subr.bf16.mxu0 %v4401
        %4540 = vmatpush1.bf16.msra.mxu0 %v4400
        %4541 = vmatprep.subr.bf16.mxu0 %v4403
        %4542 = vmatpush1.bf16.msra.mxu0 %v4402
        %4543 = vmatprep.subr.bf16.mxu0 %v4405
        %4544 = vmatpush1.bf16.msra.mxu0 %v4404
        %4545 = vmatprep.subr.bf16.mxu0 %v4407
        %4546 = vmatpush1.bf16.msra.mxu0 %v4406
        %4547 = vmatprep.mubr.bf16.mxu0 %v4116
        %4548 = vmatmul.mubr.bf16.gmra.mrb[0].mxu0 %v4115
        %v4549 = vpop.f32.mrb[0].mxu0
        %v4550 = vadd.f32 %v4508, %v4549
        %v4551 = vpop.f32.mrb[0].mxu0
        %v4552 = vadd.f32 %v4512, %v4551
        %v4553 = vpop.f32.mrb[0].mxu0
        %v4554 = vpop.f32.mrb[0].mxu0
        %4555 = vdwg.mxu0
        %4556 = vmatprep.subr.bf16.mxu0 %v4409
        %4557 = vmatpush1.bf16.msra.mxu0 %v4408
        %4558 = vmatprep.subr.bf16.mxu0 %v4411
        %4559 = vmatpush1.bf16.msra.mxu0 %v4410
        %4560 = vmatprep.subr.bf16.mxu0 %v4413
        %4561 = vmatpush1.bf16.msra.mxu0 %v4412
        %4562 = vmatprep.subr.bf16.mxu0 %v4415
        %4563 = vmatpush1.bf16.msra.mxu0 %v4414
        %4564 = vmatprep.subr.bf16.mxu0 %v4417
        %4565 = vmatpush1.bf16.msra.mxu0 %v4416
        %4566 = vmatprep.subr.bf16.mxu0 %v4419
        %4567 = vmatpush1.bf16.msra.mxu0 %v4418
        %4568 = vmatprep.subr.bf16.mxu0 %v4421
        %4569 = vmatpush1.bf16.msra.mxu0 %v4420
        %4570 = vmatprep.subr.bf16.mxu0 %v4423
        %4571 = vmatpush1.bf16.msra.mxu0 %v4422
        %4572 = vmatprep.subr.bf16.mxu0 %v4425
        %4573 = vmatpush1.bf16.msra.mxu0 %v4424
        %4574 = vmatprep.subr.bf16.mxu0 %v4427
        %4575 = vmatpush1.bf16.msra.mxu0 %v4426
        %4576 = vmatprep.subr.bf16.mxu0 %v4429
        %4577 = vmatpush1.bf16.msra.mxu0 %v4428
        %4578 = vmatprep.subr.bf16.mxu0 %v4431
        %4579 = vmatpush1.bf16.msra.mxu0 %v4430
        %4580 = vmatprep.subr.bf16.mxu0 %v4433
        %4581 = vmatpush1.bf16.msra.mxu0 %v4432
        %4582 = vmatprep.subr.bf16.mxu0 %v4435
        %4583 = vmatpush1.bf16.msra.mxu0 %v4434
        %4584 = vmatprep.subr.bf16.mxu0 %v4437
        %4585 = vmatpush1.bf16.msra.mxu0 %v4436
        %4586 = vmatprep.subr.bf16.mxu0 %v4439
        %4587 = vmatpush1.bf16.msra.mxu0 %v4438
        %4588 = vmatprep.mubr.bf16.mxu0 %v4118
        %4589 = vmatmul.mubr.bf16.gmra.mrb[0].mxu0 %v4117
        %v4590 = vpop.f32.mrb[0].mxu0
        %v4591 = vadd.f32 %v4550, %v4590
        %v4592 = vpop.f32.mrb[0].mxu0
        %v4593 = vadd.f32 %v4552, %v4592
        %v4594 = vpop.f32.mrb[0].mxu0
        %v4595 = vpop.f32.mrb[0].mxu0
        %4596 = vdwg.mxu0
        %v4597 = vmax.f32 %v4591, 0.0
        %v4598 = vmax.f32 %v4593, 0.0
        %v4599 = vpack.c.bf16 %v4597, %v4597
        %v4600 = vpack.c.bf16 %v4598, %v4598
        %v4601 = vld [vmem:[%s10] sm:$0xf]
        %v4602 = vld [vmem:[%s10 + $0x4] sm:$0xf]
        %v4603 = vld [vmem:[%s10 + $0x8] sm:$0xf]
        %v4604 = vld [vmem:[%s10 + $0xc] sm:$0xf]
        %v4605 = vld [vmem:[%s10 + $0x10] sm:$0xf]
        %v4606 = vld [vmem:[%s10 + $0x14] sm:$0xf]
        %v4607 = vld [vmem:[%s10 + $0x18] sm:$0xf]
        %v4608 = vld [vmem:[%s10 + $0x1c] sm:$0xf]
        %v4609 = vld [vmem:[%s10 + $0x20] sm:$0xf]
        %v4610 = vld [vmem:[%s10 + $0x24] sm:$0xf]
        %v4611 = vld [vmem:[%s10 + $0x28] sm:$0xf]
        %v4612 = vld [vmem:[%s10 + $0x2c] sm:$0xf]
        %v4613 = vld [vmem:[%s10 + $0x30] sm:$0xf]
        %v4614 = vld [vmem:[%s10 + $0x34] sm:$0xf]
        %v4615 = vld [vmem:[%s10 + $0x38] sm:$0xf]
        %v4616 = vld [vmem:[%s10 + $0x3c] sm:$0xf]
        %v4617 = vld [vmem:[%s10 + $0x40] sm:$0xf]
        %v4618 = vld [vmem:[%s10 + $0x44] sm:$0xf]
        %v4619 = vld [vmem:[%s10 + $0x48] sm:$0xf]
        %v4620 = vld [vmem:[%s10 + $0x4c] sm:$0xf]
        %v4621 = vld [vmem:[%s10 + $0x50] sm:$0xf]
        %v4622 = vld [vmem:[%s10 + $0x54] sm:$0xf]
        %v4623 = vld [vmem:[%s10 + $0x58] sm:$0xf]
        %v4624 = vld [vmem:[%s10 + $0x5c] sm:$0xf]
        %v4625 = vld [vmem:[%s10 + $0x60] sm:$0xf]
        %v4626 = vld [vmem:[%s10 + $0x64] sm:$0xf]
        %v4627 = vld [vmem:[%s10 + $0x68] sm:$0xf]
        %v4628 = vld [vmem:[%s10 + $0x6c] sm:$0xf]
        %v4629 = vld [vmem:[%s10 + $0x70] sm:$0xf]
        %v4630 = vld [vmem:[%s10 + $0x74] sm:$0xf]
        %v4631 = vld [vmem:[%s10 + $0x78] sm:$0xf]
        %v4632 = vld [vmem:[%s10 + $0x7c] sm:$0xf]
        %v4633 = vld [vmem:[%s11] sm:$0x1]
        %v4666 = vunpack.c.l.b16 %v4601
        %v4667 = vunpack.c.l.b16 %v4602
        %v4668 = vunpack.c.l.b16 %v4603
        %v4669 = vunpack.c.l.b16 %v4604
        %v4670 = vunpack.c.l.b16 %v4605
        %v4671 = vunpack.c.l.b16 %v4606
        %v4672 = vunpack.c.l.b16 %v4607
        %v4673 = vunpack.c.l.b16 %v4608
        %v4674 = vunpack.c.l.b16 %v4609
        %v4675 = vunpack.c.l.b16 %v4610
        %v4676 = vunpack.c.l.b16 %v4611
        %v4677 = vunpack.c.l.b16 %v4612
        %v4678 = vunpack.c.l.b16 %v4613
        %v4679 = vunpack.c.l.b16 %v4614
        %v4680 = vunpack.c.l.b16 %v4615
        %v4681 = vunpack.c.l.b16 %v4616
        %v4682 = vunpack.c.l.b16 %v4617
        %v4683 = vunpack.c.l.b16 %v4618
        %v4684 = vunpack.c.l.b16 %v4619
        %v4685 = vunpack.c.l.b16 %v4620
        %v4686 = vunpack.c.l.b16 %v4621
        %v4687 = vunpack.c.l.b16 %v4622
        %v4688 = vunpack.c.l.b16 %v4623
        %v4689 = vunpack.c.l.b16 %v4624
        %v4690 = vunpack.c.l.b16 %v4625
        %v4691 = vunpack.c.l.b16 %v4626
        %v4692 = vunpack.c.l.b16 %v4627
        %v4693 = vunpack.c.l.b16 %v4628
        %v4694 = vunpack.c.l.b16 %v4629
        %v4695 = vunpack.c.l.b16 %v4630
        %v4696 = vunpack.c.l.b16 %v4631
        %v4697 = vunpack.c.l.b16 %v4632
        %v4698 = vpack.c.b16 %v4667, %v4666
        %v4699 = vpack.c.b16 %v4669, %v4668
        %v4700 = vpack.c.b16 %v4671, %v4670
        %v4701 = vpack.c.b16 %v4673, %v4672
        %v4702 = vpack.c.b16 %v4675, %v4674
        %v4703 = vpack.c.b16 %v4677, %v4676
        %v4704 = vpack.c.b16 %v4679, %v4678
        %v4705 = vpack.c.b16 %v4681, %v4680
        %v4706 = vpack.c.b16 %v4683, %v4682
        %v4707 = vpack.c.b16 %v4685, %v4684
        %v4708 = vpack.c.b16 %v4687, %v4686
        %v4709 = vpack.c.b16 %v4689, %v4688
        %v4710 = vpack.c.b16 %v4691, %v4690
        %v4711 = vpack.c.b16 %v4693, %v4692
        %v4712 = vpack.c.b16 %v4695, %v4694
        %v4713 = vpack.c.b16 %v4697, %v4696
        %4730 = vmatprep.subr.bf16.mxu0 0
        %4731 = vmatpush1.bf16.msra.mxu0 %v4698
        %4732 = vmatprep.subr.bf16.mxu0 0
        %4733 = vmatpush1.bf16.msra.mxu0 %v4699
        %4734 = vmatprep.subr.bf16.mxu0 0
        %4735 = vmatpush1.bf16.msra.mxu0 %v4700
        %4736 = vmatprep.subr.bf16.mxu0 0
        %4737 = vmatpush1.bf16.msra.mxu0 %v4701
        %4738 = vmatprep.subr.bf16.mxu0 0
        %4739 = vmatpush1.bf16.msra.mxu0 %v4702
        %4740 = vmatprep.subr.bf16.mxu0 0
        %4741 = vmatpush1.bf16.msra.mxu0 %v4703
        %4742 = vmatprep.subr.bf16.mxu0 0
        %4743 = vmatpush1.bf16.msra.mxu0 %v4704
        %4744 = vmatprep.subr.bf16.mxu0 0
        %4745 = vmatpush1.bf16.msra.mxu0 %v4705
        %4746 = vmatprep.subr.bf16.mxu0 0
        %4747 = vmatpush1.bf16.msra.mxu0 %v4706
        %4748 = vmatprep.subr.bf16.mxu0 0
        %4749 = vmatpush1.bf16.msra.mxu0 %v4707
        %4750 = vmatprep.subr.bf16.mxu0 0
        %4751 = vmatpush1.bf16.msra.mxu0 %v4708
        %4752 = vmatprep.subr.bf16.mxu0 0
        %4753 = vmatpush1.bf16.msra.mxu0 %v4709
        %4754 = vmatprep.subr.bf16.mxu0 0
        %4755 = vmatpush1.bf16.msra.mxu0 %v4710
        %4756 = vmatprep.subr.bf16.mxu0 0
        %4757 = vmatpush1.bf16.msra.mxu0 %v4711
        %4758 = vmatprep.subr.bf16.mxu0 0
        %4759 = vmatpush1.bf16.msra.mxu0 %v4712
        %4760 = vmatprep.subr.bf16.mxu0 0
        %4761 = vmatpush1.bf16.msra.mxu0 %v4713
        %4762 = vmatprep.mubr.bf16.mxu0 %v4600
        %4763 = vmatmul.mubr.bf16.gmra.mrb[0].mxu0 %v4599
        %v4764 = vpop.f32.mrb[0].mxu0
        %v4765 = vadd.f32 %v4633, %v4764
        %v4766 = vpop.f32.mrb[0].mxu0
        %v4767 = vpop.f32.mrb[0].mxu0
        %v4768 = vpop.f32.mrb[0].mxu0
        %4769 = vdwg.mxu0
        %vm4770 = vcmask 24576
        %4771 = vst.msk [vmem:[%s465] sm:$0x1] %vm4770, %v4765
        %s4772 = sand.u32 %s299, 1
        %s4773 = scalar_lea.sflag [#allocation6], %s4772
        %s4774 = sand.u32 %s299, 1
        %s4775 = scalar_lea.vmem [#allocation10], %s4774
        // Predicated region
        $region81: #{tpu_custom_call.1} parent=67 // pred_check
          %p4776 = pneg %p309
        $region82: #{tpu_custom_call.1} parent=67 // pred_check_branch
          %4778 = sbr.rel (%p4776) target = $region84
        $region83: #{tpu_custom_call.1} parent=67 // pred_region
          %s4780 = ssub.s32 16, 16
          %4781 = vsyncadd %s4773, %s4780
          %s4782 = smul.addr %s29, 16
          %s4783 = scalar_lea.hbm %s12, %s4782
          %s4785 = sshll.u32 %s4775, 4
          %s4786 = int_to_ptr.vmem [resolvable:$true] %s4785
          %4788 = dma.vmem_to_hbm [thread:$0]  %s4786, 16, %s4783, %s4773
        $region84: #{tpu_custom_call.1} parent=67 // pred_fallthru
          _
      $region68: #{tpu_custom_call.1} parent=5 // pred_fallthru
        _
      %p4789 = scmp.le.s32.totalorder 2, %s24
      // Predicated region
      $region85: #{tpu_custom_call.1} parent=5 // pred_check
        %p4790 = pneg %p4789
      $region86: #{tpu_custom_call.1} parent=5 // pred_check_branch
        %4792 = sbr.rel (%p4790) target = $region88
      $region87: #{tpu_custom_call.1} parent=5 // pred_region
        %s4793 = ssub.s32 %s24, 2
        // Predicated region
        $region89: #{tpu_custom_call.1} parent=87 // pred_check
          %p4794 = pneg %p315
        $region90: #{tpu_custom_call.1} parent=87 // pred_check_branch
          %4796 = sbr.rel (%p4794) target = $region92
        $region91: #{tpu_custom_call.1} parent=87 // pred_region
          %s4797 = sand.u32 %s300, 1
          %s4798 = scalar_lea.sflag [#allocation6], %s4797
          %s4799 = sand.u32 %s300, 1
          %s4800 = scalar_lea.vmem [#allocation10], %s4799
          %4801 = dma.done %s4798, 16
        $region92: #{tpu_custom_call.1} parent=87 // pred_fallthru
          _
      $region88: #{tpu_custom_call.1} parent=5 // pred_fallthru
        _
    $region6: #{tpu_custom_call.1} parent=1 // loop_footer
      %s28 = sadd.s32 1, %s24
    $region7: #{tpu_custom_call.1} parent=1 // loop_footer_branch
      %23 = sbr.rel target = $region3
    $region8: #{tpu_custom_call.1} parent=1 // loop_exit
      _
    %4802 = vsyncpa [#allocation5], 1
    %s4803 = scalar_lea.sflag [#allocation5], 1
    %4804 = vsyncpa %s4803, 1
    %4805 = vsyncpa [#allocation8], 1
    %4806 = vsyncpa [#allocation6], 1
    %s4807 = scalar_lea.sflag [#allocation6], 1
    %4808 = vsyncpa %s4807, 1

</llo_original>
